<compile_context>
chip_gen: v7x
topology: tpu7x:2x2x1
jax: 0.10.0
libtpu: 0.0.40
codegen_flags: <defaults>
</compile_context>

<pallas_src>
import functools
import math

import jax
import jax.numpy as jnp
from jax.experimental import pallas as pl
from jax.experimental.pallas import tpu as pltpu

EPS = 1e-5          # torch GroupNorm default eps
NEG_SLOPE = 0.1     # LeakyReLU(0.1)


def _leaky(x):
    return jnp.where(x > 0, x, NEG_SLOPE * x)


def _round_up(n, m):
    return ((n + m - 1) // m) * m


def _pick_tile(n, target):
    """Largest divisor of n that is <= target, preferring multiples of 16."""
    for align in (16, 8):
        for t in range(min(target, n), align - 1, -1):
            if n % t == 0 and t % align == 0:
                return t
    return min(n, target)


def _vmem_capacity_bytes():
    try:
        return int(pltpu.get_tpu_info().vmem_capacity_bytes)
    except Exception:
        return 128 * 1024 * 1024   # v5e/v6e default; v7x is 64 MiB


# --------------------------------------------------------------------------- #
# Kernel 1: pos_encoder statistics pass (Conv1d 3->C recompute -> masked sums)
# --------------------------------------------------------------------------- #
def _pos_stats_kernel(n_valid, xyz_ref, w_ref, b_ref, st_ref):
    # xyz: (1,T,3) f32 | w: (3,C) | b: (1,C) | st: (1,1,2,C) = (sum, sumsq)
    T = xyz_ref.shape[1]
    x = xyz_ref[0]                                                     # [T, 3]
    w = w_ref[...]
    h = (x[:, 0:1] * w[0:1, :] + x[:, 1:2] * w[1:2, :]
         + x[:, 2:3] * w[2:3, :] + b_ref[...])                         # [T, C]
    rows = jax.lax.broadcasted_iota(jnp.int32, (T, 1), 0) + pl.program_id(1) * T
    hm = jnp.where(rows < n_valid, h, 0.0)                             # mask padded rows
    st_ref[0, 0, 0:1, :] = jnp.sum(hm, axis=0, keepdims=True)
    st_ref[0, 0, 1:2, :] = jnp.sum(hm * hm, axis=0, keepdims=True)


# --------------------------------------------------------------------------- #
# Kernel 2: pos_encoder apply pass: recompute conv, affine GN, LeakyReLU, +feat
# --------------------------------------------------------------------------- #
def _pos_apply_kernel(xyz_ref, feat_ref, w_ref, b_ref, a_ref, bb_ref, out_ref):
    x = xyz_ref[0]                                                     # [T, 3]
    w = w_ref[...]
    h = (x[:, 0:1] * w[0:1, :] + x[:, 1:2] * w[1:2, :]
         + x[:, 2:3] * w[2:3, :] + b_ref[...])                         # [T, C]
    pos = _leaky(h * a_ref[0] + bb_ref[0])
    out_ref[0] = (feat_ref[0] + pos).astype(out_ref.dtype)


# --------------------------------------------------------------------------- #
# Kernel 3: GroupNorm finalize on the feed-forward output: leaky(x*a + b)
# --------------------------------------------------------------------------- #
def _gn_finish_kernel(x_ref, a_ref, b_ref, out_ref):
    x = x_ref[0].astype(jnp.float32)
    out_ref[0] = _leaky(x * a_ref[0] + b_ref[0]).astype(out_ref.dtype)


# --------------------------------------------------------------------------- #
# Kernel 4: attention + feed-forward conv, tiled over N1 (per (batch, tile))
# --------------------------------------------------------------------------- #
def _atten_kernel(skip_connection, n_valid,
                  rxyz_ref, f1_ref, f2g_ref,
                  we_ref, be_ref, wqk_ref, wv_ref, wff_ref, bff_ref,
                  ff_ref, st_ref):
    # rxyz: (1,T,S,3) f32 | f1: (1,T,C) bf16 | f2g: (1,T,S,C) bf16
    # we: (3,4C) bf16 fused early-encoder weights | be: (1,4C) f32
    # wqk, wv: (C,C) bf16 (wqk pre-scaled by 1/sqrt(C)) | wff: (C,Co) bf16 | bff: (1,Co) f32
    # ff: (1,T,Co) bf16 | st: (1,1,2,Co) per-tile masked (sum, sumsq) in f32
    T = f1_ref.shape[1]
    S = f2g_ref.shape[2]
    C = f2g_ref.shape[3]

    f1 = f1_ref[0]                          # [T, C]    bf16
    f2g = f2g_ref[0]                        # [T, S, C] bf16

    # Early q/k/v1/v2 encoders fused into one MXU matmul: [T*S,3] @ [3,4C].
    rx = rxyz_ref[0].astype(jnp.bfloat16).reshape(T * S, 3)
    e = _leaky(jnp.dot(rx, we_ref[...], preferred_element_type=jnp.float32)
               + be_ref[...])                                          # [T*S, 4C] f32
    eq = e[:, 0 * C:1 * C].reshape(T, S, C)
    ek = e[:, 1 * C:2 * C].reshape(T, S, C)
    ev1 = e[:, 2 * C:3 * C].reshape(T, S, C)
    ev2 = e[:, 3 * C:4 * C].reshape(T, S, C)

    qin = (f1[:, None, :] * eq).astype(jnp.bfloat16).reshape(T * S, C)
    q = jnp.dot(qin, wqk_ref[...], preferred_element_type=jnp.float32).reshape(T, S, C)
    k = f2g.astype(jnp.float32) * ek
    vin = (f2g.astype(jnp.float32) * ev1).astype(jnp.bfloat16).reshape(T * S, C)
    v = jnp.dot(vin, wv_ref[...], preferred_element_type=jnp.float32).reshape(T, S, C) * ev2

    # Softmax over the neighbor axis, kept in [T,S,1] layout throughout.
    logits = jnp.sum(q * k, axis=-1, keepdims=True)                    # [T, S, 1]
    m = jnp.max(logits, axis=1, keepdims=True)                         # [T, 1, 1]
    p = jnp.exp(logits - m)
    attw = p * pl.reciprocal(jnp.sum(p, axis=1, keepdims=True), approx=True)
    feat_new = jnp.sum(v * attw, axis=1)                               # [T, C]
    if skip_connection:
        feat_new = feat_new + f1.astype(jnp.float32)

    ff = jnp.dot(feat_new.astype(jnp.bfloat16), wff_ref[...],
                 preferred_element_type=jnp.float32) + bff_ref[...]    # [T, Co] f32

    rows = jax.lax.broadcasted_iota(jnp.int32, (T, 1), 0) + pl.program_id(1) * T
    ffm = jnp.where(rows < n_valid, ff, 0.0)
    st_ref[0, 0, 0:1, :] = jnp.sum(ffm, axis=0, keepdims=True)
    st_ref[0, 0, 1:2, :] = jnp.sum(ffm * ffm, axis=0, keepdims=True)
    ff_ref[0] = ff.astype(ff_ref.dtype)


# --------------------------------------------------------------------------- #
# Wrappers
# --------------------------------------------------------------------------- #
def _pos_stats(xyz_p, w, b, tile, n_valid):
    B, Np, _ = xyz_p.shape
    C = w.shape[1]
    nt = Np // tile
    return pl.pallas_call(
        functools.partial(_pos_stats_kernel, n_valid),
        out_shape=jax.ShapeDtypeStruct((B, nt, 2, C), jnp.float32),
        grid=(B, nt),
        in_specs=[pl.BlockSpec((1, tile, 3), lambda bi, ti: (bi, ti, 0)),
                  pl.BlockSpec((3, C), lambda bi, ti: (0, 0)),
                  pl.BlockSpec((1, C), lambda bi, ti: (0, 0))],
        out_specs=pl.BlockSpec((1, 1, 2, C), lambda bi, ti: (bi, ti, 0, 0)),
        compiler_params=pltpu.CompilerParams(
            dimension_semantics=("parallel", "parallel")),
    )(xyz_p, w, b)


def _pos_apply(xyz_p, feat_p, w, b, a, bb, tile):
    B, Np, _ = xyz_p.shape
    C = w.shape[1]
    nt = Np // tile
    return pl.pallas_call(
        _pos_apply_kernel,
        out_shape=jax.ShapeDtypeStruct((B, Np, C), jnp.bfloat16),
        grid=(B, nt),
        in_specs=[pl.BlockSpec((1, tile, 3), lambda bi, ti: (bi, ti, 0)),
                  pl.BlockSpec((1, tile, C), lambda bi, ti: (bi, ti, 0)),
                  pl.BlockSpec((3, C), lambda bi, ti: (0, 0)),
                  pl.BlockSpec((1, C), lambda bi, ti: (0, 0)),
                  pl.BlockSpec((1, 1, C), lambda bi, ti: (bi, 0, 0)),
                  pl.BlockSpec((1, 1, C), lambda bi, ti: (bi, 0, 0))],
        out_specs=pl.BlockSpec((1, tile, C), lambda bi, ti: (bi, ti, 0)),
        compiler_params=pltpu.CompilerParams(
            dimension_semantics=("parallel", "parallel")),
    )(xyz_p, feat_p, w, b, a, bb)


def _gn_finish(x, a, b, tile):
    B, Np, C = x.shape
    nt = Np // tile
    return pl.pallas_call(
        _gn_finish_kernel,
        out_shape=jax.ShapeDtypeStruct((B, Np, C), jnp.float32),
        grid=(B, nt),
        in_specs=[pl.BlockSpec((1, tile, C), lambda bi, ti: (bi, ti, 0)),
                  pl.BlockSpec((1, 1, C), lambda bi, ti: (bi, 0, 0)),
                  pl.BlockSpec((1, 1, C), lambda bi, ti: (bi, 0, 0))],
        out_specs=pl.BlockSpec((1, tile, C), lambda bi, ti: (bi, ti, 0)),
        compiler_params=pltpu.CompilerParams(
            dimension_semantics=("parallel", "parallel")),
    )(x, a, b)


def _gn_affine_from_stats(st, gamma, beta, n, num_groups):
    # st: [B, NT, 2, C] per-tile masked (sum, sumsq) -> per-channel scale/shift [B,1,C].
    tot = jnp.sum(st, axis=1)                                      # [B, 2, C]
    B, _, C = tot.shape
    cg = C // num_groups
    s = tot[:, 0].reshape(B, num_groups, cg).sum(-1)               # [B, G]
    sq = tot[:, 1].reshape(B, num_groups, cg).sum(-1)
    cnt = float(n * cg)
    mean = s / cnt
    var = jnp.maximum(sq / cnt - mean * mean, 0.0)
    inv = jax.lax.rsqrt(var + EPS)                                 # [B, G]
    a = jnp.repeat(inv, cg, axis=1) * gamma                        # [B, C]
    b = beta - jnp.repeat(mean, cg, axis=1) * a
    return a[:, None, :], b[:, None, :]


def _prepare_params(params, C):
    # Concatenate the 4 early encoders into one [3,4C] MXU weight; bf16 + 1/sqrt(C) fold.
    w_e4 = jnp.concatenate([params["w_eq"], params["w_ek"],
                            params["w_ev1"], params["w_ev2"]], axis=1).astype(jnp.bfloat16)
    b_e4 = jnp.concatenate([params["b_eq"], params["b_ek"],
                            params["b_ev1"], params["b_ev2"]], axis=1)              # [1,4C] f32
    wqk = (params["w_qk"] * (1.0 / math.sqrt(C))).astype(jnp.bfloat16)
    wv = params["w_v"].astype(jnp.bfloat16)
    wff = params["w_ff"].astype(jnp.bfloat16)
    return w_e4, b_e4, wqk, wv, wff


def _attention(rxyz, feat1p, feat2_g, prepped, b_ff, n1_valid, tile,
               skip_connection, vmem_limit):
    B, N1p, S, _ = rxyz.shape
    C = feat1p.shape[2]
    Cout = b_ff.shape[1]
    nt1 = N1p // tile
    w_e4, b_e4, wqk, wv, wff = prepped
    const = lambda shape: pl.BlockSpec(shape, lambda bi, ti: (0,) * len(shape))
    return pl.pallas_call(
        functools.partial(_atten_kernel, skip_connection, n1_valid),
        out_shape=(jax.ShapeDtypeStruct((B, N1p, Cout), jnp.bfloat16),
                   jax.ShapeDtypeStruct((B, nt1, 2, Cout), jnp.float32)),
        grid=(B, nt1),
        in_specs=[
            pl.BlockSpec((1, tile, S, 3), lambda bi, ti: (bi, ti, 0, 0)),
            pl.BlockSpec((1, tile, C), lambda bi, ti: (bi, ti, 0)),
            pl.BlockSpec((1, tile, S, C), lambda bi, ti: (bi, ti, 0, 0)),
            const((3, 4 * C)), const((1, 4 * C)),
            const((C, C)), const((C, C)),
            const((C, Cout)), const((1, Cout)),
        ],
        out_specs=(pl.BlockSpec((1, tile, Cout), lambda bi, ti: (bi, ti, 0)),
                   pl.BlockSpec((1, 1, 2, Cout), lambda bi, ti: (bi, ti, 0, 0))),
        compiler_params=pltpu.CompilerParams(
            dimension_semantics=("parallel", "parallel"),
            vmem_limit_bytes=vmem_limit),
    )(rxyz, feat1p, feat2_g, w_e4, b_e4, wqk, wv, wff, b_ff)


# --------------------------------------------------------------------------- #
# Full forward (PyTorch NCW convention at the boundary)
# --------------------------------------------------------------------------- #
def rpp_atten_forward(xyz1, xyz2, feat1, feat2, params, nsample,
                      skip_connection=True, tile_n=128):
    B, _, N1 = xyz1.shape
    N2 = xyz2.shape[2]
    C = feat1.shape[1]
    Cout = params["w_ff"].shape[1]
    assert C % 16 == 0 and Cout % 16 == 0, "GroupNorm uses C//16 groups"
    assert nsample <= N2, "padding relies on nsample <= N2"
    g_in, g_out = C // 16, Cout // 16

    vmem_cap = _vmem_capacity_bytes()
    vmem_limit = min(48 * 1024 * 1024, (vmem_cap * 3) // 4)
    attn_budget = vmem_cap // 4

    # Attention tile: multiple of 16, capped so ~12 live [t1,S,C] f32 intermediates fit.
    t1 = max(16, (min(tile_n, 256) // 16) * 16)
    while t1 > 16 and 12 * t1 * nsample * C * 4 > attn_budget:
        t1 //= 2
    t1 = max(16, (t1 // 16) * 16)

    # Pad N1/N2 up to aligned multiples; stats kernels mask the padded rows.
    N1p = _round_up(N1, t1)
    N2p = _round_up(N2, 16)
    nt1 = N1p // t1
    # Larger row tiles for the mem-bound elementwise/stats kernels.
    tg1 = _pick_tile(N1p, 512)
    tg2 = _pick_tile(N2p, 512)

    xyz1_t = jnp.transpose(xyz1, (0, 2, 1))                  # [B, N1, 3]
    xyz2_t = jnp.transpose(xyz2, (0, 2, 1))                  # [B, N2, 3]
    feat1_t = jnp.transpose(feat1, (0, 2, 1))                # [B, N1, C]
    feat2_t = jnp.transpose(feat2, (0, 2, 1))                # [B, N2, C]

    pad1, pad2 = N1p - N1, N2p - N2
    xyz1_p = jnp.pad(xyz1_t, ((0, 0), (0, pad1), (0, 0)))
    feat1_p = jnp.pad(feat1_t, ((0, 0), (0, pad1), (0, 0)))
    # Padded xyz2 rows are pushed far away so kNN never selects them.
    xyz2_p = jnp.pad(xyz2_t, ((0, 0), (0, pad2), (0, 0)), constant_values=1e6)
    feat2_p = jnp.pad(feat2_t, ((0, 0), (0, pad2), (0, 0)))

    # pos encoder: stats pass -> affine -> fused (conv recompute + GN + LeakyReLU + feat).
    st1 = _pos_stats(xyz1_p, params["w_pos"], params["b_pos"], tg1, N1)
    a1, b1 = _gn_affine_from_stats(st1, params["g_pos"], params["be_pos"], N1, g_in)
    feat1p = _pos_apply(xyz1_p, feat1_p, params["w_pos"], params["b_pos"], a1, b1, tg1)

    st2 = _pos_stats(xyz2_p, params["w_pos"], params["b_pos"], tg2, N2)
    a2, b2 = _gn_affine_from_stats(st2, params["g_pos"], params["be_pos"], N2, g_in)
    feat2p = _pos_apply(xyz2_p, feat2_p, params["w_pos"], params["b_pos"], a2, b2, tg2)

    # kNN + neighbor gather are data-dependent -> plain-JAX glue.
    # TODO(synk): in-kernel gather (scalar-prefetched idx + VMEM-resident feat2p) would
    #             remove the S-fold HBM round trip of feat2_g on all generations.
    d = jnp.sum((xyz1_p[:, :, None, :] - xyz2_p[:, None, :, :]) ** 2, axis=-1)   # [B,N1p,N2p]
    _, idx = jax.lax.top_k(-d, nsample)                                          # [B,N1p,S]
    gather = jax.vmap(lambda pts, ids: pts[ids])
    feat2_g = gather(feat2p, idx)                             # [B,N1p,S,C] bf16
    rxyz = gather(xyz2_p, idx) - xyz1_p[:, :, None, :]        # [B,N1p,S,3] f32 (coord-last)

    prepped = _prepare_params(params, C)
    ff_raw, st_ff = _attention(rxyz, feat1p, feat2_g, prepped, params["b_ff"],
                               N1, t1, skip_connection, vmem_limit)

    a_out, b_out = _gn_affine_from_stats(st_ff, params["g_ff"], params["be_ff"], N1, g_out)
    tgf = _pick_tile(N1p, 512)
    out = _gn_finish(ff_raw, a_out, b_out, tgf)               # [B, N1p, Cout] f32
    out = out[:, :N1, :]
    return xyz1, jnp.transpose(out, (0, 2, 1))


# --------------------------------------------------------------------------- #
# Pure-JAX reference (mirrors the kernel's bf16 cast points) for correctness
# --------------------------------------------------------------------------- #
def _gn_ref(x, gamma, beta, groups, apply_to=None):           # x: [B,N,C]
    B, N, C = x.shape
    cg = C // groups
    xg = x.reshape(B, N, groups, cg)
    mean = jnp.mean(xg, axis=(1, 3), keepdims=True)
    var = jnp.maximum(jnp.mean(xg * xg, axis=(1, 3), keepdims=True) - mean * mean, 0.0)
    src = xg if apply_to is None else apply_to.reshape(B, N, groups, cg)
    xn = ((src - mean) * jax.lax.rsqrt(var + EPS)).reshape(B, N, C)
    return xn * gamma + beta


def rpp_atten_reference(xyz1, xyz2, feat1, feat2, params, nsample, skip_connection=True):
    C = feat1.shape[1]
    g_in, g_out = C // 16, params["w_ff"].shape[1] // 16
    bf = lambda x: x.astype(jnp.bfloat16).astype(jnp.float32)

    xyz1_t = jnp.transpose(xyz1, (0, 2, 1))
    xyz2_t = jnp.transpose(xyz2, (0, 2, 1))

    def pos(xyz_t, feat_t):
        h = jnp.einsum("bnk,kc->bnc", xyz_t, params["w_pos"]) + params["b_pos"]
        return bf(feat_t + _leaky(_gn_ref(h, params["g_pos"], params["be_pos"], g_in)))

    f1p = pos(xyz1_t, jnp.transpose(feat1, (0, 2, 1)))
    f2p = pos(xyz2_t, jnp.transpose(feat2, (0, 2, 1)))

    d = jnp.sum((xyz1_t[:, :, None, :] - xyz2_t[:, None, :, :]) ** 2, axis=-1)
    _, idx = jax.lax.top_k(-d, nsample)
    gather = jax.vmap(lambda pts, ids: pts[ids])
    f2g = gather(f2p, idx)
    rx = bf(gather(xyz2_t, idx) - xyz1_t[:, :, None, :])

    def enc(w, b):
        return _leaky(jnp.einsum("bnsk,kc->bnsc", rx, bf(w)) + b)

    eq, ek = enc(params["w_eq"], params["b_eq"]), enc(params["w_ek"], params["b_ek"])
    ev1, ev2 = enc(params["w_ev1"], params["b_ev1"]), enc(params["w_ev2"], params["b_ev2"])

    wqk = bf(params["w_qk"] * (1.0 / math.sqrt(C)))
    wv = bf(params["w_v"])
    wff = bf(params["w_ff"])

    q = jnp.einsum("bnsc,cd->bnsd", bf(f1p[:, :, None, :] * eq), wqk)
    k = f2g * ek
    v = jnp.einsum("bnsc,cd->bnsd", bf(f2g * ev1), wv) * ev2
    logits = jnp.sum(q * k, axis=-1)
    attw = jax.nn.softmax(logits, axis=-1)
    feat_new = jnp.sum(v * attw[..., None], axis=2)
    if skip_connection:
        feat_new = feat_new + f1p
    ff = jnp.einsum("bnc,cd->bnd", bf(feat_new), wff) + params["b_ff"]
    # Mirror the kernel: GN stats from f32 ff, affine applied to the bf16-rounded ff.
    out = _leaky(_gn_ref(ff, params["g_ff"], params["be_ff"], g_out, apply_to=bf(ff)))
    return xyz1, jnp.transpose(out, (0, 2, 1))


# --------------------------------------------------------------------------- #
# Deterministic parameter init (shapes from RPPAttenLayer.__init__)
# --------------------------------------------------------------------------- #
def init_params(key, in_feat, out_feat):
    ks = jax.random.split(key, 20)
    w = lambda k, shape, s=0.2: (s * jax.random.normal(k, shape)).astype(jnp.float32)
    return {
        "w_pos": w(ks[0], (3, in_feat)), "b_pos": w(ks[1], (1, in_feat), 0.05),
        "g_pos": 1.0 + w(ks[2], (1, in_feat), 0.1), "be_pos": w(ks[3], (1, in_feat), 0.05),
        "w_eq": w(ks[4], (3, in_feat)), "b_eq": w(ks[5], (1, in_feat), 0.05),
        "w_ek": w(ks[6], (3, in_feat)), "b_ek": w(ks[7], (1, in_feat), 0.05),
        "w_ev1": w(ks[8], (3, in_feat)), "b_ev1": w(ks[9], (1, in_feat), 0.05),
        "w_ev2": w(ks[10], (3, in_feat)), "b_ev2": w(ks[11], (1, in_feat), 0.05),
        "w_qk": w(ks[12], (in_feat, in_feat), 0.1),
        "w_v": w(ks[13], (in_feat, in_feat), 0.1),
        "w_ff": w(ks[14], (in_feat, out_feat), 0.1), "b_ff": w(ks[15], (1, out_feat), 0.05),
        "g_ff": 1.0 + w(ks[16], (1, out_feat), 0.1), "be_ff": w(ks[17], (1, out_feat), 0.05),
    }


if __name__ == "__main__":
    # N1=40 / N2=44 deliberately do NOT divide the tiles: exercises the padding +
    # masked-stats path as well as the multi-tile attention grid.
    B, C_in, C_out, N1, N2, S = 2, 32, 32, 40, 44, 8
    key = jax.random.PRNGKey(0)
    k1, k2, k3, k4, kp = jax.random.split(key, 5)
    xyz1 = jax.random.normal(k1, (B, 3, N1), jnp.float32)
    xyz2 = jax.random.normal(k2, (B, 3, N2), jnp.float32)
    feat1 = jax.random.normal(k3, (B, C_in, N1), jnp.float32)
    feat2 = jax.random.normal(k4, (B, C_in, N2), jnp.float32)
    params = init_params(kp, C_in, C_out)

    fwd = jax.jit(functools.partial(rpp_atten_forward, nsample=S,
                                    skip_connection=True, tile_n=16))
    xyz_out, feat_out = fwd(xyz1, xyz2, feat1, feat2, params)
    jax.block_until_ready(feat_out)

    _, ref_feat = rpp_atten_reference(xyz1, xyz2, feat1, feat2, params, S)
    assert xyz_out.shape == (B, 3, N1)
    assert feat_out.shape == (B, C_out, N1)
    # bf16 MXU operands + approx-reciprocal softmax -> compare loosely against the
    # bf16-mirrored f32 reference.
    max_err = float(jnp.max(jnp.abs(feat_out - ref_feat)))
    assert max_err < 1e-2, f"max abs err {max_err}"
    print("KERNEL_OK")
</pallas_src>

<mosaic_0001>
module attributes {stable_mosaic.version = 11 : i64} {
  func.func @_pos_stats_kernel(%arg0: i32, %arg1: i32, %arg2: memref<1x48x3xf32, #tpu.memory_space<vmem>>, %arg3: memref<3x32xf32, #tpu.memory_space<vmem>>, %arg4: memref<1x32xf32, #tpu.memory_space<vmem>>, %arg5: memref<1x1x2x32xf32, #tpu.memory_space<vmem>>) attributes {dimension_semantics = [#tpu.dimension_semantics<parallel>, #tpu.dimension_semantics<parallel>], iteration_bounds = array<i64: 2, 1>, scalar_prefetch = 0 : i64, scratch_operands = 0 : i64, tpu.core_type = #tpu.core_type<tc>, window_params = [{transform_indices = @transform_0, window_bounds = array<i64: 1, 48, 3>}, {pipeline_mode = #tpu.pipeline_mode<synchronous>, transform_indices = @transform_1, window_bounds = array<i64: 3, 32>}, {pipeline_mode = #tpu.pipeline_mode<synchronous>, transform_indices = @transform_2, window_bounds = array<i64: 1, 32>}, {transform_indices = @transform_3, window_bounds = array<i64: 1, 1, 2, 32>}]} {
    %c0 = arith.constant 0 : index
    %c0_0 = arith.constant 0 : index
    %c0_1 = arith.constant 0 : index
    %0 = vector.load %arg2[%c0, %c0_0, %c0_1] : memref<1x48x3xf32, #tpu.memory_space<vmem>>, vector<1x48x3xf32>
    %1 = vector.shape_cast %0 : vector<1x48x3xf32> to vector<48x3xf32>
    %c0_2 = arith.constant 0 : index
    %c0_3 = arith.constant 0 : index
    %2 = vector.load %arg3[%c0_2, %c0_3] : memref<3x32xf32, #tpu.memory_space<vmem>>, vector<3x32xf32>
    %3 = vector.extract_strided_slice %1 {offsets = [0, 0], sizes = [48, 1], strides = [1, 1]} : vector<48x3xf32> to vector<48x1xf32>
    %4 = vector.extract_strided_slice %2 {offsets = [0, 0], sizes = [1, 32], strides = [1, 1]} : vector<3x32xf32> to vector<1x32xf32>
    %5 = vector.broadcast %3 : vector<48x1xf32> to vector<48x32xf32>
    %6 = vector.broadcast %4 : vector<1x32xf32> to vector<48x32xf32>
    %7 = arith.mulf %5, %6 : vector<48x32xf32>
    %8 = vector.extract_strided_slice %1 {offsets = [0, 1], sizes = [48, 1], strides = [1, 1]} : vector<48x3xf32> to vector<48x1xf32>
    %9 = vector.extract_strided_slice %2 {offsets = [1, 0], sizes = [1, 32], strides = [1, 1]} : vector<3x32xf32> to vector<1x32xf32>
    %10 = vector.broadcast %8 : vector<48x1xf32> to vector<48x32xf32>
    %11 = vector.broadcast %9 : vector<1x32xf32> to vector<48x32xf32>
    %12 = arith.mulf %10, %11 : vector<48x32xf32>
    %13 = arith.addf %7, %12 : vector<48x32xf32>
    %14 = vector.extract_strided_slice %1 {offsets = [0, 2], sizes = [48, 1], strides = [1, 1]} : vector<48x3xf32> to vector<48x1xf32>
    %15 = vector.extract_strided_slice %2 {offsets = [2, 0], sizes = [1, 32], strides = [1, 1]} : vector<3x32xf32> to vector<1x32xf32>
    %16 = vector.broadcast %14 : vector<48x1xf32> to vector<48x32xf32>
    %17 = vector.broadcast %15 : vector<1x32xf32> to vector<48x32xf32>
    %18 = arith.mulf %16, %17 : vector<48x32xf32>
    %19 = arith.addf %13, %18 : vector<48x32xf32>
    %c0_4 = arith.constant 0 : index
    %c0_5 = arith.constant 0 : index
    %20 = vector.load %arg4[%c0_4, %c0_5] : memref<1x32xf32, #tpu.memory_space<vmem>>, vector<1x32xf32>
    %21 = vector.broadcast %20 : vector<1x32xf32> to vector<48x32xf32>
    %22 = arith.addf %19, %21 : vector<48x32xf32>
    %23 = tpu.iota {dimensions = array<i32: 0>} : vector<48x1xi32>
    %c48_i32 = arith.constant 48 : i32
    %24 = arith.muli %arg1, %c48_i32 : i32
    %25 = vector.broadcast %24 : i32 to vector<48x1xi32>
    %26 = arith.addi %23, %25 : vector<48x1xi32>
    %c40_i32 = arith.constant 40 : i32
    %27 = vector.broadcast %c40_i32 : i32 to vector<48x1xi32>
    %28 = arith.cmpi slt, %26, %27 : vector<48x1xi32>
    %cst = arith.constant 0.000000e+00 : f32
    %29 = vector.shape_cast %28 : vector<48x1xi1> to vector<48x1xi1>
    %30 = vector.broadcast %29 : vector<48x1xi1> to vector<48x32xi1>
    %31 = vector.broadcast %cst : f32 to vector<48x32xf32>
    %32 = arith.select %30, %22, %31 : vector<48x32xi1>, vector<48x32xf32>
    %cst_6 = arith.constant dense<0.000000e+00> : vector<32xf32>
    %33 = vector.multi_reduction <add>, %32, %cst_6 [0] : vector<48x32xf32> to vector<32xf32>
    %34 = vector.shape_cast %33 : vector<32xf32> to vector<1x32xf32>
    %c0_7 = arith.constant 0 : index
    %c0_8 = arith.constant 0 : index
    %c0_9 = arith.constant 0 : index
    %c0_10 = arith.constant 0 : index
    %35 = vector.load %arg5[%c0_7, %c0_8, %c0_9, %c0_10] : memref<1x1x2x32xf32, #tpu.memory_space<vmem>>, vector<1x1x1x32xf32>
    %36 = vector.shape_cast %35 : vector<1x1x1x32xf32> to vector<1x32xf32>
    %37 = vector.shape_cast %34 : vector<1x32xf32> to vector<1x1x1x32xf32>
    tpu.vector_store %arg5[%c0_7, %c0_8, %c0_9, %c0_10], %37 {strides = array<i32>} : memref<1x1x2x32xf32, #tpu.memory_space<vmem>>, vector<1x1x1x32xf32>,
    %38 = arith.mulf %32, %32 : vector<48x32xf32>
    %cst_11 = arith.constant dense<0.000000e+00> : vector<32xf32>
    %39 = vector.multi_reduction <add>, %38, %cst_11 [0] : vector<48x32xf32> to vector<32xf32>
    %40 = vector.shape_cast %39 : vector<32xf32> to vector<1x32xf32>
    %c0_12 = arith.constant 0 : index
    %c0_13 = arith.constant 0 : index
    %c1 = arith.constant 1 : index
    %c0_14 = arith.constant 0 : index
    %41 = vector.load %arg5[%c0_12, %c0_13, %c1, %c0_14] : memref<1x1x2x32xf32, #tpu.memory_space<vmem>>, vector<1x1x1x32xf32>
    %42 = vector.shape_cast %41 : vector<1x1x1x32xf32> to vector<1x32xf32>
    %43 = vector.shape_cast %40 : vector<1x32xf32> to vector<1x1x1x32xf32>
    tpu.vector_store %arg5[%c0_12, %c0_13, %c1, %c0_14], %43 {strides = array<i32>} : memref<1x1x2x32xf32, #tpu.memory_space<vmem>>, vector<1x1x1x32xf32>,
    return
  }
  func.func @transform_0(%arg0: i32, %arg1: i32) -> (i32, i32, i32) {
    %c0_i32 = arith.constant 0 : i32
    %c0_i32_0 = arith.constant 0 : i32
    return %arg0, %arg1, %c0_i32 : i32, i32, i32
  }
  func.func @transform_1(%arg0: i32, %arg1: i32) -> (i32, i32) {
    %c0_i32 = arith.constant 0 : i32
    %c0_i32_0 = arith.constant 0 : i32
    %c0_i32_1 = arith.constant 0 : i32
    return %c0_i32, %c0_i32_0 : i32, i32
  }
  func.func @transform_2(%arg0: i32, %arg1: i32) -> (i32, i32) {
    %c0_i32 = arith.constant 0 : i32
    %c0_i32_0 = arith.constant 0 : i32
    %c0_i32_1 = arith.constant 0 : i32
    return %c0_i32, %c0_i32_0 : i32, i32
  }
  func.func @transform_3(%arg0: i32, %arg1: i32) -> (i32, i32, i32, i32) {
    %c0_i32 = arith.constant 0 : i32
    %c0_i32_0 = arith.constant 0 : i32
    %c0_i32_1 = arith.constant 0 : i32
    return %arg0, %arg1, %c0_i32, %c0_i32_0 : i32, i32, i32, i32
  }
}

module attributes {stable_mosaic.version = 11 : i64} {
  func.func @_pos_stats_kernel(%arg0: i32, %arg1: i32, %arg2: memref<1x48x3xf32, #tpu.memory_space<vmem>>, %arg3: memref<3x32xf32, #tpu.memory_space<vmem>>, %arg4: memref<1x32xf32, #tpu.memory_space<vmem>>, %arg5: memref<1x1x2x32xf32, #tpu.memory_space<vmem>>) attributes {dimension_semantics = [#tpu.dimension_semantics<parallel>, #tpu.dimension_semantics<parallel>], iteration_bounds = array<i64: 2, 1>, scalar_prefetch = 0 : i64, scratch_operands = 0 : i64, tpu.core_type = #tpu.core_type<tc>, window_params = [{transform_indices = @transform_0, window_bounds = array<i64: 1, 48, 3>}, {pipeline_mode = #tpu.pipeline_mode<synchronous>, transform_indices = @transform_1, window_bounds = array<i64: 3, 32>}, {pipeline_mode = #tpu.pipeline_mode<synchronous>, transform_indices = @transform_2, window_bounds = array<i64: 1, 32>}, {transform_indices = @transform_3, window_bounds = array<i64: 1, 1, 2, 32>}]} {
    %c0 = arith.constant 0 : index
    %c0_0 = arith.constant 0 : index
    %c0_1 = arith.constant 0 : index
    %0 = vector.load %arg2[%c0, %c0_0, %c0_1] : memref<1x48x3xf32, #tpu.memory_space<vmem>>, vector<1x48x3xf32>
    %1 = vector.shape_cast %0 : vector<1x48x3xf32> to vector<48x3xf32>
    %c0_2 = arith.constant 0 : index
    %c0_3 = arith.constant 0 : index
    %2 = vector.load %arg3[%c0_2, %c0_3] : memref<3x32xf32, #tpu.memory_space<vmem>>, vector<3x32xf32>
    %3 = vector.extract_strided_slice %1 {offsets = [0, 0], sizes = [48, 1], strides = [1, 1]} : vector<48x3xf32> to vector<48x1xf32>
    %4 = vector.extract_strided_slice %2 {offsets = [0, 0], sizes = [1, 32], strides = [1, 1]} : vector<3x32xf32> to vector<1x32xf32>
    %5 = vector.broadcast %3 : vector<48x1xf32> to vector<48x32xf32>
    %6 = vector.broadcast %4 : vector<1x32xf32> to vector<48x32xf32>
    %7 = arith.mulf %5, %6 : vector<48x32xf32>
    %8 = vector.extract_strided_slice %1 {offsets = [0, 1], sizes = [48, 1], strides = [1, 1]} : vector<48x3xf32> to vector<48x1xf32>
    %9 = vector.extract_strided_slice %2 {offsets = [1, 0], sizes = [1, 32], strides = [1, 1]} : vector<3x32xf32> to vector<1x32xf32>
    %10 = vector.broadcast %8 : vector<48x1xf32> to vector<48x32xf32>
    %11 = vector.broadcast %9 : vector<1x32xf32> to vector<48x32xf32>
    %12 = arith.mulf %10, %11 : vector<48x32xf32>
    %13 = arith.addf %7, %12 : vector<48x32xf32>
    %14 = vector.extract_strided_slice %1 {offsets = [0, 2], sizes = [48, 1], strides = [1, 1]} : vector<48x3xf32> to vector<48x1xf32>
    %15 = vector.extract_strided_slice %2 {offsets = [2, 0], sizes = [1, 32], strides = [1, 1]} : vector<3x32xf32> to vector<1x32xf32>
    %16 = vector.broadcast %14 : vector<48x1xf32> to vector<48x32xf32>
    %17 = vector.broadcast %15 : vector<1x32xf32> to vector<48x32xf32>
    %18 = arith.mulf %16, %17 : vector<48x32xf32>
    %19 = arith.addf %13, %18 : vector<48x32xf32>
    %c0_4 = arith.constant 0 : index
    %c0_5 = arith.constant 0 : index
    %20 = vector.load %arg4[%c0_4, %c0_5] : memref<1x32xf32, #tpu.memory_space<vmem>>, vector<1x32xf32>
    %21 = vector.broadcast %20 : vector<1x32xf32> to vector<48x32xf32>
    %22 = arith.addf %19, %21 : vector<48x32xf32>
    %23 = tpu.iota {dimensions = array<i32: 0>} : vector<48x1xi32>
    %c48_i32 = arith.constant 48 : i32
    %24 = arith.muli %arg1, %c48_i32 : i32
    %25 = vector.broadcast %24 : i32 to vector<48x1xi32>
    %26 = arith.addi %23, %25 : vector<48x1xi32>
    %c44_i32 = arith.constant 44 : i32
    %27 = vector.broadcast %c44_i32 : i32 to vector<48x1xi32>
    %28 = arith.cmpi slt, %26, %27 : vector<48x1xi32>
    %cst = arith.constant 0.000000e+00 : f32
    %29 = vector.shape_cast %28 : vector<48x1xi1> to vector<48x1xi1>
    %30 = vector.broadcast %29 : vector<48x1xi1> to vector<48x32xi1>
    %31 = vector.broadcast %cst : f32 to vector<48x32xf32>
    %32 = arith.select %30, %22, %31 : vector<48x32xi1>, vector<48x32xf32>
    %cst_6 = arith.constant dense<0.000000e+00> : vector<32xf32>
    %33 = vector.multi_reduction <add>, %32, %cst_6 [0] : vector<48x32xf32> to vector<32xf32>
    %34 = vector.shape_cast %33 : vector<32xf32> to vector<1x32xf32>
    %c0_7 = arith.constant 0 : index
    %c0_8 = arith.constant 0 : index
    %c0_9 = arith.constant 0 : index
    %c0_10 = arith.constant 0 : index
    %35 = vector.load %arg5[%c0_7, %c0_8, %c0_9, %c0_10] : memref<1x1x2x32xf32, #tpu.memory_space<vmem>>, vector<1x1x1x32xf32>
    %36 = vector.shape_cast %35 : vector<1x1x1x32xf32> to vector<1x32xf32>
    %37 = vector.shape_cast %34 : vector<1x32xf32> to vector<1x1x1x32xf32>
    tpu.vector_store %arg5[%c0_7, %c0_8, %c0_9, %c0_10], %37 {strides = array<i32>} : memref<1x1x2x32xf32, #tpu.memory_space<vmem>>, vector<1x1x1x32xf32>,
    %38 = arith.mulf %32, %32 : vector<48x32xf32>
    %cst_11 = arith.constant dense<0.000000e+00> : vector<32xf32>
    %39 = vector.multi_reduction <add>, %38, %cst_11 [0] : vector<48x32xf32> to vector<32xf32>
    %40 = vector.shape_cast %39 : vector<32xf32> to vector<1x32xf32>
    %c0_12 = arith.constant 0 : index
    %c0_13 = arith.constant 0 : index
    %c1 = arith.constant 1 : index
    %c0_14 = arith.constant 0 : index
    %41 = vector.load %arg5[%c0_12, %c0_13, %c1, %c0_14] : memref<1x1x2x32xf32, #tpu.memory_space<vmem>>, vector<1x1x1x32xf32>
    %42 = vector.shape_cast %41 : vector<1x1x1x32xf32> to vector<1x32xf32>
    %43 = vector.shape_cast %40 : vector<1x32xf32> to vector<1x1x1x32xf32>
    tpu.vector_store %arg5[%c0_12, %c0_13, %c1, %c0_14], %43 {strides = array<i32>} : memref<1x1x2x32xf32, #tpu.memory_space<vmem>>, vector<1x1x1x32xf32>,
    return
  }
  func.func @transform_0(%arg0: i32, %arg1: i32) -> (i32, i32, i32) {
    %c0_i32 = arith.constant 0 : i32
    %c0_i32_0 = arith.constant 0 : i32
    return %arg0, %arg1, %c0_i32 : i32, i32, i32
  }
  func.func @transform_1(%arg0: i32, %arg1: i32) -> (i32, i32) {
    %c0_i32 = arith.constant 0 : i32
    %c0_i32_0 = arith.constant 0 : i32
    %c0_i32_1 = arith.constant 0 : i32
    return %c0_i32, %c0_i32_0 : i32, i32
  }
  func.func @transform_2(%arg0: i32, %arg1: i32) -> (i32, i32) {
    %c0_i32 = arith.constant 0 : i32
    %c0_i32_0 = arith.constant 0 : i32
    %c0_i32_1 = arith.constant 0 : i32
    return %c0_i32, %c0_i32_0 : i32, i32
  }
  func.func @transform_3(%arg0: i32, %arg1: i32) -> (i32, i32, i32, i32) {
    %c0_i32 = arith.constant 0 : i32
    %c0_i32_0 = arith.constant 0 : i32
    %c0_i32_1 = arith.constant 0 : i32
    return %arg0, %arg1, %c0_i32, %c0_i32_0 : i32, i32, i32, i32
  }
}

module attributes {stable_mosaic.version = 11 : i64} {
  func.func @_pos_apply_kernel(%arg0: i32, %arg1: i32, %arg2: memref<1x48x3xf32, #tpu.memory_space<vmem>>, %arg3: memref<1x48x32xf32, #tpu.memory_space<vmem>>, %arg4: memref<3x32xf32, #tpu.memory_space<vmem>>, %arg5: memref<1x32xf32, #tpu.memory_space<vmem>>, %arg6: memref<1x1x32xf32, #tpu.memory_space<vmem>>, %arg7: memref<1x1x32xf32, #tpu.memory_space<vmem>>, %arg8: memref<1x48x32xbf16, #tpu.memory_space<vmem>>) attributes {dimension_semantics = [#tpu.dimension_semantics<parallel>, #tpu.dimension_semantics<parallel>], iteration_bounds = array<i64: 2, 1>, scalar_prefetch = 0 : i64, scratch_operands = 0 : i64, tpu.core_type = #tpu.core_type<tc>, window_params = [{transform_indices = @transform_0, window_bounds = array<i64: 1, 48, 3>}, {transform_indices = @transform_1, window_bounds = array<i64: 1, 48, 32>}, {pipeline_mode = #tpu.pipeline_mode<synchronous>, transform_indices = @transform_2, window_bounds = array<i64: 3, 32>}, {pipeline_mode = #tpu.pipeline_mode<synchronous>, transform_indices = @transform_3, window_bounds = array<i64: 1, 32>}, {transform_indices = @transform_4, window_bounds = array<i64: 1, 1, 32>}, {transform_indices = @transform_5, window_bounds = array<i64: 1, 1, 32>}, {transform_indices = @transform_6, window_bounds = array<i64: 1, 48, 32>}]} {
    %c0 = arith.constant 0 : index
    %c0_0 = arith.constant 0 : index
    %c0_1 = arith.constant 0 : index
    %0 = vector.load %arg2[%c0, %c0_0, %c0_1] : memref<1x48x3xf32, #tpu.memory_space<vmem>>, vector<1x48x3xf32>
    %1 = vector.shape_cast %0 : vector<1x48x3xf32> to vector<48x3xf32>
    %c0_2 = arith.constant 0 : index
    %c0_3 = arith.constant 0 : index
    %2 = vector.load %arg4[%c0_2, %c0_3] : memref<3x32xf32, #tpu.memory_space<vmem>>, vector<3x32xf32>
    %3 = vector.extract_strided_slice %1 {offsets = [0, 0], sizes = [48, 1], strides = [1, 1]} : vector<48x3xf32> to vector<48x1xf32>
    %4 = vector.extract_strided_slice %2 {offsets = [0, 0], sizes = [1, 32], strides = [1, 1]} : vector<3x32xf32> to vector<1x32xf32>
    %5 = vector.broadcast %3 : vector<48x1xf32> to vector<48x32xf32>
    %6 = vector.broadcast %4 : vector<1x32xf32> to vector<48x32xf32>
    %7 = arith.mulf %5, %6 : vector<48x32xf32>
    %8 = vector.extract_strided_slice %1 {offsets = [0, 1], sizes = [48, 1], strides = [1, 1]} : vector<48x3xf32> to vector<48x1xf32>
    %9 = vector.extract_strided_slice %2 {offsets = [1, 0], sizes = [1, 32], strides = [1, 1]} : vector<3x32xf32> to vector<1x32xf32>
    %10 = vector.broadcast %8 : vector<48x1xf32> to vector<48x32xf32>
    %11 = vector.broadcast %9 : vector<1x32xf32> to vector<48x32xf32>
    %12 = arith.mulf %10, %11 : vector<48x32xf32>
    %13 = arith.addf %7, %12 : vector<48x32xf32>
    %14 = vector.extract_strided_slice %1 {offsets = [0, 2], sizes = [48, 1], strides = [1, 1]} : vector<48x3xf32> to vector<48x1xf32>
    %15 = vector.extract_strided_slice %2 {offsets = [2, 0], sizes = [1, 32], strides = [1, 1]} : vector<3x32xf32> to vector<1x32xf32>
    %16 = vector.broadcast %14 : vector<48x1xf32> to vector<48x32xf32>
    %17 = vector.broadcast %15 : vector<1x32xf32> to vector<48x32xf32>
    %18 = arith.mulf %16, %17 : vector<48x32xf32>
    %19 = arith.addf %13, %18 : vector<48x32xf32>
    %c0_4 = arith.constant 0 : index
    %c0_5 = arith.constant 0 : index
    %20 = vector.load %arg5[%c0_4, %c0_5] : memref<1x32xf32, #tpu.memory_space<vmem>>, vector<1x32xf32>
    %21 = vector.broadcast %20 : vector<1x32xf32> to vector<48x32xf32>
    %22 = arith.addf %19, %21 : vector<48x32xf32>
    %c0_6 = arith.constant 0 : index
    %c0_7 = arith.constant 0 : index
    %c0_8 = arith.constant 0 : index
    %23 = vector.load %arg6[%c0_6, %c0_7, %c0_8] : memref<1x1x32xf32, #tpu.memory_space<vmem>>, vector<1x1x32xf32>
    %24 = vector.shape_cast %23 : vector<1x1x32xf32> to vector<1x32xf32>
    %25 = vector.broadcast %24 : vector<1x32xf32> to vector<48x32xf32>
    %26 = arith.mulf %22, %25 : vector<48x32xf32>
    %c0_9 = arith.constant 0 : index
    %c0_10 = arith.constant 0 : index
    %c0_11 = arith.constant 0 : index
    %27 = vector.load %arg7[%c0_9, %c0_10, %c0_11] : memref<1x1x32xf32, #tpu.memory_space<vmem>>, vector<1x1x32xf32>
    %28 = vector.shape_cast %27 : vector<1x1x32xf32> to vector<1x32xf32>
    %29 = vector.broadcast %28 : vector<1x32xf32> to vector<48x32xf32>
    %30 = arith.addf %26, %29 : vector<48x32xf32>
    %cst = arith.constant 0.000000e+00 : f32
    %31 = vector.broadcast %cst : f32 to vector<48x32xf32>
    %32 = arith.cmpf ogt, %30, %31 : vector<48x32xf32>
    %cst_12 = arith.constant 1.000000e-01 : f32
    %33 = vector.broadcast %cst_12 : f32 to vector<48x32xf32>
    %34 = arith.mulf %33, %30 : vector<48x32xf32>
    %35 = arith.select %32, %30, %34 : vector<48x32xi1>, vector<48x32xf32>
    %c0_13 = arith.constant 0 : index
    %c0_14 = arith.constant 0 : index
    %c0_15 = arith.constant 0 : index
    %36 = vector.load %arg3[%c0_13, %c0_14, %c0_15] : memref<1x48x32xf32, #tpu.memory_space<vmem>>, vector<1x48x32xf32>
    %37 = vector.shape_cast %36 : vector<1x48x32xf32> to vector<48x32xf32>
    %38 = arith.addf %37, %35 : vector<48x32xf32>
    %39 = arith.truncf %38 : vector<48x32xf32> to vector<48x32xbf16>
    %c0_16 = arith.constant 0 : index
    %c0_17 = arith.constant 0 : index
    %c0_18 = arith.constant 0 : index
    %40 = vector.load %arg8[%c0_16, %c0_17, %c0_18] : memref<1x48x32xbf16, #tpu.memory_space<vmem>>, vector<1x48x32xbf16>
    %41 = vector.shape_cast %40 : vector<1x48x32xbf16> to vector<48x32xbf16>
    %42 = vector.shape_cast %39 : vector<48x32xbf16> to vector<1x48x32xbf16>
    tpu.vector_store %arg8[%c0_16, %c0_17, %c0_18], %42 {strides = array<i32>} : memref<1x48x32xbf16, #tpu.memory_space<vmem>>, vector<1x48x32xbf16>,
    return
  }
  func.func @transform_0(%arg0: i32, %arg1: i32) -> (i32, i32, i32) {
    %c0_i32 = arith.constant 0 : i32
    %c0_i32_0 = arith.constant 0 : i32
    return %arg0, %arg1, %c0_i32 : i32, i32, i32
  }
  func.func @transform_1(%arg0: i32, %arg1: i32) -> (i32, i32, i32) {
    %c0_i32 = arith.constant 0 : i32
    %c0_i32_0 = arith.constant 0 : i32
    return %arg0, %arg1, %c0_i32 : i32, i32, i32
  }
  func.func @transform_2(%arg0: i32, %arg1: i32) -> (i32, i32) {
    %c0_i32 = arith.constant 0 : i32
    %c0_i32_0 = arith.constant 0 : i32
    %c0_i32_1 = arith.constant 0 : i32
    return %c0_i32, %c0_i32_0 : i32, i32
  }
  func.func @transform_3(%arg0: i32, %arg1: i32) -> (i32, i32) {
    %c0_i32 = arith.constant 0 : i32
    %c0_i32_0 = arith.constant 0 : i32
    %c0_i32_1 = arith.constant 0 : i32
    return %c0_i32, %c0_i32_0 : i32, i32
  }
  func.func @transform_4(%arg0: i32, %arg1: i32) -> (i32, i32, i32) {
    %c0_i32 = arith.constant 0 : i32
    %c0_i32_0 = arith.constant 0 : i32
    %c0_i32_1 = arith.constant 0 : i32
    return %arg0, %c0_i32, %c0_i32_0 : i32, i32, i32
  }
  func.func @transform_5(%arg0: i32, %arg1: i32) -> (i32, i32, i32) {
    %c0_i32 = arith.constant 0 : i32
    %c0_i32_0 = arith.constant 0 : i32
    %c0_i32_1 = arith.constant 0 : i32
    return %arg0, %c0_i32, %c0_i32_0 : i32, i32, i32
  }
  func.func @transform_6(%arg0: i32, %arg1: i32) -> (i32, i32, i32) {
    %c0_i32 = arith.constant 0 : i32
    %c0_i32_0 = arith.constant 0 : i32
    return %arg0, %arg1, %c0_i32 : i32, i32, i32
  }
}

module attributes {stable_mosaic.version = 11 : i64} {
  func.func @_atten_kernel(%arg0: i32, %arg1: i32, %arg2: memref<1x16x8x3xf32, #tpu.memory_space<vmem>>, %arg3: memref<1x16x32xbf16, #tpu.memory_space<vmem>>, %arg4: memref<1x16x8x32xbf16, #tpu.memory_space<vmem>>, %arg5: memref<3x128xbf16, #tpu.memory_space<vmem>>, %arg6: memref<1x128xf32, #tpu.memory_space<vmem>>, %arg7: memref<32x32xbf16, #tpu.memory_space<vmem>>, %arg8: memref<32x32xbf16, #tpu.memory_space<vmem>>, %arg9: memref<32x32xbf16, #tpu.memory_space<vmem>>, %arg10: memref<1x32xf32, #tpu.memory_space<vmem>>, %arg11: memref<1x16x32xbf16, #tpu.memory_space<vmem>>, %arg12: memref<1x1x2x32xf32, #tpu.memory_space<vmem>>) attributes {dimension_semantics = [#tpu.dimension_semantics<parallel>, #tpu.dimension_semantics<parallel>], iteration_bounds = array<i64: 2, 3>, scalar_prefetch = 0 : i64, scratch_operands = 0 : i64, tpu.core_type = #tpu.core_type<tc>, window_params = [{transform_indices = @transform_0, window_bounds = array<i64: 1, 16, 8, 3>}, {transform_indices = @transform_1, window_bounds = array<i64: 1, 16, 32>}, {transform_indices = @transform_2, window_bounds = array<i64: 1, 16, 8, 32>}, {pipeline_mode = #tpu.pipeline_mode<synchronous>, transform_indices = @transform_3, window_bounds = array<i64: 3, 128>}, {pipeline_mode = #tpu.pipeline_mode<synchronous>, transform_indices = @transform_4, window_bounds = array<i64: 1, 128>}, {pipeline_mode = #tpu.pipeline_mode<synchronous>, transform_indices = @transform_5, window_bounds = array<i64: 32, 32>}, {pipeline_mode = #tpu.pipeline_mode<synchronous>, transform_indices = @transform_6, window_bounds = array<i64: 32, 32>}, {pipeline_mode = #tpu.pipeline_mode<synchronous>, transform_indices = @transform_7, window_bounds = array<i64: 32, 32>}, {pipeline_mode = #tpu.pipeline_mode<synchronous>, transform_indices = @transform_8, window_bounds = array<i64: 1, 32>}, {transform_indices = @transform_9, window_bounds = array<i64: 1, 16, 32>}, {transform_indices = @transform_10, window_bounds = array<i64: 1, 1, 2, 32>}]} {
    %c0 = arith.constant 0 : index
    %c0_0 = arith.constant 0 : index
    %c0_1 = arith.constant 0 : index
    %0 = vector.load %arg3[%c0, %c0_0, %c0_1] : memref<1x16x32xbf16, #tpu.memory_space<vmem>>, vector<1x16x32xbf16>
    %1 = vector.shape_cast %0 : vector<1x16x32xbf16> to vector<16x32xbf16>
    %c0_2 = arith.constant 0 : index
    %c0_3 = arith.constant 0 : index
    %c0_4 = arith.constant 0 : index
    %c0_5 = arith.constant 0 : index
    %2 = vector.load %arg4[%c0_2, %c0_3, %c0_4, %c0_5] : memref<1x16x8x32xbf16, #tpu.memory_space<vmem>>, vector<1x16x8x32xbf16>
    %3 = vector.shape_cast %2 : vector<1x16x8x32xbf16> to vector<16x8x32xbf16>
    %c0_6 = arith.constant 0 : index
    %c0_7 = arith.constant 0 : index
    %c0_8 = arith.constant 0 : index
    %c0_9 = arith.constant 0 : index
    %4 = vector.load %arg2[%c0_6, %c0_7, %c0_8, %c0_9] : memref<1x16x8x3xf32, #tpu.memory_space<vmem>>, vector<1x16x8x3xf32>
    %5 = vector.shape_cast %4 : vector<1x16x8x3xf32> to vector<16x8x3xf32>
    %6 = arith.truncf %5 : vector<16x8x3xf32> to vector<16x8x3xbf16>
    %7 = vector.shape_cast %6 : vector<16x8x3xbf16> to vector<128x3xbf16>
    %c0_10 = arith.constant 0 : index
    %c0_11 = arith.constant 0 : index
    %8 = vector.load %arg5[%c0_10, %c0_11] : memref<3x128xbf16, #tpu.memory_space<vmem>>, vector<3x128xbf16>
    %cst = arith.constant dense<0.000000e+00> : vector<128x128xf32>
    %9 = tpu.matmul %7, %8, %cst {dimension_numbers = #tpu.dot_dimension_numbers<[1], [0], [0], [1], [0, 0, 1, 1], [], []>} : vector<128x3xbf16>, vector<3x128xbf16>, vector<128x128xf32> -> vector<128x128xf32>
    %c0_12 = arith.constant 0 : index
    %c0_13 = arith.constant 0 : index
    %10 = vector.load %arg6[%c0_12, %c0_13] : memref<1x128xf32, #tpu.memory_space<vmem>>, vector<1x128xf32>
    %11 = vector.broadcast %10 : vector<1x128xf32> to vector<128x128xf32>
    %12 = arith.addf %9, %11 : vector<128x128xf32>
    %cst_14 = arith.constant 0.000000e+00 : f32
    %13 = vector.broadcast %cst_14 : f32 to vector<128x128xf32>
    %14 = arith.cmpf ogt, %12, %13 : vector<128x128xf32>
    %cst_15 = arith.constant 1.000000e-01 : f32
    %15 = vector.broadcast %cst_15 : f32 to vector<128x128xf32>
    %16 = arith.mulf %15, %12 : vector<128x128xf32>
    %17 = arith.select %14, %12, %16 : vector<128x128xi1>, vector<128x128xf32>
    %18 = vector.extract_strided_slice %17 {offsets = [0, 0], sizes = [128, 32], strides = [1, 1]} : vector<128x128xf32> to vector<128x32xf32>
    %19 = vector.shape_cast %18 : vector<128x32xf32> to vector<16x8x32xf32>
    %20 = vector.extract_strided_slice %17 {offsets = [0, 32], sizes = [128, 32], strides = [1, 1]} : vector<128x128xf32> to vector<128x32xf32>
    %21 = vector.shape_cast %20 : vector<128x32xf32> to vector<16x8x32xf32>
    %22 = vector.extract_strided_slice %17 {offsets = [0, 64], sizes = [128, 32], strides = [1, 1]} : vector<128x128xf32> to vector<128x32xf32>
    %23 = vector.shape_cast %22 : vector<128x32xf32> to vector<16x8x32xf32>
    %24 = vector.extract_strided_slice %17 {offsets = [0, 96], sizes = [128, 32], strides = [1, 1]} : vector<128x128xf32> to vector<128x32xf32>
    %25 = vector.shape_cast %24 : vector<128x32xf32> to vector<16x8x32xf32>
    %26 = vector.shape_cast %1 : vector<16x32xbf16> to vector<16x1x32xbf16>
    %27 = arith.extf %26 : vector<16x1x32xbf16> to vector<16x1x32xf32>
    %28 = vector.broadcast %27 : vector<16x1x32xf32> to vector<16x8x32xf32>
    %29 = arith.mulf %28, %19 : vector<16x8x32xf32>
    %30 = arith.truncf %29 : vector<16x8x32xf32> to vector<16x8x32xbf16>
    %31 = vector.shape_cast %30 : vector<16x8x32xbf16> to vector<128x32xbf16>
    %c0_16 = arith.constant 0 : index
    %c0_17 = arith.constant 0 : index
    %32 = vector.load %arg7[%c0_16, %c0_17] : memref<32x32xbf16, #tpu.memory_space<vmem>>, vector<32x32xbf16>
    %cst_18 = arith.constant dense<0.000000e+00> : vector<128x32xf32>
    %33 = tpu.matmul %31, %32, %cst_18 {dimension_numbers = #tpu.dot_dimension_numbers<[1], [0], [0], [1], [0, 0, 1, 1], [], []>} : vector<128x32xbf16>, vector<32x32xbf16>, vector<128x32xf32> -> vector<128x32xf32>
    %34 = vector.shape_cast %33 : vector<128x32xf32> to vector<16x8x32xf32>
    %35 = arith.extf %3 : vector<16x8x32xbf16> to vector<16x8x32xf32>
    %36 = arith.mulf %35, %21 : vector<16x8x32xf32>
    %37 = arith.extf %3 : vector<16x8x32xbf16> to vector<16x8x32xf32>
    %38 = arith.mulf %37, %23 : vector<16x8x32xf32>
    %39 = arith.truncf %38 : vector<16x8x32xf32> to vector<16x8x32xbf16>
    %40 = vector.shape_cast %39 : vector<16x8x32xbf16> to vector<128x32xbf16>
    %c0_19 = arith.constant 0 : index
    %c0_20 = arith.constant 0 : index
    %41 = vector.load %arg8[%c0_19, %c0_20] : memref<32x32xbf16, #tpu.memory_space<vmem>>, vector<32x32xbf16>
    %cst_21 = arith.constant dense<0.000000e+00> : vector<128x32xf32>
    %42 = tpu.matmul %40, %41, %cst_21 {dimension_numbers = #tpu.dot_dimension_numbers<[1], [0], [0], [1], [0, 0, 1, 1], [], []>} : vector<128x32xbf16>, vector<32x32xbf16>, vector<128x32xf32> -> vector<128x32xf32>
    %43 = vector.shape_cast %42 : vector<128x32xf32> to vector<16x8x32xf32>
    %44 = arith.mulf %43, %25 : vector<16x8x32xf32>
    %45 = arith.mulf %34, %36 : vector<16x8x32xf32>
    %cst_22 = arith.constant dense<0.000000e+00> : vector<16x8xf32>
    %46 = vector.multi_reduction <add>, %45, %cst_22 [2] : vector<16x8x32xf32> to vector<16x8xf32>
    %47 = vector.shape_cast %46 : vector<16x8xf32> to vector<16x8x1xf32>
    %cst_23 = arith.constant dense<0xFF800000> : vector<16x1xf32>
    %48 = vector.multi_reduction <maximumf>, %47, %cst_23 [1] : vector<16x8x1xf32> to vector<16x1xf32>
    %49 = vector.shape_cast %48 : vector<16x1xf32> to vector<16x1x1xf32>
    %50 = vector.broadcast %49 : vector<16x1x1xf32> to vector<16x8x1xf32>
    %51 = arith.subf %47, %50 : vector<16x8x1xf32>
    %52 = math.exp %51 : vector<16x8x1xf32>
    %cst_24 = arith.constant dense<0.000000e+00> : vector<16x1xf32>
    %53 = vector.multi_reduction <add>, %52, %cst_24 [1] : vector<16x8x1xf32> to vector<16x1xf32>
    %54 = vector.shape_cast %53 : vector<16x1xf32> to vector<16x1x1xf32>
    %55 = tpu.reciprocal %54 {approx = true} : vector<16x1x1xf32> -> vector<16x1x1xf32>
    %56 = vector.broadcast %55 : vector<16x1x1xf32> to vector<16x8x1xf32>
    %57 = arith.mulf %52, %56 : vector<16x8x1xf32>
    %58 = vector.broadcast %57 : vector<16x8x1xf32> to vector<16x8x32xf32>
    %59 = arith.mulf %44, %58 : vector<16x8x32xf32>
    %cst_25 = arith.constant dense<0.000000e+00> : vector<16x32xf32>
    %60 = vector.multi_reduction <add>, %59, %cst_25 [1] : vector<16x8x32xf32> to vector<16x32xf32>
    %61 = arith.extf %1 : vector<16x32xbf16> to vector<16x32xf32>
    %62 = arith.addf %60, %61 : vector<16x32xf32>
    %63 = arith.truncf %62 : vector<16x32xf32> to vector<16x32xbf16>
    %c0_26 = arith.constant 0 : index
    %c0_27 = arith.constant 0 : index
    %64 = vector.load %arg9[%c0_26, %c0_27] : memref<32x32xbf16, #tpu.memory_space<vmem>>, vector<32x32xbf16>
    %cst_28 = arith.constant dense<0.000000e+00> : vector<16x32xf32>
    %65 = tpu.matmul %63, %64, %cst_28 {dimension_numbers = #tpu.dot_dimension_numbers<[1], [0], [0], [1], [0, 0, 1, 1], [], []>} : vector<16x32xbf16>, vector<32x32xbf16>, vector<16x32xf32> -> vector<16x32xf32>
    %c0_29 = arith.constant 0 : index
    %c0_30 = arith.constant 0 : index
    %66 = vector.load %arg10[%c0_29, %c0_30] : memref<1x32xf32, #tpu.memory_space<vmem>>, vector<1x32xf32>
    %67 = vector.broadcast %66 : vector<1x32xf32> to vector<16x32xf32>
    %68 = arith.addf %65, %67 : vector<16x32xf32>
    %69 = tpu.iota {dimensions = array<i32: 0>} : vector<16x1xi32>
    %c16_i32 = arith.constant 16 : i32
    %70 = arith.muli %arg1, %c16_i32 : i32
    %71 = vector.broadcast %70 : i32 to vector<16x1xi32>
    %72 = arith.addi %69, %71 : vector<16x1xi32>
    %c40_i32 = arith.constant 40 : i32
    %73 = vector.broadcast %c40_i32 : i32 to vector<16x1xi32>
    %74 = arith.cmpi slt, %72, %73 : vector<16x1xi32>
    %cst_31 = arith.constant 0.000000e+00 : f32
    %75 = vector.shape_cast %74 : vector<16x1xi1> to vector<16x1xi1>
    %76 = vector.broadcast %75 : vector<16x1xi1> to vector<16x32xi1>
    %77 = vector.broadcast %cst_31 : f32 to vector<16x32xf32>
    %78 = arith.select %76, %68, %77 : vector<16x32xi1>, vector<16x32xf32>
    %cst_32 = arith.constant dense<0.000000e+00> : vector<32xf32>
    %79 = vector.multi_reduction <add>, %78, %cst_32 [0] : vector<16x32xf32> to vector<32xf32>
    %80 = vector.shape_cast %79 : vector<32xf32> to vector<1x32xf32>
    %c0_33 = arith.constant 0 : index
    %c0_34 = arith.constant 0 : index
    %c0_35 = arith.constant 0 : index
    %c0_36 = arith.constant 0 : index
    %81 = vector.load %arg12[%c0_33, %c0_34, %c0_35, %c0_36] : memref<1x1x2x32xf32, #tpu.memory_space<vmem>>, vector<1x1x1x32xf32>
    %82 = vector.shape_cast %81 : vector<1x1x1x32xf32> to vector<1x32xf32>
    %83 = vector.shape_cast %80 : vector<1x32xf32> to vector<1x1x1x32xf32>
    tpu.vector_store %arg12[%c0_33, %c0_34, %c0_35, %c0_36], %83 {strides = array<i32>} : memref<1x1x2x32xf32, #tpu.memory_space<vmem>>, vector<1x1x1x32xf32>,
    %84 = arith.mulf %78, %78 : vector<16x32xf32>
    %cst_37 = arith.constant dense<0.000000e+00> : vector<32xf32>
    %85 = vector.multi_reduction <add>, %84, %cst_37 [0] : vector<16x32xf32> to vector<32xf32>
    %86 = vector.shape_cast %85 : vector<32xf32> to vector<1x32xf32>
    %c0_38 = arith.constant 0 : index
    %c0_39 = arith.constant 0 : index
    %c1 = arith.constant 1 : index
    %c0_40 = arith.constant 0 : index
    %87 = vector.load %arg12[%c0_38, %c0_39, %c1, %c0_40] : memref<1x1x2x32xf32, #tpu.memory_space<vmem>>, vector<1x1x1x32xf32>
    %88 = vector.shape_cast %87 : vector<1x1x1x32xf32> to vector<1x32xf32>
    %89 = vector.shape_cast %86 : vector<1x32xf32> to vector<1x1x1x32xf32>
    tpu.vector_store %arg12[%c0_38, %c0_39, %c1, %c0_40], %89 {strides = array<i32>} : memref<1x1x2x32xf32, #tpu.memory_space<vmem>>, vector<1x1x1x32xf32>,
    %90 = arith.truncf %68 : vector<16x32xf32> to vector<16x32xbf16>
    %c0_41 = arith.constant 0 : index
    %c0_42 = arith.constant 0 : index
    %c0_43 = arith.constant 0 : index
    %91 = vector.load %arg11[%c0_41, %c0_42, %c0_43] : memref<1x16x32xbf16, #tpu.memory_space<vmem>>, vector<1x16x32xbf16>
    %92 = vector.shape_cast %91 : vector<1x16x32xbf16> to vector<16x32xbf16>
    %93 = vector.shape_cast %90 : vector<16x32xbf16> to vector<1x16x32xbf16>
    tpu.vector_store %arg11[%c0_41, %c0_42, %c0_43], %93 {strides = array<i32>} : memref<1x16x32xbf16, #tpu.memory_space<vmem>>, vector<1x16x32xbf16>,
    return
  }
  func.func @transform_0(%arg0: i32, %arg1: i32) -> (i32, i32, i32, i32) {
    %c0_i32 = arith.constant 0 : i32
    %c0_i32_0 = arith.constant 0 : i32
    %c0_i32_1 = arith.constant 0 : i32
    return %arg0, %arg1, %c0_i32, %c0_i32_0 : i32, i32, i32, i32
  }
  func.func @transform_1(%arg0: i32, %arg1: i32) -> (i32, i32, i32) {
    %c0_i32 = arith.constant 0 : i32
    %c0_i32_0 = arith.constant 0 : i32
    return %arg0, %arg1, %c0_i32 : i32, i32, i32
  }
  func.func @transform_2(%arg0: i32, %arg1: i32) -> (i32, i32, i32, i32) {
    %c0_i32 = arith.constant 0 : i32
    %c0_i32_0 = arith.constant 0 : i32
    %c0_i32_1 = arith.constant 0 : i32
    return %arg0, %arg1, %c0_i32, %c0_i32_0 : i32, i32, i32, i32
  }
  func.func @transform_3(%arg0: i32, %arg1: i32) -> (i32, i32) {
    %c0_i32 = arith.constant 0 : i32
    %c0_i32_0 = arith.constant 0 : i32
    %c0_i32_1 = arith.constant 0 : i32
    return %c0_i32, %c0_i32_0 : i32, i32
  }
  func.func @transform_4(%arg0: i32, %arg1: i32) -> (i32, i32) {
    %c0_i32 = arith.constant 0 : i32
    %c0_i32_0 = arith.constant 0 : i32
    %c0_i32_1 = arith.constant 0 : i32
    return %c0_i32, %c0_i32_0 : i32, i32
  }
  func.func @transform_5(%arg0: i32, %arg1: i32) -> (i32, i32) {
    %c0_i32 = arith.constant 0 : i32
    %c0_i32_0 = arith.constant 0 : i32
    %c0_i32_1 = arith.constant 0 : i32
    return %c0_i32, %c0_i32_0 : i32, i32
  }
  func.func @transform_6(%arg0: i32, %arg1: i32) -> (i32, i32) {
    %c0_i32 = arith.constant 0 : i32
    %c0_i32_0 = arith.constant 0 : i32
    %c0_i32_1 = arith.constant 0 : i32
    return %c0_i32, %c0_i32_0 : i32, i32
  }
  func.func @transform_7(%arg0: i32, %arg1: i32) -> (i32, i32) {
    %c0_i32 = arith.constant 0 : i32
    %c0_i32_0 = arith.constant 0 : i32
    %c0_i32_1 = arith.constant 0 : i32
    return %c0_i32, %c0_i32_0 : i32, i32
  }
  func.func @transform_8(%arg0: i32, %arg1: i32) -> (i32, i32) {
    %c0_i32 = arith.constant 0 : i32
    %c0_i32_0 = arith.constant 0 : i32
    %c0_i32_1 = arith.constant 0 : i32
    return %c0_i32, %c0_i32_0 : i32, i32
  }
  func.func @transform_9(%arg0: i32, %arg1: i32) -> (i32, i32, i32) {
    %c0_i32 = arith.constant 0 : i32
    %c0_i32_0 = arith.constant 0 : i32
    return %arg0, %arg1, %c0_i32 : i32, i32, i32
  }
  func.func @transform_10(%arg0: i32, %arg1: i32) -> (i32, i32, i32, i32) {
    %c0_i32 = arith.constant 0 : i32
    %c0_i32_0 = arith.constant 0 : i32
    %c0_i32_1 = arith.constant 0 : i32
    return %arg0, %arg1, %c0_i32, %c0_i32_0 : i32, i32, i32, i32
  }
}

module attributes {stable_mosaic.version = 11 : i64} {
  func.func @_gn_finish_kernel(%arg0: i32, %arg1: i32, %arg2: memref<1x48x32xbf16, #tpu.memory_space<vmem>>, %arg3: memref<1x1x32xf32, #tpu.memory_space<vmem>>, %arg4: memref<1x1x32xf32, #tpu.memory_space<vmem>>, %arg5: memref<1x48x32xf32, #tpu.memory_space<vmem>>) attributes {dimension_semantics = [#tpu.dimension_semantics<parallel>, #tpu.dimension_semantics<parallel>], iteration_bounds = array<i64: 2, 1>, scalar_prefetch = 0 : i64, scratch_operands = 0 : i64, tpu.core_type = #tpu.core_type<tc>, window_params = [{transform_indices = @transform_0, window_bounds = array<i64: 1, 48, 32>}, {transform_indices = @transform_1, window_bounds = array<i64: 1, 1, 32>}, {transform_indices = @transform_2, window_bounds = array<i64: 1, 1, 32>}, {transform_indices = @transform_3, window_bounds = array<i64: 1, 48, 32>}]} {
    %c0 = arith.constant 0 : index
    %c0_0 = arith.constant 0 : index
    %c0_1 = arith.constant 0 : index
    %0 = vector.load %arg2[%c0, %c0_0, %c0_1] : memref<1x48x32xbf16, #tpu.memory_space<vmem>>, vector<1x48x32xbf16>
    %1 = vector.shape_cast %0 : vector<1x48x32xbf16> to vector<48x32xbf16>
    %2 = arith.extf %1 : vector<48x32xbf16> to vector<48x32xf32>
    %c0_2 = arith.constant 0 : index
    %c0_3 = arith.constant 0 : index
    %c0_4 = arith.constant 0 : index
    %3 = vector.load %arg3[%c0_2, %c0_3, %c0_4] : memref<1x1x32xf32, #tpu.memory_space<vmem>>, vector<1x1x32xf32>
    %4 = vector.shape_cast %3 : vector<1x1x32xf32> to vector<1x32xf32>
    %5 = vector.broadcast %4 : vector<1x32xf32> to vector<48x32xf32>
    %6 = arith.mulf %2, %5 : vector<48x32xf32>
    %c0_5 = arith.constant 0 : index
    %c0_6 = arith.constant 0 : index
    %c0_7 = arith.constant 0 : index
    %7 = vector.load %arg4[%c0_5, %c0_6, %c0_7] : memref<1x1x32xf32, #tpu.memory_space<vmem>>, vector<1x1x32xf32>
    %8 = vector.shape_cast %7 : vector<1x1x32xf32> to vector<1x32xf32>
    %9 = vector.broadcast %8 : vector<1x32xf32> to vector<48x32xf32>
    %10 = arith.addf %6, %9 : vector<48x32xf32>
    %cst = arith.constant 0.000000e+00 : f32
    %11 = vector.broadcast %cst : f32 to vector<48x32xf32>
    %12 = arith.cmpf ogt, %10, %11 : vector<48x32xf32>
    %cst_8 = arith.constant 1.000000e-01 : f32
    %13 = vector.broadcast %cst_8 : f32 to vector<48x32xf32>
    %14 = arith.mulf %13, %10 : vector<48x32xf32>
    %15 = arith.select %12, %10, %14 : vector<48x32xi1>, vector<48x32xf32>
    %c0_9 = arith.constant 0 : index
    %c0_10 = arith.constant 0 : index
    %c0_11 = arith.constant 0 : index
    %16 = vector.load %arg5[%c0_9, %c0_10, %c0_11] : memref<1x48x32xf32, #tpu.memory_space<vmem>>, vector<1x48x32xf32>
    %17 = vector.shape_cast %16 : vector<1x48x32xf32> to vector<48x32xf32>
    %18 = vector.shape_cast %15 : vector<48x32xf32> to vector<1x48x32xf32>
    tpu.vector_store %arg5[%c0_9, %c0_10, %c0_11], %18 {strides = array<i32>} : memref<1x48x32xf32, #tpu.memory_space<vmem>>, vector<1x48x32xf32>,
    return
  }
  func.func @transform_0(%arg0: i32, %arg1: i32) -> (i32, i32, i32) {
    %c0_i32 = arith.constant 0 : i32
    %c0_i32_0 = arith.constant 0 : i32
    return %arg0, %arg1, %c0_i32 : i32, i32, i32
  }
  func.func @transform_1(%arg0: i32, %arg1: i32) -> (i32, i32, i32) {
    %c0_i32 = arith.constant 0 : i32
    %c0_i32_0 = arith.constant 0 : i32
    %c0_i32_1 = arith.constant 0 : i32
    return %arg0, %c0_i32, %c0_i32_0 : i32, i32, i32
  }
  func.func @transform_2(%arg0: i32, %arg1: i32) -> (i32, i32, i32) {
    %c0_i32 = arith.constant 0 : i32
    %c0_i32_0 = arith.constant 0 : i32
    %c0_i32_1 = arith.constant 0 : i32
    return %arg0, %c0_i32, %c0_i32_0 : i32, i32, i32
  }
  func.func @transform_3(%arg0: i32, %arg1: i32) -> (i32, i32, i32) {
    %c0_i32 = arith.constant 0 : i32
    %c0_i32_0 = arith.constant 0 : i32
    return %arg0, %arg1, %c0_i32 : i32, i32, i32
  }
}

</mosaic_0001>

<llo_original>
// kernel: neg.1
$region0: #{neg.1}
  #allocation0 [shape = 's32[1]{0}', space=sflag, size = 0x4, scoped, tag = 'scoped memory for neg.1']
  %s0 = inlined_call_operand.vmem [shape: f32[2,48,48], index: 0, kind: input, shape index: {}]
  %s1 = inlined_call_operand.vmem [shape: f32[2,48,48], index: 1, kind: output, shape index: {}]
  %v2 = vld [vmem:[%s0] sm:$0xff]
  %3 = xla_tuple %v2
  %4 = xla_tuple %3
  %v5 = vxor.u32 %v2, 2147483648
  %6 = xla_tuple %v5
  %7 = vst [vmem:[%s1] sm:$0xff] %v5
  %s8 = scalar_lea.vmem %s0, 48
  %v9 = vld [vmem:[%s8] sm:$0xff]
  %10 = xla_tuple %v9
  %11 = xla_tuple %10
  %v12 = vxor.u32 %v9, 2147483648
  %13 = xla_tuple %v12
  %s14 = scalar_lea.vmem %s1, 48
  %15 = vst [vmem:[%s14] sm:$0xff] %v12
  %s16 = scalar_lea.vmem %s0, 8
  %v17 = vld [vmem:[%s16] sm:$0xff]
  %18 = xla_tuple %v17
  %19 = xla_tuple %18
  %v20 = vxor.u32 %v17, 2147483648
  %21 = xla_tuple %v20
  %s22 = scalar_lea.vmem %s1, 8
  %23 = vst [vmem:[%s22] sm:$0xff] %v20
  %s24 = scalar_lea.vmem %s0, 56
  %v25 = vld [vmem:[%s24] sm:$0xff]
  %26 = xla_tuple %v25
  %27 = xla_tuple %26
  %v28 = vxor.u32 %v25, 2147483648
  %29 = xla_tuple %v28
  %s30 = scalar_lea.vmem %s1, 56
  %31 = vst [vmem:[%s30] sm:$0xff] %v28
  %s32 = scalar_lea.vmem %s0, 16
  %v33 = vld [vmem:[%s32] sm:$0xff]
  %34 = xla_tuple %v33
  %35 = xla_tuple %34
  %v36 = vxor.u32 %v33, 2147483648
  %37 = xla_tuple %v36
  %s38 = scalar_lea.vmem %s1, 16
  %39 = vst [vmem:[%s38] sm:$0xff] %v36
  %s40 = scalar_lea.vmem %s0, 64
  %v41 = vld [vmem:[%s40] sm:$0xff]
  %42 = xla_tuple %v41
  %43 = xla_tuple %42
  %v44 = vxor.u32 %v41, 2147483648
  %45 = xla_tuple %v44
  %s46 = scalar_lea.vmem %s1, 64
  %47 = vst [vmem:[%s46] sm:$0xff] %v44
  %s48 = scalar_lea.vmem %s0, 24
  %v49 = vld [vmem:[%s48] sm:$0xff]
  %50 = xla_tuple %v49
  %51 = xla_tuple %50
  %v52 = vxor.u32 %v49, 2147483648
  %53 = xla_tuple %v52
  %s54 = scalar_lea.vmem %s1, 24
  %55 = vst [vmem:[%s54] sm:$0xff] %v52
  %s56 = scalar_lea.vmem %s0, 72
  %v57 = vld [vmem:[%s56] sm:$0xff]
  %58 = xla_tuple %v57
  %59 = xla_tuple %58
  %v60 = vxor.u32 %v57, 2147483648
  %61 = xla_tuple %v60
  %s62 = scalar_lea.vmem %s1, 72
  %63 = vst [vmem:[%s62] sm:$0xff] %v60
  %s64 = scalar_lea.vmem %s0, 32
  %v65 = vld [vmem:[%s64] sm:$0xff]
  %66 = xla_tuple %v65
  %67 = xla_tuple %66
  %v68 = vxor.u32 %v65, 2147483648
  %69 = xla_tuple %v68
  %s70 = scalar_lea.vmem %s1, 32
  %71 = vst [vmem:[%s70] sm:$0xff] %v68
  %s72 = scalar_lea.vmem %s0, 80
  %v73 = vld [vmem:[%s72] sm:$0xff]
  %74 = xla_tuple %v73
  %75 = xla_tuple %74
  %v76 = vxor.u32 %v73, 2147483648
  %77 = xla_tuple %v76
  %s78 = scalar_lea.vmem %s1, 80
  %79 = vst [vmem:[%s78] sm:$0xff] %v76
  %s80 = scalar_lea.vmem %s0, 40
  %v81 = vld [vmem:[%s80] sm:$0xff]
  %82 = xla_tuple %v81
  %83 = xla_tuple %82
  %v84 = vxor.u32 %v81, 2147483648
  %85 = xla_tuple %v84
  %s86 = scalar_lea.vmem %s1, 40
  %87 = vst [vmem:[%s86] sm:$0xff] %v84
  %s88 = scalar_lea.vmem %s0, 88
  %v89 = vld [vmem:[%s88] sm:$0xff]
  %90 = xla_tuple %v89
  %91 = xla_tuple %90
  %v92 = vxor.u32 %v89, 2147483648
  %93 = xla_tuple %v92
  %s94 = scalar_lea.vmem %s1, 88
  %95 = vst [vmem:[%s94] sm:$0xff] %v92

// kernel: rpp_atten_forward.8
$region0: #{rpp_atten_forward.8}
  #allocation0 [shape = 'u32[]', space=smem, size = 0x4, offset = 0x4, fixed_abs, tag = 'smem constant byte address 0x4 - core index']
  #allocation1 [shape = 'u32[144,128]{1,0:T(1,128)}', space=vmem, size = 0x12000, scoped, tag = 'internal scratch']
  %s0 = inlined_call_operand.vmem [shape: f32[2,48,3], index: 0, kind: input, shape index: {}]
  %s1 = inlined_call_operand.vmem [shape: f32[3,32], index: 1, kind: input, shape index: {}]
  %s2 = inlined_call_operand.vmem [shape: f32[1,32], index: 2, kind: input, shape index: {}]
  %s3 = inlined_call_operand.vmem [shape: f32[2,1,2,32], index: 3, kind: output, shape index: {}]
  %s4 = sld [smem:[#allocation0]]
  $region45: #{rpp_atten_forward.8} parent=0
    _
  %s6 = ssub.s32 1, %s4
  %s7 = scalar_select 0, %s6, %s4
  loop: start=0, step=1, limit=4
  $region2: #{rpp_atten_forward.8} parent=0 // loop_pre_header
    _
  $region3: #{rpp_atten_forward.8} parent=0 // loop_header
    %s9 = sphi 0, %s13
    %p10 = scmp.ge.s32.totalorder %s9, 4
    %s16 = sphi 0, %s28
    %s17 = sphi 0, %s24
    %s18 = sphi 0, %s16
    %s19 = sphi 0, %s17
    %s20 = sphi 0, %s18
    %s21 = sphi 0, %s19
    %s33 = sphi 0, %s35
    %s36 = sphi 0, %s33
    %s37 = sphi 0, %s36
    %s53 = sphi 0, %s37
    %s57 = sphi 0, %s57
    %s59 = sphi 0, %s57
    %s60 = sphi 0, %s59
    %s74 = sphi 0, %s60
    %s78 = sphi 0, %s78
    %s80 = sphi 0, %s78
    %s81 = sphi 0, %s80
    %s95 = sphi 0, %s81
    %s103 = sphi 0, %s105
    %s106 = sphi 0, %s103
    %s107 = sphi 0, %s106
    %s123 = sphi 0, %s107
  $region4: #{rpp_atten_forward.8} parent=0 // loop_header_branch
    %12 = sbr.rel (%p10) target = $region8
  $region5: #{rpp_atten_forward.8} parent=0 // loop_body
    %s14 = ssub.s32 %s9, 1
    %s15 = ssub.s32 %s9, 2
    %s22 = sadd.s32 1, %s17
    %p23 = scmp.ge.s32.totalorder %s22, 1
    %s24 = scalar_select %p23, 0, %s22
    %s25 = sadd.s32 1, %s16
    %s26 = scalar_select %p23, %s25, %s16
    %p27 = scmp.ge.s32.totalorder %s26, 2
    %s28 = scalar_select %p27, 0, %s26
    %s29 = ssub.s32 %s16, %s28
    %s30 = ssub.s32 %s17, %s24
    %s31 = sor.u32 %s29, %s30
    %p32 = scmp.eq.s32.totalorder %s31, 0
    %s34 = sadd.s32 %s33, 1
    %s35 = scalar_select %p32, %s33, %s34
    %p38 = pneg %p32
    %p39 = scmp.eq.s32.totalorder %s9, 1
    %p40 = por %p38, %p39
    %p41 = scmp.ne.s32.totalorder %s33, %s36
    %p42 = scmp.eq.s32.totalorder %s9, 0
    %p43 = por %p41, %p42
    %p44 = scmp.ne.s32.totalorder %s33, %s36
    %p45 = scmp.eq.s32.totalorder %s14, 1
    %p46 = por %p44, %p45
    %p47 = scmp.ne.s32.totalorder %s36, %s37
    %p48 = scmp.eq.s32.totalorder %s14, 0
    %p49 = por %p47, %p48
    %p50 = scmp.ne.s32.totalorder %s36, %s37
    %p51 = scmp.eq.s32.totalorder %s15, 1
    %p52 = por %p50, %p51
    %p54 = scmp.ne.s32.totalorder %s37, %s53
    %p55 = scmp.eq.s32.totalorder %s15, 0
    %p56 = por %p54, %p55
    %s58 = sadd.s32 %s57, 1
    %p61 = scmp.eq.s32.totalorder %s9, 1
    %p62 = scmp.ne.s32.totalorder %s57, %s59
    %p63 = scmp.eq.s32.totalorder %s9, 0
    %p64 = por %p62, %p63
    %p65 = scmp.ne.s32.totalorder %s57, %s59
    %p66 = scmp.eq.s32.totalorder %s14, 1
    %p67 = por %p65, %p66
    %p68 = scmp.ne.s32.totalorder %s59, %s60
    %p69 = scmp.eq.s32.totalorder %s14, 0
    %p70 = por %p68, %p69
    %p71 = scmp.ne.s32.totalorder %s59, %s60
    %p72 = scmp.eq.s32.totalorder %s15, 1
    %p73 = por %p71, %p72
    %p75 = scmp.ne.s32.totalorder %s60, %s74
    %p76 = scmp.eq.s32.totalorder %s15, 0
    %p77 = por %p75, %p76
    %s79 = sadd.s32 %s78, 1
    %p82 = scmp.eq.s32.totalorder %s9, 1
    %p83 = scmp.ne.s32.totalorder %s78, %s80
    %p84 = scmp.eq.s32.totalorder %s9, 0
    %p85 = por %p83, %p84
    %p86 = scmp.ne.s32.totalorder %s78, %s80
    %p87 = scmp.eq.s32.totalorder %s14, 1
    %p88 = por %p86, %p87
    %p89 = scmp.ne.s32.totalorder %s80, %s81
    %p90 = scmp.eq.s32.totalorder %s14, 0
    %p91 = por %p89, %p90
    %p92 = scmp.ne.s32.totalorder %s80, %s81
    %p93 = scmp.eq.s32.totalorder %s15, 1
    %p94 = por %p92, %p93
    %p96 = scmp.ne.s32.totalorder %s81, %s95
    %p97 = scmp.eq.s32.totalorder %s15, 0
    %p98 = por %p96, %p97
    %s99 = ssub.s32 %s16, %s28
    %s100 = ssub.s32 %s17, %s24
    %s101 = sor.u32 %s99, %s100
    %p102 = scmp.eq.s32.totalorder %s101, 0
    %s104 = sadd.s32 %s103, 1
    %s105 = scalar_select %p102, %s103, %s104
    %p108 = pneg %p102
    %p109 = scmp.eq.s32.totalorder %s9, 1
    %p110 = por %p108, %p109
    %p111 = scmp.ne.s32.totalorder %s103, %s106
    %p112 = scmp.eq.s32.totalorder %s9, 0
    %p113 = por %p111, %p112
    %p114 = scmp.ne.s32.totalorder %s103, %s106
    %p115 = scmp.eq.s32.totalorder %s14, 1
    %p116 = por %p114, %p115
    %p117 = scmp.ne.s32.totalorder %s106, %s107
    %p118 = scmp.eq.s32.totalorder %s14, 0
    %p119 = por %p117, %p118
    %p120 = scmp.ne.s32.totalorder %s106, %s107
    %p121 = scmp.eq.s32.totalorder %s15, 1
    %p122 = por %p120, %p121
    %p124 = scmp.ne.s32.totalorder %s107, %s123
    %p125 = scmp.eq.s32.totalorder %s15, 0
    %p126 = por %p124, %p125
    %p127 = scmp.le.s32.totalorder 1, %s9
    %p128 = scmp.lt.s32.totalorder %s9, 3
    %p129 = pnand %p127, %p128
    %p130 = pneg %p129
    // Predicated region
    $region9: #{rpp_atten_forward.8} parent=5 // pred_check
      _
    $region10: #{rpp_atten_forward.8} parent=5 // pred_check_branch
      %132 = sbr.rel (%p129) target = $region12
    $region11: #{rpp_atten_forward.8} parent=5 // pred_region
      %s133 = ssub.s32 %s9, 1
      // Predicated region
      $region13: #{rpp_atten_forward.8} parent=11 // pred_check
        %p134 = pneg %p70
      $region14: #{rpp_atten_forward.8} parent=11 // pred_check_branch
        %136 = sbr.rel (%p134) target = $region16
      $region15: #{rpp_atten_forward.8} parent=11 // pred_region
        _
      $region16: #{rpp_atten_forward.8} parent=11 // pred_fallthru
        _
      // Predicated region
      $region17: #{rpp_atten_forward.8} parent=11 // pred_check
        %p137 = pneg %p91
      $region18: #{rpp_atten_forward.8} parent=11 // pred_check_branch
        %139 = sbr.rel (%p137) target = $region20
      $region19: #{rpp_atten_forward.8} parent=11 // pred_region
        _
      $region20: #{rpp_atten_forward.8} parent=11 // pred_fallthru
        _
    $region12: #{rpp_atten_forward.8} parent=5 // pred_fallthru
      _
    %p140 = scmp.lt.s32.totalorder %s9, 2
    // Predicated region
    $region21: #{rpp_atten_forward.8} parent=5 // pred_check
      %p141 = pneg %p140
    $region22: #{rpp_atten_forward.8} parent=5 // pred_check_branch
      %143 = sbr.rel (%p141) target = $region24
    $region23: #{rpp_atten_forward.8} parent=5 // pred_region
      // Predicated region
      $region25: #{rpp_atten_forward.8} parent=23 // pred_check
        %p144 = pneg %p43
      $region26: #{rpp_atten_forward.8} parent=23 // pred_check_branch
        %146 = sbr.rel (%p144) target = $region28
      $region27: #{rpp_atten_forward.8} parent=23 // pred_region
        %s147 = smul.u32 6, %s17
        %p148 = scmp.lt.s32.totalorder %s16, 1
        %s149 = scalar_select %p148, %s16, 1
        %p150 = scmp.lt.s32.totalorder %s147, 5
        %s151 = scalar_select %p150, %s147, 5
        %s152 = smul.addr %s149, 6
        %s153 = sadd.s32 %s151, %s152
        %s154 = smul.addr %s153, 8
        %s155 = scalar_lea.vmem %s0, %s154
        %s156 = smul.u32 6, %s17
      $region28: #{rpp_atten_forward.8} parent=23 // pred_fallthru
        _
    $region24: #{rpp_atten_forward.8} parent=5 // pred_fallthru
      _
    %p157 = scmp.le.s32.totalorder 1, %s9
    %p158 = scmp.lt.s32.totalorder %s9, 3
    %p159 = pnand %p157, %p158
    %p160 = pneg %p159
    // Predicated region
    $region29: #{rpp_atten_forward.8} parent=5 // pred_check
      _
    $region30: #{rpp_atten_forward.8} parent=5 // pred_check_branch
      %162 = sbr.rel (%p159) target = $region32
    $region31: #{rpp_atten_forward.8} parent=5 // pred_region
      %s163 = ssub.s32 %s9, 1
      %s164 = smul.u32 6, %s19
      %p165 = scmp.lt.s32.totalorder %s18, 1
      %s166 = scalar_select %p165, %s18, 1
      %p167 = scmp.lt.s32.totalorder %s164, 5
      %s168 = scalar_select %p167, %s164, 5
      %s169 = smul.addr %s166, 6
      %s170 = sadd.s32 %s168, %s169
      %s171 = smul.addr %s170, 8
      %s172 = scalar_lea.vmem %s0, %s171
      %p173 = pneg %p49
      %p174 = pneg %p46
      %p175 = pneg %p70
      %p176 = pneg %p67
      %p177 = pneg %p91
      %p178 = pneg %p88
      %p179 = pneg %p119
      %p180 = pneg %p116
      %p181 = scmp.lt.s32.totalorder %s18, 1
      %s182 = scalar_select %p181, %s18, 1
      %p183 = scmp.lt.s32.totalorder %s19, 0
      %s184 = scalar_select %p183, %s19, 0
      %s185 = sadd.s32 %s184, %s182
      %s186 = smul.addr %s185, 2
      %s187 = scalar_lea.vmem %s3, %s186
      %s188 = smul.u32 6, %s19
      %p189 = scmp.lt.s32.totalorder %s18, 1
      %s190 = scalar_select %p189, %s18, 1
      %p191 = scmp.lt.s32.totalorder %s188, 5
      %s192 = scalar_select %p191, %s188, 5
      %s193 = smul.addr %s190, 6
      %s194 = sadd.s32 %s192, %s193
      %s195 = smul.addr %s194, 8
      %s196 = scalar_lea.vmem %s0, %s195
      %s197 = smul.u32 6, %s19
      %p198 = scmp.lt.s32.totalorder %s18, 1
      %s199 = scalar_select %p198, %s18, 1
      %p200 = scmp.lt.s32.totalorder %s19, 0
      %s201 = scalar_select %p200, %s19, 0
      %s202 = sadd.s32 %s201, %s199
      %s203 = smul.addr %s202, 2
      %s204 = scalar_lea.vmem %s3, %s203
      %v205 = vld [vmem:[%s196] sm:$0xff]
      %v206 = vld [vmem:[%s196 + $0x8] sm:$0xff]
      %v207 = vld [vmem:[%s196 + $0x10] sm:$0xff]
      %v208 = vld [vmem:[%s196 + $0x18] sm:$0xff]
      %v209 = vld [vmem:[%s196 + $0x20] sm:$0xff]
      %v210 = vld [vmem:[%s196 + $0x28] sm:$0xff]
      %v211 = vld [vmem:[%s1] sm:$0x7]
      %213 = vset.pattern.permute.xlu0 0
      %214 = vperm.xlu0 %213, %v205
      %v215 = vpop.permute.xlu0 %214
      %218 = vset.pattern.permute.xlu0 0
      %219 = vperm.xlu0 %218, %v206
      %v220 = vpop.permute.xlu0 %219
      %223 = vset.pattern.permute.xlu0 0
      %224 = vperm.xlu0 %223, %v207
      %v225 = vpop.permute.xlu0 %224
      %228 = vset.pattern.permute.xlu0 0
      %229 = vperm.xlu0 %228, %v208
      %v230 = vpop.permute.xlu0 %229
      %233 = vset.pattern.permute.xlu0 0
      %234 = vperm.xlu0 %233, %v209
      %v235 = vpop.permute.xlu0 %234
      %238 = vset.pattern.permute.xlu0 0
      %239 = vperm.xlu0 %238, %v210
      %v240 = vpop.permute.xlu0 %239
      %v242 = vlaneseq
      %v243 = vshrl.u32 %v242, 7
      %v244 = vsub.s32 0, %v243
      %v245 = vrot.slane %v211, %v244
      %v246 = vmul.f32 %v215, %v245
      %v247 = vmul.f32 %v220, %v245
      %v248 = vmul.f32 %v225, %v245
      %v249 = vmul.f32 %v230, %v245
      %v250 = vmul.f32 %v235, %v245
      %v251 = vmul.f32 %v240, %v245
      %252 = vset.pattern.permute.xlu0 1
      %253 = vperm.xlu0 %252, %v205
      %v254 = vpop.permute.xlu0 %253
      %256 = vset.pattern.permute.xlu0 1
      %257 = vperm.xlu0 %256, %v206
      %v258 = vpop.permute.xlu0 %257
      %260 = vset.pattern.permute.xlu0 1
      %261 = vperm.xlu0 %260, %v207
      %v262 = vpop.permute.xlu0 %261
      %264 = vset.pattern.permute.xlu0 1
      %265 = vperm.xlu0 %264, %v208
      %v266 = vpop.permute.xlu0 %265
      %268 = vset.pattern.permute.xlu0 1
      %269 = vperm.xlu0 %268, %v209
      %v270 = vpop.permute.xlu0 %269
      %272 = vset.pattern.permute.xlu0 1
      %273 = vperm.xlu0 %272, %v210
      %v274 = vpop.permute.xlu0 %273
      %v276 = vlaneseq
      %v277 = vshrl.u32 %v276, 7
      %v278 = vsub.s32 1, %v277
      %v279 = vrot.slane %v211, %v278
      %v280 = vmul.f32 %v254, %v279
      %v281 = vmul.f32 %v258, %v279
      %v282 = vmul.f32 %v262, %v279
      %v283 = vmul.f32 %v266, %v279
      %v284 = vmul.f32 %v270, %v279
      %v285 = vmul.f32 %v274, %v279
      %v286 = vadd.f32 %v246, %v280
      %v287 = vadd.f32 %v247, %v281
      %v288 = vadd.f32 %v248, %v282
      %v289 = vadd.f32 %v249, %v283
      %v290 = vadd.f32 %v250, %v284
      %v291 = vadd.f32 %v251, %v285
      %292 = vset.pattern.permute.xlu0 2
      %293 = vperm.xlu0 %292, %v205
      %v294 = vpop.permute.xlu0 %293
      %296 = vset.pattern.permute.xlu0 2
      %297 = vperm.xlu0 %296, %v206
      %v298 = vpop.permute.xlu0 %297
      %300 = vset.pattern.permute.xlu0 2
      %301 = vperm.xlu0 %300, %v207
      %v302 = vpop.permute.xlu0 %301
      %304 = vset.pattern.permute.xlu0 2
      %305 = vperm.xlu0 %304, %v208
      %v306 = vpop.permute.xlu0 %305
      %308 = vset.pattern.permute.xlu0 2
      %309 = vperm.xlu0 %308, %v209
      %v310 = vpop.permute.xlu0 %309
      %312 = vset.pattern.permute.xlu0 2
      %313 = vperm.xlu0 %312, %v210
      %v314 = vpop.permute.xlu0 %313
      %v316 = vlaneseq
      %v317 = vshrl.u32 %v316, 7
      %v318 = vsub.s32 2, %v317
      %v319 = vrot.slane %v211, %v318
      %v320 = vmul.f32 %v294, %v319
      %v321 = vmul.f32 %v298, %v319
      %v322 = vmul.f32 %v302, %v319
      %v323 = vmul.f32 %v306, %v319
      %v324 = vmul.f32 %v310, %v319
      %v325 = vmul.f32 %v314, %v319
      %v326 = vadd.f32 %v286, %v320
      %v327 = vadd.f32 %v287, %v321
      %v328 = vadd.f32 %v288, %v322
      %v329 = vadd.f32 %v289, %v323
      %v330 = vadd.f32 %v290, %v324
      %v331 = vadd.f32 %v291, %v325
      %v332 = vld [vmem:[%s2] sm:$0x1]
      %v334 = vlaneseq
      %v335 = vshrl.u32 %v334, 7
      %v336 = vsub.s32 0, %v335
      %v337 = vrot.slane %v332, %v336
      %v339 = vadd.f32 %v326, %v337
      %v340 = vadd.f32 %v327, %v337
      %v341 = vadd.f32 %v328, %v337
      %v342 = vadd.f32 %v329, %v337
      %v343 = vadd.f32 %v330, %v337
      %v344 = vadd.f32 %v331, %v337
      %v345 = vlaneseq
      %v346 = vshrl.u32 %v345, 7
      %v347 = vadd.s32 %v346, 8
      %v348 = vadd.s32 %v346, 16
      %v349 = vadd.s32 %v346, 24
      %v350 = vadd.s32 %v346, 32
      %v351 = vadd.s32 %v346, 40
      %s352 = smul.u32 %s19, 48
      %v353 = vstv %s352
      %v354 = vadd.s32 %v346, %v353
      %v355 = vadd.s32 %v347, %v353
      %v356 = vadd.s32 %v348, %v353
      %v357 = vadd.s32 %v349, %v353
      %v358 = vadd.s32 %v350, %v353
      %v359 = vadd.s32 %v351, %v353
      %vm360 = vcmp.lt.s32.totalorder %v354, 44
      %vm361 = vcmp.lt.s32.totalorder %v355, 44
      %vm362 = vcmp.lt.s32.totalorder %v356, 44
      %vm363 = vcmp.lt.s32.totalorder %v357, 44
      %vm364 = vcmp.lt.s32.totalorder %v358, 44
      %vm365 = vcmp.lt.s32.totalorder %v359, 44
      %v366 = vsel %vm360, 1, 0
      %v367 = vsel %vm361, 1, 0
      %v368 = vsel %vm362, 1, 0
      %v369 = vsel %vm363, 1, 0
      %v370 = vsel %vm364, 1, 0
      %v371 = vsel %vm365, 1, 0
      %vm372 = vcmp.eq.s32.totalorder %v366, 1
      %vm373 = vcmp.eq.s32.totalorder %v367, 1
      %vm374 = vcmp.eq.s32.totalorder %v368, 1
      %vm375 = vcmp.eq.s32.totalorder %v369, 1
      %vm376 = vcmp.eq.s32.totalorder %v370, 1
      %vm377 = vcmp.eq.s32.totalorder %v371, 1
      %v378 = vsel %vm372, %v339, 0.0
      %v379 = vsel %vm373, %v340, 0.0
      %v380 = vsel %vm374, %v341, 0.0
      %v381 = vsel %vm375, %v342, 0.0
      %v382 = vsel %vm376, %v343, 0.0
      %v383 = vsel %vm377, %v344, 0.0
      %vm384 = vcmask 261120
      %v385 = vsel %vm384, %v378, 0.0
      %v386 = vsel %vm384, %v379, 0.0
      %v387 = vadd.f32 %v385, %v386
      %v388 = vsel %vm384, %v380, 0.0
      %v389 = vadd.f32 %v387, %v388
      %v390 = vsel %vm384, %v381, 0.0
      %v391 = vadd.f32 %v389, %v390
      %v392 = vsel %vm384, %v382, 0.0
      %v393 = vadd.f32 %v391, %v392
      %v394 = vsel %vm384, %v383, 0.0
      %v395 = vadd.f32 %v393, %v394
      %v396 = vrot.slane %v395, 4
      %v397 = vadd.f32 %v395, %v396
      %v398 = vrot.slane %v397, 2
      %v399 = vadd.f32 %v397, %v398
      %v400 = vrot.slane %v399, 1
      %v401 = vadd.f32 %v399, %v400
      %vm402 = vcmask 253952
      %403 = vst.msk [vmem:[%s204] sm:$0x1] %vm402, %v401
      %v404 = vmul.f32 %v378, %v378
      %v405 = vmul.f32 %v379, %v379
      %v406 = vmul.f32 %v380, %v380
      %v407 = vmul.f32 %v381, %v381
      %v408 = vmul.f32 %v382, %v382
      %v409 = vmul.f32 %v383, %v383
      %v410 = vsel %vm384, %v404, 0.0
      %v411 = vsel %vm384, %v405, 0.0
      %v412 = vadd.f32 %v410, %v411
      %v413 = vsel %vm384, %v406, 0.0
      %v414 = vadd.f32 %v412, %v413
      %v415 = vsel %vm384, %v407, 0.0
      %v416 = vadd.f32 %v414, %v415
      %v417 = vsel %vm384, %v408, 0.0
      %v418 = vadd.f32 %v416, %v417
      %v419 = vsel %vm384, %v409, 0.0
      %v420 = vadd.f32 %v418, %v419
      %v421 = vrot.slane %v420, 4
      %v422 = vadd.f32 %v420, %v421
      %v423 = vrot.slane %v422, 2
      %v424 = vadd.f32 %v422, %v423
      %v425 = vrot.slane %v424, 1
      %v426 = vadd.f32 %v424, %v425
      %427 = vst.msk [vmem:[%s204 + $0x1] sm:$0x1] %vm402, %v426
      %p428 = scmp.lt.s32.totalorder %s18, 1
      %s429 = scalar_select %p428, %s18, 1
      %p430 = scmp.lt.s32.totalorder %s19, 0
      %s431 = scalar_select %p430, %s19, 0
      %s432 = sadd.s32 %s431, %s429
      %s433 = smul.addr %s432, 2
      %s434 = scalar_lea.vmem %s3, %s433
      // Predicated region
      $region33: #{rpp_atten_forward.8} parent=31 // pred_check
        %p435 = pneg %p116
      $region34: #{rpp_atten_forward.8} parent=31 // pred_check_branch
        %437 = sbr.rel (%p435) target = $region36
      $region35: #{rpp_atten_forward.8} parent=31 // pred_region
        _
      $region36: #{rpp_atten_forward.8} parent=31 // pred_fallthru
        _
    $region32: #{rpp_atten_forward.8} parent=5 // pred_fallthru
      _
    %p438 = scmp.le.s32.totalorder 2, %s9
    // Predicated region
    $region37: #{rpp_atten_forward.8} parent=5 // pred_check
      %p439 = pneg %p438
    $region38: #{rpp_atten_forward.8} parent=5 // pred_check_branch
      %441 = sbr.rel (%p439) target = $region40
    $region39: #{rpp_atten_forward.8} parent=5 // pred_region
      %s442 = ssub.s32 %s9, 2
      // Predicated region
      $region41: #{rpp_atten_forward.8} parent=39 // pred_check
        %p443 = pneg %p122
      $region42: #{rpp_atten_forward.8} parent=39 // pred_check_branch
        %445 = sbr.rel (%p443) target = $region44
      $region43: #{rpp_atten_forward.8} parent=39 // pred_region
        %p446 = scmp.lt.s32.totalorder %s20, 1
        %s447 = scalar_select %p446, %s20, 1
        %p448 = scmp.lt.s32.totalorder %s21, 0
        %s449 = scalar_select %p448, %s21, 0
        %s450 = sadd.s32 %s449, %s447
        %s451 = smul.addr %s450, 2
        %s452 = scalar_lea.vmem %s3, %s451
      $region44: #{rpp_atten_forward.8} parent=39 // pred_fallthru
        _
    $region40: #{rpp_atten_forward.8} parent=5 // pred_fallthru
      _
  $region6: #{rpp_atten_forward.8} parent=0 // loop_footer
    %s13 = sadd.s32 1, %s9
  $region7: #{rpp_atten_forward.8} parent=0 // loop_footer_branch
    %8 = sbr.rel target = $region3
  $region8: #{rpp_atten_forward.8} parent=0 // loop_exit
    _

// kernel: rpp_atten_forward.6
$region0: #{rpp_atten_forward.6}
  #allocation0 [shape = 'u32[]', space=smem, size = 0x4, offset = 0x4, fixed_abs, tag = 'smem constant byte address 0x4 - core index']
  #allocation1 [shape = 'u32[144,128]{1,0:T(1,128)}', space=vmem, size = 0x12000, scoped, tag = 'internal scratch']
  %s0 = inlined_call_operand.vmem [shape: f32[2,48,3], index: 0, kind: input, shape index: {}]
  %s1 = inlined_call_operand.vmem [shape: f32[3,32], index: 1, kind: input, shape index: {}]
  %s2 = inlined_call_operand.vmem [shape: f32[1,32], index: 2, kind: input, shape index: {}]
  %s3 = inlined_call_operand.vmem [shape: f32[2,1,2,32], index: 3, kind: output, shape index: {}]
  %s4 = sld [smem:[#allocation0]]
  $region45: #{rpp_atten_forward.6} parent=0
    _
  %s6 = ssub.s32 1, %s4
  %s7 = scalar_select 0, %s6, %s4
  loop: start=0, step=1, limit=4
  $region2: #{rpp_atten_forward.6} parent=0 // loop_pre_header
    _
  $region3: #{rpp_atten_forward.6} parent=0 // loop_header
    %s9 = sphi 0, %s13
    %p10 = scmp.ge.s32.totalorder %s9, 4
    %s16 = sphi 0, %s28
    %s17 = sphi 0, %s24
    %s18 = sphi 0, %s16
    %s19 = sphi 0, %s17
    %s20 = sphi 0, %s18
    %s21 = sphi 0, %s19
    %s33 = sphi 0, %s35
    %s36 = sphi 0, %s33
    %s37 = sphi 0, %s36
    %s53 = sphi 0, %s37
    %s57 = sphi 0, %s57
    %s59 = sphi 0, %s57
    %s60 = sphi 0, %s59
    %s74 = sphi 0, %s60
    %s78 = sphi 0, %s78
    %s80 = sphi 0, %s78
    %s81 = sphi 0, %s80
    %s95 = sphi 0, %s81
    %s103 = sphi 0, %s105
    %s106 = sphi 0, %s103
    %s107 = sphi 0, %s106
    %s123 = sphi 0, %s107
  $region4: #{rpp_atten_forward.6} parent=0 // loop_header_branch
    %12 = sbr.rel (%p10) target = $region8
  $region5: #{rpp_atten_forward.6} parent=0 // loop_body
    %s14 = ssub.s32 %s9, 1
    %s15 = ssub.s32 %s9, 2
    %s22 = sadd.s32 1, %s17
    %p23 = scmp.ge.s32.totalorder %s22, 1
    %s24 = scalar_select %p23, 0, %s22
    %s25 = sadd.s32 1, %s16
    %s26 = scalar_select %p23, %s25, %s16
    %p27 = scmp.ge.s32.totalorder %s26, 2
    %s28 = scalar_select %p27, 0, %s26
    %s29 = ssub.s32 %s16, %s28
    %s30 = ssub.s32 %s17, %s24
    %s31 = sor.u32 %s29, %s30
    %p32 = scmp.eq.s32.totalorder %s31, 0
    %s34 = sadd.s32 %s33, 1
    %s35 = scalar_select %p32, %s33, %s34
    %p38 = pneg %p32
    %p39 = scmp.eq.s32.totalorder %s9, 1
    %p40 = por %p38, %p39
    %p41 = scmp.ne.s32.totalorder %s33, %s36
    %p42 = scmp.eq.s32.totalorder %s9, 0
    %p43 = por %p41, %p42
    %p44 = scmp.ne.s32.totalorder %s33, %s36
    %p45 = scmp.eq.s32.totalorder %s14, 1
    %p46 = por %p44, %p45
    %p47 = scmp.ne.s32.totalorder %s36, %s37
    %p48 = scmp.eq.s32.totalorder %s14, 0
    %p49 = por %p47, %p48
    %p50 = scmp.ne.s32.totalorder %s36, %s37
    %p51 = scmp.eq.s32.totalorder %s15, 1
    %p52 = por %p50, %p51
    %p54 = scmp.ne.s32.totalorder %s37, %s53
    %p55 = scmp.eq.s32.totalorder %s15, 0
    %p56 = por %p54, %p55
    %s58 = sadd.s32 %s57, 1
    %p61 = scmp.eq.s32.totalorder %s9, 1
    %p62 = scmp.ne.s32.totalorder %s57, %s59
    %p63 = scmp.eq.s32.totalorder %s9, 0
    %p64 = por %p62, %p63
    %p65 = scmp.ne.s32.totalorder %s57, %s59
    %p66 = scmp.eq.s32.totalorder %s14, 1
    %p67 = por %p65, %p66
    %p68 = scmp.ne.s32.totalorder %s59, %s60
    %p69 = scmp.eq.s32.totalorder %s14, 0
    %p70 = por %p68, %p69
    %p71 = scmp.ne.s32.totalorder %s59, %s60
    %p72 = scmp.eq.s32.totalorder %s15, 1
    %p73 = por %p71, %p72
    %p75 = scmp.ne.s32.totalorder %s60, %s74
    %p76 = scmp.eq.s32.totalorder %s15, 0
    %p77 = por %p75, %p76
    %s79 = sadd.s32 %s78, 1
    %p82 = scmp.eq.s32.totalorder %s9, 1
    %p83 = scmp.ne.s32.totalorder %s78, %s80
    %p84 = scmp.eq.s32.totalorder %s9, 0
    %p85 = por %p83, %p84
    %p86 = scmp.ne.s32.totalorder %s78, %s80
    %p87 = scmp.eq.s32.totalorder %s14, 1
    %p88 = por %p86, %p87
    %p89 = scmp.ne.s32.totalorder %s80, %s81
    %p90 = scmp.eq.s32.totalorder %s14, 0
    %p91 = por %p89, %p90
    %p92 = scmp.ne.s32.totalorder %s80, %s81
    %p93 = scmp.eq.s32.totalorder %s15, 1
    %p94 = por %p92, %p93
    %p96 = scmp.ne.s32.totalorder %s81, %s95
    %p97 = scmp.eq.s32.totalorder %s15, 0
    %p98 = por %p96, %p97
    %s99 = ssub.s32 %s16, %s28
    %s100 = ssub.s32 %s17, %s24
    %s101 = sor.u32 %s99, %s100
    %p102 = scmp.eq.s32.totalorder %s101, 0
    %s104 = sadd.s32 %s103, 1
    %s105 = scalar_select %p102, %s103, %s104
    %p108 = pneg %p102
    %p109 = scmp.eq.s32.totalorder %s9, 1
    %p110 = por %p108, %p109
    %p111 = scmp.ne.s32.totalorder %s103, %s106
    %p112 = scmp.eq.s32.totalorder %s9, 0
    %p113 = por %p111, %p112
    %p114 = scmp.ne.s32.totalorder %s103, %s106
    %p115 = scmp.eq.s32.totalorder %s14, 1
    %p116 = por %p114, %p115
    %p117 = scmp.ne.s32.totalorder %s106, %s107
    %p118 = scmp.eq.s32.totalorder %s14, 0
    %p119 = por %p117, %p118
    %p120 = scmp.ne.s32.totalorder %s106, %s107
    %p121 = scmp.eq.s32.totalorder %s15, 1
    %p122 = por %p120, %p121
    %p124 = scmp.ne.s32.totalorder %s107, %s123
    %p125 = scmp.eq.s32.totalorder %s15, 0
    %p126 = por %p124, %p125
    %p127 = scmp.le.s32.totalorder 1, %s9
    %p128 = scmp.lt.s32.totalorder %s9, 3
    %p129 = pnand %p127, %p128
    %p130 = pneg %p129
    // Predicated region
    $region9: #{rpp_atten_forward.6} parent=5 // pred_check
      _
    $region10: #{rpp_atten_forward.6} parent=5 // pred_check_branch
      %132 = sbr.rel (%p129) target = $region12
    $region11: #{rpp_atten_forward.6} parent=5 // pred_region
      %s133 = ssub.s32 %s9, 1
      // Predicated region
      $region13: #{rpp_atten_forward.6} parent=11 // pred_check
        %p134 = pneg %p70
      $region14: #{rpp_atten_forward.6} parent=11 // pred_check_branch
        %136 = sbr.rel (%p134) target = $region16
      $region15: #{rpp_atten_forward.6} parent=11 // pred_region
        _
      $region16: #{rpp_atten_forward.6} parent=11 // pred_fallthru
        _
      // Predicated region
      $region17: #{rpp_atten_forward.6} parent=11 // pred_check
        %p137 = pneg %p91
      $region18: #{rpp_atten_forward.6} parent=11 // pred_check_branch
        %139 = sbr.rel (%p137) target = $region20
      $region19: #{rpp_atten_forward.6} parent=11 // pred_region
        _
      $region20: #{rpp_atten_forward.6} parent=11 // pred_fallthru
        _
    $region12: #{rpp_atten_forward.6} parent=5 // pred_fallthru
      _
    %p140 = scmp.lt.s32.totalorder %s9, 2
    // Predicated region
    $region21: #{rpp_atten_forward.6} parent=5 // pred_check
      %p141 = pneg %p140
    $region22: #{rpp_atten_forward.6} parent=5 // pred_check_branch
      %143 = sbr.rel (%p141) target = $region24
    $region23: #{rpp_atten_forward.6} parent=5 // pred_region
      // Predicated region
      $region25: #{rpp_atten_forward.6} parent=23 // pred_check
        %p144 = pneg %p43
      $region26: #{rpp_atten_forward.6} parent=23 // pred_check_branch
        %146 = sbr.rel (%p144) target = $region28
      $region27: #{rpp_atten_forward.6} parent=23 // pred_region
        %s147 = smul.u32 6, %s17
        %p148 = scmp.lt.s32.totalorder %s16, 1
        %s149 = scalar_select %p148, %s16, 1
        %p150 = scmp.lt.s32.totalorder %s147, 5
        %s151 = scalar_select %p150, %s147, 5
        %s152 = smul.addr %s149, 6
        %s153 = sadd.s32 %s151, %s152
        %s154 = smul.addr %s153, 8
        %s155 = scalar_lea.vmem %s0, %s154
        %s156 = smul.u32 6, %s17
      $region28: #{rpp_atten_forward.6} parent=23 // pred_fallthru
        _
    $region24: #{rpp_atten_forward.6} parent=5 // pred_fallthru
      _
    %p157 = scmp.le.s32.totalorder 1, %s9
    %p158 = scmp.lt.s32.totalorder %s9, 3
    %p159 = pnand %p157, %p158
    %p160 = pneg %p159
    // Predicated region
    $region29: #{rpp_atten_forward.6} parent=5 // pred_check
      _
    $region30: #{rpp_atten_forward.6} parent=5 // pred_check_branch
      %162 = sbr.rel (%p159) target = $region32
    $region31: #{rpp_atten_forward.6} parent=5 // pred_region
      %s163 = ssub.s32 %s9, 1
      %s164 = smul.u32 6, %s19
      %p165 = scmp.lt.s32.totalorder %s18, 1
      %s166 = scalar_select %p165, %s18, 1
      %p167 = scmp.lt.s32.totalorder %s164, 5
      %s168 = scalar_select %p167, %s164, 5
      %s169 = smul.addr %s166, 6
      %s170 = sadd.s32 %s168, %s169
      %s171 = smul.addr %s170, 8
      %s172 = scalar_lea.vmem %s0, %s171
      %p173 = pneg %p49
      %p174 = pneg %p46
      %p175 = pneg %p70
      %p176 = pneg %p67
      %p177 = pneg %p91
      %p178 = pneg %p88
      %p179 = pneg %p119
      %p180 = pneg %p116
      %p181 = scmp.lt.s32.totalorder %s18, 1
      %s182 = scalar_select %p181, %s18, 1
      %p183 = scmp.lt.s32.totalorder %s19, 0
      %s184 = scalar_select %p183, %s19, 0
      %s185 = sadd.s32 %s184, %s182
      %s186 = smul.addr %s185, 2
      %s187 = scalar_lea.vmem %s3, %s186
      %s188 = smul.u32 6, %s19
      %p189 = scmp.lt.s32.totalorder %s18, 1
      %s190 = scalar_select %p189, %s18, 1
      %p191 = scmp.lt.s32.totalorder %s188, 5
      %s192 = scalar_select %p191, %s188, 5
      %s193 = smul.addr %s190, 6
      %s194 = sadd.s32 %s192, %s193
      %s195 = smul.addr %s194, 8
      %s196 = scalar_lea.vmem %s0, %s195
      %s197 = smul.u32 6, %s19
      %p198 = scmp.lt.s32.totalorder %s18, 1
      %s199 = scalar_select %p198, %s18, 1
      %p200 = scmp.lt.s32.totalorder %s19, 0
      %s201 = scalar_select %p200, %s19, 0
      %s202 = sadd.s32 %s201, %s199
      %s203 = smul.addr %s202, 2
      %s204 = scalar_lea.vmem %s3, %s203
      %v205 = vld [vmem:[%s196] sm:$0xff]
      %v206 = vld [vmem:[%s196 + $0x8] sm:$0xff]
      %v207 = vld [vmem:[%s196 + $0x10] sm:$0xff]
      %v208 = vld [vmem:[%s196 + $0x18] sm:$0xff]
      %v209 = vld [vmem:[%s196 + $0x20] sm:$0xff]
      %v210 = vld [vmem:[%s196 + $0x28] sm:$0xff]
      %v211 = vld [vmem:[%s1] sm:$0x7]
      %213 = vset.pattern.permute.xlu0 0
      %214 = vperm.xlu0 %213, %v205
      %v215 = vpop.permute.xlu0 %214
      %218 = vset.pattern.permute.xlu0 0
      %219 = vperm.xlu0 %218, %v206
      %v220 = vpop.permute.xlu0 %219
      %223 = vset.pattern.permute.xlu0 0
      %224 = vperm.xlu0 %223, %v207
      %v225 = vpop.permute.xlu0 %224
      %228 = vset.pattern.permute.xlu0 0
      %229 = vperm.xlu0 %228, %v208
      %v230 = vpop.permute.xlu0 %229
      %233 = vset.pattern.permute.xlu0 0
      %234 = vperm.xlu0 %233, %v209
      %v235 = vpop.permute.xlu0 %234
      %238 = vset.pattern.permute.xlu0 0
      %239 = vperm.xlu0 %238, %v210
      %v240 = vpop.permute.xlu0 %239
      %v242 = vlaneseq
      %v243 = vshrl.u32 %v242, 7
      %v244 = vsub.s32 0, %v243
      %v245 = vrot.slane %v211, %v244
      %v246 = vmul.f32 %v215, %v245
      %v247 = vmul.f32 %v220, %v245
      %v248 = vmul.f32 %v225, %v245
      %v249 = vmul.f32 %v230, %v245
      %v250 = vmul.f32 %v235, %v245
      %v251 = vmul.f32 %v240, %v245
      %252 = vset.pattern.permute.xlu0 1
      %253 = vperm.xlu0 %252, %v205
      %v254 = vpop.permute.xlu0 %253
      %256 = vset.pattern.permute.xlu0 1
      %257 = vperm.xlu0 %256, %v206
      %v258 = vpop.permute.xlu0 %257
      %260 = vset.pattern.permute.xlu0 1
      %261 = vperm.xlu0 %260, %v207
      %v262 = vpop.permute.xlu0 %261
      %264 = vset.pattern.permute.xlu0 1
      %265 = vperm.xlu0 %264, %v208
      %v266 = vpop.permute.xlu0 %265
      %268 = vset.pattern.permute.xlu0 1
      %269 = vperm.xlu0 %268, %v209
      %v270 = vpop.permute.xlu0 %269
      %272 = vset.pattern.permute.xlu0 1
      %273 = vperm.xlu0 %272, %v210
      %v274 = vpop.permute.xlu0 %273
      %v276 = vlaneseq
      %v277 = vshrl.u32 %v276, 7
      %v278 = vsub.s32 1, %v277
      %v279 = vrot.slane %v211, %v278
      %v280 = vmul.f32 %v254, %v279
      %v281 = vmul.f32 %v258, %v279
      %v282 = vmul.f32 %v262, %v279
      %v283 = vmul.f32 %v266, %v279
      %v284 = vmul.f32 %v270, %v279
      %v285 = vmul.f32 %v274, %v279
      %v286 = vadd.f32 %v246, %v280
      %v287 = vadd.f32 %v247, %v281
      %v288 = vadd.f32 %v248, %v282
      %v289 = vadd.f32 %v249, %v283
      %v290 = vadd.f32 %v250, %v284
      %v291 = vadd.f32 %v251, %v285
      %292 = vset.pattern.permute.xlu0 2
      %293 = vperm.xlu0 %292, %v205
      %v294 = vpop.permute.xlu0 %293
      %296 = vset.pattern.permute.xlu0 2
      %297 = vperm.xlu0 %296, %v206
      %v298 = vpop.permute.xlu0 %297
      %300 = vset.pattern.permute.xlu0 2
      %301 = vperm.xlu0 %300, %v207
      %v302 = vpop.permute.xlu0 %301
      %304 = vset.pattern.permute.xlu0 2
      %305 = vperm.xlu0 %304, %v208
      %v306 = vpop.permute.xlu0 %305
      %308 = vset.pattern.permute.xlu0 2
      %309 = vperm.xlu0 %308, %v209
      %v310 = vpop.permute.xlu0 %309
      %312 = vset.pattern.permute.xlu0 2
      %313 = vperm.xlu0 %312, %v210
      %v314 = vpop.permute.xlu0 %313
      %v316 = vlaneseq
      %v317 = vshrl.u32 %v316, 7
      %v318 = vsub.s32 2, %v317
      %v319 = vrot.slane %v211, %v318
      %v320 = vmul.f32 %v294, %v319
      %v321 = vmul.f32 %v298, %v319
      %v322 = vmul.f32 %v302, %v319
      %v323 = vmul.f32 %v306, %v319
      %v324 = vmul.f32 %v310, %v319
      %v325 = vmul.f32 %v314, %v319
      %v326 = vadd.f32 %v286, %v320
      %v327 = vadd.f32 %v287, %v321
      %v328 = vadd.f32 %v288, %v322
      %v329 = vadd.f32 %v289, %v323
      %v330 = vadd.f32 %v290, %v324
      %v331 = vadd.f32 %v291, %v325
      %v332 = vld [vmem:[%s2] sm:$0x1]
      %v334 = vlaneseq
      %v335 = vshrl.u32 %v334, 7
      %v336 = vsub.s32 0, %v335
      %v337 = vrot.slane %v332, %v336
      %v339 = vadd.f32 %v326, %v337
      %v340 = vadd.f32 %v327, %v337
      %v341 = vadd.f32 %v328, %v337
      %v342 = vadd.f32 %v329, %v337
      %v343 = vadd.f32 %v330, %v337
      %v344 = vadd.f32 %v331, %v337
      %v345 = vlaneseq
      %v346 = vshrl.u32 %v345, 7
      %v347 = vadd.s32 %v346, 8
      %v348 = vadd.s32 %v346, 16
      %v349 = vadd.s32 %v346, 24
      %v350 = vadd.s32 %v346, 32
      %v351 = vadd.s32 %v346, 40
      %s352 = smul.u32 %s19, 48
      %v353 = vstv %s352
      %v354 = vadd.s32 %v346, %v353
      %v355 = vadd.s32 %v347, %v353
      %v356 = vadd.s32 %v348, %v353
      %v357 = vadd.s32 %v349, %v353
      %v358 = vadd.s32 %v350, %v353
      %v359 = vadd.s32 %v351, %v353
      %vm360 = vcmp.lt.s32.totalorder %v354, 40
      %vm361 = vcmp.lt.s32.totalorder %v355, 40
      %vm362 = vcmp.lt.s32.totalorder %v356, 40
      %vm363 = vcmp.lt.s32.totalorder %v357, 40
      %vm364 = vcmp.lt.s32.totalorder %v358, 40
      %vm365 = vcmp.lt.s32.totalorder %v359, 40
      %v366 = vsel %vm360, 1, 0
      %v367 = vsel %vm361, 1, 0
      %v368 = vsel %vm362, 1, 0
      %v369 = vsel %vm363, 1, 0
      %v370 = vsel %vm364, 1, 0
      %v371 = vsel %vm365, 1, 0
      %vm372 = vcmp.eq.s32.totalorder %v366, 1
      %vm373 = vcmp.eq.s32.totalorder %v367, 1
      %vm374 = vcmp.eq.s32.totalorder %v368, 1
      %vm375 = vcmp.eq.s32.totalorder %v369, 1
      %vm376 = vcmp.eq.s32.totalorder %v370, 1
      %vm377 = vcmp.eq.s32.totalorder %v371, 1
      %v378 = vsel %vm372, %v339, 0.0
      %v379 = vsel %vm373, %v340, 0.0
      %v380 = vsel %vm374, %v341, 0.0
      %v381 = vsel %vm375, %v342, 0.0
      %v382 = vsel %vm376, %v343, 0.0
      %v383 = vsel %vm377, %v344, 0.0
      %vm384 = vcmask 261120
      %v385 = vsel %vm384, %v378, 0.0
      %v386 = vsel %vm384, %v379, 0.0
      %v387 = vadd.f32 %v385, %v386
      %v388 = vsel %vm384, %v380, 0.0
      %v389 = vadd.f32 %v387, %v388
      %v390 = vsel %vm384, %v381, 0.0
      %v391 = vadd.f32 %v389, %v390
      %v392 = vsel %vm384, %v382, 0.0
      %v393 = vadd.f32 %v391, %v392
      %v394 = vsel %vm384, %v383, 0.0
      %v395 = vadd.f32 %v393, %v394
      %v396 = vrot.slane %v395, 4
      %v397 = vadd.f32 %v395, %v396
      %v398 = vrot.slane %v397, 2
      %v399 = vadd.f32 %v397, %v398
      %v400 = vrot.slane %v399, 1
      %v401 = vadd.f32 %v399, %v400
      %vm402 = vcmask 253952
      %403 = vst.msk [vmem:[%s204] sm:$0x1] %vm402, %v401
      %v404 = vmul.f32 %v378, %v378
      %v405 = vmul.f32 %v379, %v379
      %v406 = vmul.f32 %v380, %v380
      %v407 = vmul.f32 %v381, %v381
      %v408 = vmul.f32 %v382, %v382
      %v409 = vmul.f32 %v383, %v383
      %v410 = vsel %vm384, %v404, 0.0
      %v411 = vsel %vm384, %v405, 0.0
      %v412 = vadd.f32 %v410, %v411
      %v413 = vsel %vm384, %v406, 0.0
      %v414 = vadd.f32 %v412, %v413
      %v415 = vsel %vm384, %v407, 0.0
      %v416 = vadd.f32 %v414, %v415
      %v417 = vsel %vm384, %v408, 0.0
      %v418 = vadd.f32 %v416, %v417
      %v419 = vsel %vm384, %v409, 0.0
      %v420 = vadd.f32 %v418, %v419
      %v421 = vrot.slane %v420, 4
      %v422 = vadd.f32 %v420, %v421
      %v423 = vrot.slane %v422, 2
      %v424 = vadd.f32 %v422, %v423
      %v425 = vrot.slane %v424, 1
      %v426 = vadd.f32 %v424, %v425
      %427 = vst.msk [vmem:[%s204 + $0x1] sm:$0x1] %vm402, %v426
      %p428 = scmp.lt.s32.totalorder %s18, 1
      %s429 = scalar_select %p428, %s18, 1
      %p430 = scmp.lt.s32.totalorder %s19, 0
      %s431 = scalar_select %p430, %s19, 0
      %s432 = sadd.s32 %s431, %s429
      %s433 = smul.addr %s432, 2
      %s434 = scalar_lea.vmem %s3, %s433
      // Predicated region
      $region33: #{rpp_atten_forward.6} parent=31 // pred_check
        %p435 = pneg %p116
      $region34: #{rpp_atten_forward.6} parent=31 // pred_check_branch
        %437 = sbr.rel (%p435) target = $region36
      $region35: #{rpp_atten_forward.6} parent=31 // pred_region
        _
      $region36: #{rpp_atten_forward.6} parent=31 // pred_fallthru
        _
    $region32: #{rpp_atten_forward.6} parent=5 // pred_fallthru
      _
    %p438 = scmp.le.s32.totalorder 2, %s9
    // Predicated region
    $region37: #{rpp_atten_forward.6} parent=5 // pred_check
      %p439 = pneg %p438
    $region38: #{rpp_atten_forward.6} parent=5 // pred_check_branch
      %441 = sbr.rel (%p439) target = $region40
    $region39: #{rpp_atten_forward.6} parent=5 // pred_region
      %s442 = ssub.s32 %s9, 2
      // Predicated region
      $region41: #{rpp_atten_forward.6} parent=39 // pred_check
        %p443 = pneg %p122
      $region42: #{rpp_atten_forward.6} parent=39 // pred_check_branch
        %445 = sbr.rel (%p443) target = $region44
      $region43: #{rpp_atten_forward.6} parent=39 // pred_region
        %p446 = scmp.lt.s32.totalorder %s20, 1
        %s447 = scalar_select %p446, %s20, 1
        %p448 = scmp.lt.s32.totalorder %s21, 0
        %s449 = scalar_select %p448, %s21, 0
        %s450 = sadd.s32 %s449, %s447
        %s451 = smul.addr %s450, 2
        %s452 = scalar_lea.vmem %s3, %s451
      $region44: #{rpp_atten_forward.6} parent=39 // pred_fallthru
        _
    $region40: #{rpp_atten_forward.6} parent=5 // pred_fallthru
      _
  $region6: #{rpp_atten_forward.6} parent=0 // loop_footer
    %s13 = sadd.s32 1, %s9
  $region7: #{rpp_atten_forward.6} parent=0 // loop_footer_branch
    %8 = sbr.rel target = $region3
  $region8: #{rpp_atten_forward.6} parent=0 // loop_exit
    _

// kernel: squeeze.9
$region0: #{squeeze.9}
  %s0 = inlined_call_operand.vmem [shape: f32[2,32], index: 0, kind: input, shape index: {}]
  %s1 = inlined_call_operand.vmem [shape: f32[2,2,16], index: 1, kind: output, shape index: {}]
  $region1: #{squeeze.9} parent=0
    #allocation0 [shape = 'u8[8192]{0}', space=vmem, size = 0x2000, scoped, tag = 'scoped mem for output reshape']
    #allocation1 [shape = 'u8[4096]{0}', space=vmem, size = 0x1000, scoped, tag = 'scoped mem for input reshape']
    %s3 = sshllo.u32 0, 2
    %v4 = vld [vmem:[%s0] sm:%s3]
    %5 = vst [vmem:[#allocation1] sm:%s3] %v4
    %v6 = vld [vmem:[#allocation1] sm:$0x3]
    %vm7 = vcmask 130048
    %8 = vst.msk [vmem:[#allocation0] ss:$8 sm:$0x3] %vm7, %v6
    %v9 = vld [vmem:[#allocation1] sm:$0x3]
    %10 = vrot.lane.b32.xlu0 %v9, 112
    %v11 = vpop.permute.xlu0 %10
    %vm12 = vcmask 130048
    %s13 = scalar_lea.vmem [#allocation0], 1
    %14 = vst.msk [vmem:[%s13] ss:$8 sm:$0x3] %vm12, %v11
    %s16 = sshllo.u32 0, 2
    %v18 = vld [vmem:[#allocation0] sm:%s16]
    %s19 = sshllo.u32 0, 2
    %20 = vst [vmem:[%s1] sm:%s19] %v18
    %s21 = scalar_lea.vmem [#allocation0], 8
    %v22 = vld [vmem:[%s21] sm:%s16]
    %s23 = sshllo.u32 0, 2
    %s24 = scalar_lea.vmem %s1, 2
    %25 = vst [vmem:[%s24] sm:%s23] %v22

// kernel: rpp_atten_forward.7
$region0: #{rpp_atten_forward.7}
  #allocation0 [shape = 'u32[]', space=smem, size = 0x4, offset = 0x4, fixed_abs, tag = 'smem constant byte address 0x4 - core index']
  #allocation1 [shape = 'u32[144,128]{1,0:T(1,128)}', space=vmem, size = 0x12000, scoped, tag = 'internal scratch']
  %s0 = inlined_call_operand.vmem [shape: f32[2,48,3], index: 0, kind: input, shape index: {}]
  %s1 = inlined_call_operand.vmem [shape: f32[2,48,32], index: 1, kind: input, shape index: {}]
  %s2 = inlined_call_operand.vmem [shape: f32[3,32], index: 2, kind: input, shape index: {}]
  %s3 = inlined_call_operand.vmem [shape: f32[1,32], index: 3, kind: input, shape index: {}]
  %s4 = inlined_call_operand.vmem [shape: f32[2,1,32], index: 4, kind: input, shape index: {}]
  %s5 = inlined_call_operand.vmem [shape: f32[2,1,32], index: 5, kind: input, shape index: {}]
  %s6 = inlined_call_operand.vmem [shape: bf16[2,48,32], index: 6, kind: output, shape index: {}]
  %s7 = sld [smem:[#allocation0]]
  $region57: #{rpp_atten_forward.7} parent=0
    _
  %s9 = ssub.s32 1, %s7
  %s10 = scalar_select 0, %s9, %s7
  loop: start=0, step=1, limit=4
  $region2: #{rpp_atten_forward.7} parent=0 // loop_pre_header
    _
  $region3: #{rpp_atten_forward.7} parent=0 // loop_header
    %s12 = sphi 0, %s16
    %p13 = scmp.ge.s32.totalorder %s12, 4
    %s19 = sphi 0, %s31
    %s20 = sphi 0, %s27
    %s21 = sphi 0, %s19
    %s22 = sphi 0, %s20
    %s23 = sphi 0, %s21
    %s24 = sphi 0, %s22
    %s36 = sphi 0, %s38
    %s39 = sphi 0, %s36
    %s40 = sphi 0, %s39
    %s56 = sphi 0, %s40
    %s64 = sphi 0, %s66
    %s67 = sphi 0, %s64
    %s68 = sphi 0, %s67
    %s84 = sphi 0, %s68
    %s88 = sphi 0, %s88
    %s90 = sphi 0, %s88
    %s91 = sphi 0, %s90
    %s105 = sphi 0, %s91
    %s109 = sphi 0, %s109
    %s111 = sphi 0, %s109
    %s112 = sphi 0, %s111
    %s126 = sphi 0, %s112
    %s132 = sphi 0, %s134
    %s135 = sphi 0, %s132
    %s136 = sphi 0, %s135
    %s152 = sphi 0, %s136
    %s158 = sphi 0, %s160
    %s161 = sphi 0, %s158
    %s162 = sphi 0, %s161
    %s178 = sphi 0, %s162
    %s186 = sphi 0, %s188
    %s189 = sphi 0, %s186
    %s190 = sphi 0, %s189
    %s206 = sphi 0, %s190
  $region4: #{rpp_atten_forward.7} parent=0 // loop_header_branch
    %15 = sbr.rel (%p13) target = $region8
  $region5: #{rpp_atten_forward.7} parent=0 // loop_body
    %s17 = ssub.s32 %s12, 1
    %s18 = ssub.s32 %s12, 2
    %s25 = sadd.s32 1, %s20
    %p26 = scmp.ge.s32.totalorder %s25, 1
    %s27 = scalar_select %p26, 0, %s25
    %s28 = sadd.s32 1, %s19
    %s29 = scalar_select %p26, %s28, %s19
    %p30 = scmp.ge.s32.totalorder %s29, 2
    %s31 = scalar_select %p30, 0, %s29
    %s32 = ssub.s32 %s19, %s31
    %s33 = ssub.s32 %s20, %s27
    %s34 = sor.u32 %s32, %s33
    %p35 = scmp.eq.s32.totalorder %s34, 0
    %s37 = sadd.s32 %s36, 1
    %s38 = scalar_select %p35, %s36, %s37
    %p41 = pneg %p35
    %p42 = scmp.eq.s32.totalorder %s12, 1
    %p43 = por %p41, %p42
    %p44 = scmp.ne.s32.totalorder %s36, %s39
    %p45 = scmp.eq.s32.totalorder %s12, 0
    %p46 = por %p44, %p45
    %p47 = scmp.ne.s32.totalorder %s36, %s39
    %p48 = scmp.eq.s32.totalorder %s17, 1
    %p49 = por %p47, %p48
    %p50 = scmp.ne.s32.totalorder %s39, %s40
    %p51 = scmp.eq.s32.totalorder %s17, 0
    %p52 = por %p50, %p51
    %p53 = scmp.ne.s32.totalorder %s39, %s40
    %p54 = scmp.eq.s32.totalorder %s18, 1
    %p55 = por %p53, %p54
    %p57 = scmp.ne.s32.totalorder %s40, %s56
    %p58 = scmp.eq.s32.totalorder %s18, 0
    %p59 = por %p57, %p58
    %s60 = ssub.s32 %s19, %s31
    %s61 = ssub.s32 %s20, %s27
    %s62 = sor.u32 %s60, %s61
    %p63 = scmp.eq.s32.totalorder %s62, 0
    %s65 = sadd.s32 %s64, 1
    %s66 = scalar_select %p63, %s64, %s65
    %p69 = pneg %p63
    %p70 = scmp.eq.s32.totalorder %s12, 1
    %p71 = por %p69, %p70
    %p72 = scmp.ne.s32.totalorder %s64, %s67
    %p73 = scmp.eq.s32.totalorder %s12, 0
    %p74 = por %p72, %p73
    %p75 = scmp.ne.s32.totalorder %s64, %s67
    %p76 = scmp.eq.s32.totalorder %s17, 1
    %p77 = por %p75, %p76
    %p78 = scmp.ne.s32.totalorder %s67, %s68
    %p79 = scmp.eq.s32.totalorder %s17, 0
    %p80 = por %p78, %p79
    %p81 = scmp.ne.s32.totalorder %s67, %s68
    %p82 = scmp.eq.s32.totalorder %s18, 1
    %p83 = por %p81, %p82
    %p85 = scmp.ne.s32.totalorder %s68, %s84
    %p86 = scmp.eq.s32.totalorder %s18, 0
    %p87 = por %p85, %p86
    %s89 = sadd.s32 %s88, 1
    %p92 = scmp.eq.s32.totalorder %s12, 1
    %p93 = scmp.ne.s32.totalorder %s88, %s90
    %p94 = scmp.eq.s32.totalorder %s12, 0
    %p95 = por %p93, %p94
    %p96 = scmp.ne.s32.totalorder %s88, %s90
    %p97 = scmp.eq.s32.totalorder %s17, 1
    %p98 = por %p96, %p97
    %p99 = scmp.ne.s32.totalorder %s90, %s91
    %p100 = scmp.eq.s32.totalorder %s17, 0
    %p101 = por %p99, %p100
    %p102 = scmp.ne.s32.totalorder %s90, %s91
    %p103 = scmp.eq.s32.totalorder %s18, 1
    %p104 = por %p102, %p103
    %p106 = scmp.ne.s32.totalorder %s91, %s105
    %p107 = scmp.eq.s32.totalorder %s18, 0
    %p108 = por %p106, %p107
    %s110 = sadd.s32 %s109, 1
    %p113 = scmp.eq.s32.totalorder %s12, 1
    %p114 = scmp.ne.s32.totalorder %s109, %s111
    %p115 = scmp.eq.s32.totalorder %s12, 0
    %p116 = por %p114, %p115
    %p117 = scmp.ne.s32.totalorder %s109, %s111
    %p118 = scmp.eq.s32.totalorder %s17, 1
    %p119 = por %p117, %p118
    %p120 = scmp.ne.s32.totalorder %s111, %s112
    %p121 = scmp.eq.s32.totalorder %s17, 0
    %p122 = por %p120, %p121
    %p123 = scmp.ne.s32.totalorder %s111, %s112
    %p124 = scmp.eq.s32.totalorder %s18, 1
    %p125 = por %p123, %p124
    %p127 = scmp.ne.s32.totalorder %s112, %s126
    %p128 = scmp.eq.s32.totalorder %s18, 0
    %p129 = por %p127, %p128
    %s130 = ssub.s32 %s19, %s31
    %p131 = scmp.eq.s32.totalorder %s130, 0
    %s133 = sadd.s32 %s132, 1
    %s134 = scalar_select %p131, %s132, %s133
    %p137 = pneg %p131
    %p138 = scmp.eq.s32.totalorder %s12, 1
    %p139 = por %p137, %p138
    %p140 = scmp.ne.s32.totalorder %s132, %s135
    %p141 = scmp.eq.s32.totalorder %s12, 0
    %p142 = por %p140, %p141
    %p143 = scmp.ne.s32.totalorder %s132, %s135
    %p144 = scmp.eq.s32.totalorder %s17, 1
    %p145 = por %p143, %p144
    %p146 = scmp.ne.s32.totalorder %s135, %s136
    %p147 = scmp.eq.s32.totalorder %s17, 0
    %p148 = por %p146, %p147
    %p149 = scmp.ne.s32.totalorder %s135, %s136
    %p150 = scmp.eq.s32.totalorder %s18, 1
    %p151 = por %p149, %p150
    %p153 = scmp.ne.s32.totalorder %s136, %s152
    %p154 = scmp.eq.s32.totalorder %s18, 0
    %p155 = por %p153, %p154
    %s156 = ssub.s32 %s19, %s31
    %p157 = scmp.eq.s32.totalorder %s156, 0
    %s159 = sadd.s32 %s158, 1
    %s160 = scalar_select %p157, %s158, %s159
    %p163 = pneg %p157
    %p164 = scmp.eq.s32.totalorder %s12, 1
    %p165 = por %p163, %p164
    %p166 = scmp.ne.s32.totalorder %s158, %s161
    %p167 = scmp.eq.s32.totalorder %s12, 0
    %p168 = por %p166, %p167
    %p169 = scmp.ne.s32.totalorder %s158, %s161
    %p170 = scmp.eq.s32.totalorder %s17, 1
    %p171 = por %p169, %p170
    %p172 = scmp.ne.s32.totalorder %s161, %s162
    %p173 = scmp.eq.s32.totalorder %s17, 0
    %p174 = por %p172, %p173
    %p175 = scmp.ne.s32.totalorder %s161, %s162
    %p176 = scmp.eq.s32.totalorder %s18, 1
    %p177 = por %p175, %p176
    %p179 = scmp.ne.s32.totalorder %s162, %s178
    %p180 = scmp.eq.s32.totalorder %s18, 0
    %p181 = por %p179, %p180
    %s182 = ssub.s32 %s19, %s31
    %s183 = ssub.s32 %s20, %s27
    %s184 = sor.u32 %s182, %s183
    %p185 = scmp.eq.s32.totalorder %s184, 0
    %s187 = sadd.s32 %s186, 1
    %s188 = scalar_select %p185, %s186, %s187
    %p191 = pneg %p185
    %p192 = scmp.eq.s32.totalorder %s12, 1
    %p193 = por %p191, %p192
    %p194 = scmp.ne.s32.totalorder %s186, %s189
    %p195 = scmp.eq.s32.totalorder %s12, 0
    %p196 = por %p194, %p195
    %p197 = scmp.ne.s32.totalorder %s186, %s189
    %p198 = scmp.eq.s32.totalorder %s17, 1
    %p199 = por %p197, %p198
    %p200 = scmp.ne.s32.totalorder %s189, %s190
    %p201 = scmp.eq.s32.totalorder %s17, 0
    %p202 = por %p200, %p201
    %p203 = scmp.ne.s32.totalorder %s189, %s190
    %p204 = scmp.eq.s32.totalorder %s18, 1
    %p205 = por %p203, %p204
    %p207 = scmp.ne.s32.totalorder %s190, %s206
    %p208 = scmp.eq.s32.totalorder %s18, 0
    %p209 = por %p207, %p208
    %p210 = scmp.le.s32.totalorder 1, %s12
    %p211 = scmp.lt.s32.totalorder %s12, 3
    %p212 = pnand %p210, %p211
    %p213 = pneg %p212
    // Predicated region
    $region9: #{rpp_atten_forward.7} parent=5 // pred_check
      _
    $region10: #{rpp_atten_forward.7} parent=5 // pred_check_branch
      %215 = sbr.rel (%p212) target = $region12
    $region11: #{rpp_atten_forward.7} parent=5 // pred_region
      %s216 = ssub.s32 %s12, 1
      // Predicated region
      $region13: #{rpp_atten_forward.7} parent=11 // pred_check
        %p217 = pneg %p101
      $region14: #{rpp_atten_forward.7} parent=11 // pred_check_branch
        %219 = sbr.rel (%p217) target = $region16
      $region15: #{rpp_atten_forward.7} parent=11 // pred_region
        _
      $region16: #{rpp_atten_forward.7} parent=11 // pred_fallthru
        _
      // Predicated region
      $region17: #{rpp_atten_forward.7} parent=11 // pred_check
        %p220 = pneg %p122
      $region18: #{rpp_atten_forward.7} parent=11 // pred_check_branch
        %222 = sbr.rel (%p220) target = $region20
      $region19: #{rpp_atten_forward.7} parent=11 // pred_region
        _
      $region20: #{rpp_atten_forward.7} parent=11 // pred_fallthru
        _
    $region12: #{rpp_atten_forward.7} parent=5 // pred_fallthru
      _
    %p223 = scmp.lt.s32.totalorder %s12, 2
    // Predicated region
    $region21: #{rpp_atten_forward.7} parent=5 // pred_check
      %p224 = pneg %p223
    $region22: #{rpp_atten_forward.7} parent=5 // pred_check_branch
      %226 = sbr.rel (%p224) target = $region24
    $region23: #{rpp_atten_forward.7} parent=5 // pred_region
      // Predicated region
      $region25: #{rpp_atten_forward.7} parent=23 // pred_check
        %p227 = pneg %p46
      $region26: #{rpp_atten_forward.7} parent=23 // pred_check_branch
        %229 = sbr.rel (%p227) target = $region28
      $region27: #{rpp_atten_forward.7} parent=23 // pred_region
        %s230 = smul.u32 6, %s20
        %p231 = scmp.lt.s32.totalorder %s19, 1
        %s232 = scalar_select %p231, %s19, 1
        %p233 = scmp.lt.s32.totalorder %s230, 5
        %s234 = scalar_select %p233, %s230, 5
        %s235 = smul.addr %s232, 6
        %s236 = sadd.s32 %s234, %s235
        %s237 = smul.addr %s236, 8
        %s238 = scalar_lea.vmem %s0, %s237
        %s239 = smul.u32 6, %s20
      $region28: #{rpp_atten_forward.7} parent=23 // pred_fallthru
        _
      // Predicated region
      $region29: #{rpp_atten_forward.7} parent=23 // pred_check
        %p240 = pneg %p74
      $region30: #{rpp_atten_forward.7} parent=23 // pred_check_branch
        %242 = sbr.rel (%p240) target = $region32
      $region31: #{rpp_atten_forward.7} parent=23 // pred_region
        %s243 = smul.u32 6, %s20
        %p244 = scmp.lt.s32.totalorder %s19, 1
        %s245 = scalar_select %p244, %s19, 1
        %p246 = scmp.lt.s32.totalorder %s243, 5
        %s247 = scalar_select %p246, %s243, 5
        %s248 = smul.addr %s245, 6
        %s249 = sadd.s32 %s247, %s248
        %s250 = smul.addr %s249, 8
        %s251 = scalar_lea.vmem %s1, %s250
        %s252 = smul.u32 6, %s20
      $region32: #{rpp_atten_forward.7} parent=23 // pred_fallthru
        _
      // Predicated region
      $region33: #{rpp_atten_forward.7} parent=23 // pred_check
        %p253 = pneg %p142
      $region34: #{rpp_atten_forward.7} parent=23 // pred_check_branch
        %255 = sbr.rel (%p253) target = $region36
      $region35: #{rpp_atten_forward.7} parent=23 // pred_region
        %p256 = scmp.lt.s32.totalorder %s19, 1
        %s257 = scalar_select %p256, %s19, 1
        %s258 = scalar_lea.vmem %s4, %s257
      $region36: #{rpp_atten_forward.7} parent=23 // pred_fallthru
        _
      // Predicated region
      $region37: #{rpp_atten_forward.7} parent=23 // pred_check
        %p259 = pneg %p168
      $region38: #{rpp_atten_forward.7} parent=23 // pred_check_branch
        %261 = sbr.rel (%p259) target = $region40
      $region39: #{rpp_atten_forward.7} parent=23 // pred_region
        %p262 = scmp.lt.s32.totalorder %s19, 1
        %s263 = scalar_select %p262, %s19, 1
        %s264 = scalar_lea.vmem %s5, %s263
      $region40: #{rpp_atten_forward.7} parent=23 // pred_fallthru
        _
    $region24: #{rpp_atten_forward.7} parent=5 // pred_fallthru
      _
    %p265 = scmp.le.s32.totalorder 1, %s12
    %p266 = scmp.lt.s32.totalorder %s12, 3
    %p267 = pnand %p265, %p266
    %p268 = pneg %p267
    // Predicated region
    $region41: #{rpp_atten_forward.7} parent=5 // pred_check
      _
    $region42: #{rpp_atten_forward.7} parent=5 // pred_check_branch
      %270 = sbr.rel (%p267) target = $region44
    $region43: #{rpp_atten_forward.7} parent=5 // pred_region
      %s271 = ssub.s32 %s12, 1
      %s272 = smul.u32 6, %s22
      %p273 = scmp.lt.s32.totalorder %s21, 1
      %s274 = scalar_select %p273, %s21, 1
      %p275 = scmp.lt.s32.totalorder %s272, 5
      %s276 = scalar_select %p275, %s272, 5
      %s277 = smul.addr %s274, 6
      %s278 = sadd.s32 %s276, %s277
      %s279 = smul.addr %s278, 8
      %s280 = scalar_lea.vmem %s0, %s279
      %p281 = pneg %p52
      %p282 = pneg %p49
      %s283 = smul.u32 6, %s22
      %p284 = scmp.lt.s32.totalorder %s21, 1
      %s285 = scalar_select %p284, %s21, 1
      %p286 = scmp.lt.s32.totalorder %s283, 5
      %s287 = scalar_select %p286, %s283, 5
      %s288 = smul.addr %s285, 6
      %s289 = sadd.s32 %s287, %s288
      %s290 = smul.addr %s289, 8
      %s291 = scalar_lea.vmem %s1, %s290
      %p292 = pneg %p80
      %p293 = pneg %p77
      %p294 = pneg %p101
      %p295 = pneg %p98
      %p296 = pneg %p122
      %p297 = pneg %p119
      %p298 = scmp.lt.s32.totalorder %s21, 1
      %s299 = scalar_select %p298, %s21, 1
      %s300 = scalar_lea.vmem %s4, %s299
      %p301 = pneg %p148
      %p302 = pneg %p145
      %p303 = scmp.lt.s32.totalorder %s21, 1
      %s304 = scalar_select %p303, %s21, 1
      %s305 = scalar_lea.vmem %s5, %s304
      %p306 = pneg %p174
      %p307 = pneg %p171
      %p308 = pneg %p202
      %p309 = pneg %p199
      %s310 = smul.u32 6, %s22
      %p311 = scmp.lt.s32.totalorder %s21, 1
      %s312 = scalar_select %p311, %s21, 1
      %p313 = scmp.lt.s32.totalorder %s310, 5
      %s314 = scalar_select %p313, %s310, 5
      %s315 = smul.addr %s312, 6
      %s316 = sadd.s32 %s314, %s315
      %s317 = smul.addr %s316, 4
      %s318 = scalar_lea.vmem %s6, %s317
      %s319 = smul.u32 6, %s22
      %p320 = scmp.lt.s32.totalorder %s21, 1
      %s321 = scalar_select %p320, %s21, 1
      %p322 = scmp.lt.s32.totalorder %s319, 5
      %s323 = scalar_select %p322, %s319, 5
      %s324 = smul.addr %s321, 6
      %s325 = sadd.s32 %s323, %s324
      %s326 = smul.addr %s325, 8
      %s327 = scalar_lea.vmem %s0, %s326
      %s328 = smul.u32 6, %s22
      %s329 = smul.u32 6, %s22
      %p330 = scmp.lt.s32.totalorder %s21, 1
      %s331 = scalar_select %p330, %s21, 1
      %p332 = scmp.lt.s32.totalorder %s329, 5
      %s333 = scalar_select %p332, %s329, 5
      %s334 = smul.addr %s331, 6
      %s335 = sadd.s32 %s333, %s334
      %s336 = smul.addr %s335, 8
      %s337 = scalar_lea.vmem %s1, %s336
      %s338 = smul.u32 6, %s22
      %p339 = scmp.lt.s32.totalorder %s21, 1
      %s340 = scalar_select %p339, %s21, 1
      %s341 = scalar_lea.vmem %s4, %s340
      %p342 = scmp.lt.s32.totalorder %s21, 1
      %s343 = scalar_select %p342, %s21, 1
      %s344 = scalar_lea.vmem %s5, %s343
      %s345 = smul.u32 6, %s22
      %p346 = scmp.lt.s32.totalorder %s21, 1
      %s347 = scalar_select %p346, %s21, 1
      %p348 = scmp.lt.s32.totalorder %s345, 5
      %s349 = scalar_select %p348, %s345, 5
      %s350 = smul.addr %s347, 6
      %s351 = sadd.s32 %s349, %s350
      %s352 = smul.addr %s351, 4
      %s353 = scalar_lea.vmem %s6, %s352
      %s354 = smul.u32 6, %s22
      %v355 = vld [vmem:[%s327] sm:$0xff]
      %v356 = vld [vmem:[%s327 + $0x8] sm:$0xff]
      %v357 = vld [vmem:[%s327 + $0x10] sm:$0xff]
      %v358 = vld [vmem:[%s327 + $0x18] sm:$0xff]
      %v359 = vld [vmem:[%s327 + $0x20] sm:$0xff]
      %v360 = vld [vmem:[%s327 + $0x28] sm:$0xff]
      %v361 = vld [vmem:[%s2] sm:$0x7]
      %363 = vset.pattern.permute.xlu0 0
      %364 = vperm.xlu0 %363, %v355
      %v365 = vpop.permute.xlu0 %364
      %368 = vset.pattern.permute.xlu0 0
      %369 = vperm.xlu0 %368, %v356
      %v370 = vpop.permute.xlu0 %369
      %373 = vset.pattern.permute.xlu0 0
      %374 = vperm.xlu0 %373, %v357
      %v375 = vpop.permute.xlu0 %374
      %378 = vset.pattern.permute.xlu0 0
      %379 = vperm.xlu0 %378, %v358
      %v380 = vpop.permute.xlu0 %379
      %383 = vset.pattern.permute.xlu0 0
      %384 = vperm.xlu0 %383, %v359
      %v385 = vpop.permute.xlu0 %384
      %388 = vset.pattern.permute.xlu0 0
      %389 = vperm.xlu0 %388, %v360
      %v390 = vpop.permute.xlu0 %389
      %v392 = vlaneseq
      %v393 = vshrl.u32 %v392, 7
      %v394 = vsub.s32 0, %v393
      %v395 = vrot.slane %v361, %v394
      %v396 = vmul.f32 %v365, %v395
      %v397 = vmul.f32 %v370, %v395
      %v398 = vmul.f32 %v375, %v395
      %v399 = vmul.f32 %v380, %v395
      %v400 = vmul.f32 %v385, %v395
      %v401 = vmul.f32 %v390, %v395
      %402 = vset.pattern.permute.xlu0 1
      %403 = vperm.xlu0 %402, %v355
      %v404 = vpop.permute.xlu0 %403
      %406 = vset.pattern.permute.xlu0 1
      %407 = vperm.xlu0 %406, %v356
      %v408 = vpop.permute.xlu0 %407
      %410 = vset.pattern.permute.xlu0 1
      %411 = vperm.xlu0 %410, %v357
      %v412 = vpop.permute.xlu0 %411
      %414 = vset.pattern.permute.xlu0 1
      %415 = vperm.xlu0 %414, %v358
      %v416 = vpop.permute.xlu0 %415
      %418 = vset.pattern.permute.xlu0 1
      %419 = vperm.xlu0 %418, %v359
      %v420 = vpop.permute.xlu0 %419
      %422 = vset.pattern.permute.xlu0 1
      %423 = vperm.xlu0 %422, %v360
      %v424 = vpop.permute.xlu0 %423
      %v426 = vlaneseq
      %v427 = vshrl.u32 %v426, 7
      %v428 = vsub.s32 1, %v427
      %v429 = vrot.slane %v361, %v428
      %v430 = vmul.f32 %v404, %v429
      %v431 = vmul.f32 %v408, %v429
      %v432 = vmul.f32 %v412, %v429
      %v433 = vmul.f32 %v416, %v429
      %v434 = vmul.f32 %v420, %v429
      %v435 = vmul.f32 %v424, %v429
      %v436 = vadd.f32 %v396, %v430
      %v437 = vadd.f32 %v397, %v431
      %v438 = vadd.f32 %v398, %v432
      %v439 = vadd.f32 %v399, %v433
      %v440 = vadd.f32 %v400, %v434
      %v441 = vadd.f32 %v401, %v435
      %442 = vset.pattern.permute.xlu0 2
      %443 = vperm.xlu0 %442, %v355
      %v444 = vpop.permute.xlu0 %443
      %446 = vset.pattern.permute.xlu0 2
      %447 = vperm.xlu0 %446, %v356
      %v448 = vpop.permute.xlu0 %447
      %450 = vset.pattern.permute.xlu0 2
      %451 = vperm.xlu0 %450, %v357
      %v452 = vpop.permute.xlu0 %451
      %454 = vset.pattern.permute.xlu0 2
      %455 = vperm.xlu0 %454, %v358
      %v456 = vpop.permute.xlu0 %455
      %458 = vset.pattern.permute.xlu0 2
      %459 = vperm.xlu0 %458, %v359
      %v460 = vpop.permute.xlu0 %459
      %462 = vset.pattern.permute.xlu0 2
      %463 = vperm.xlu0 %462, %v360
      %v464 = vpop.permute.xlu0 %463
      %v466 = vlaneseq
      %v467 = vshrl.u32 %v466, 7
      %v468 = vsub.s32 2, %v467
      %v469 = vrot.slane %v361, %v468
      %v470 = vmul.f32 %v444, %v469
      %v471 = vmul.f32 %v448, %v469
      %v472 = vmul.f32 %v452, %v469
      %v473 = vmul.f32 %v456, %v469
      %v474 = vmul.f32 %v460, %v469
      %v475 = vmul.f32 %v464, %v469
      %v476 = vadd.f32 %v436, %v470
      %v477 = vadd.f32 %v437, %v471
      %v478 = vadd.f32 %v438, %v472
      %v479 = vadd.f32 %v439, %v473
      %v480 = vadd.f32 %v440, %v474
      %v481 = vadd.f32 %v441, %v475
      %v482 = vld [vmem:[%s3] sm:$0x1]
      %v484 = vlaneseq
      %v485 = vshrl.u32 %v484, 7
      %v486 = vsub.s32 0, %v485
      %v487 = vrot.slane %v482, %v486
      %v489 = vadd.f32 %v476, %v487
      %v490 = vadd.f32 %v477, %v487
      %v491 = vadd.f32 %v478, %v487
      %v492 = vadd.f32 %v479, %v487
      %v493 = vadd.f32 %v480, %v487
      %v494 = vadd.f32 %v481, %v487
      %v495 = vld [vmem:[%s341] sm:$0x1]
      %v497 = vlaneseq
      %v498 = vshrl.u32 %v497, 7
      %v499 = vsub.s32 0, %v498
      %v500 = vrot.slane %v495, %v499
      %v502 = vmul.f32 %v489, %v500
      %v503 = vmul.f32 %v490, %v500
      %v504 = vmul.f32 %v491, %v500
      %v505 = vmul.f32 %v492, %v500
      %v506 = vmul.f32 %v493, %v500
      %v507 = vmul.f32 %v494, %v500
      %v508 = vld [vmem:[%s344] sm:$0x1]
      %v510 = vlaneseq
      %v511 = vshrl.u32 %v510, 7
      %v512 = vsub.s32 0, %v511
      %v513 = vrot.slane %v508, %v512
      %v515 = vadd.f32 %v502, %v513
      %v516 = vadd.f32 %v503, %v513
      %v517 = vadd.f32 %v504, %v513
      %v518 = vadd.f32 %v505, %v513
      %v519 = vadd.f32 %v506, %v513
      %v520 = vadd.f32 %v507, %v513
      %vm521 = vcmp.gt.f32.partialorder %v515, 0.0
      %vm522 = vcmp.gt.f32.partialorder %v516, 0.0
      %vm523 = vcmp.gt.f32.partialorder %v517, 0.0
      %vm524 = vcmp.gt.f32.partialorder %v518, 0.0
      %vm525 = vcmp.gt.f32.partialorder %v519, 0.0
      %vm526 = vcmp.gt.f32.partialorder %v520, 0.0
      %v527 = vmul.f32 %v515, 0.1
      %v528 = vmul.f32 %v516, 0.1
      %v529 = vmul.f32 %v517, 0.1
      %v530 = vmul.f32 %v518, 0.1
      %v531 = vmul.f32 %v519, 0.1
      %v532 = vmul.f32 %v520, 0.1
      %v533 = vsel %vm521, %v515, %v527
      %v534 = vsel %vm522, %v516, %v528
      %v535 = vsel %vm523, %v517, %v529
      %v536 = vsel %vm524, %v518, %v530
      %v537 = vsel %vm525, %v519, %v531
      %v538 = vsel %vm526, %v520, %v532
      %v539 = vld [vmem:[%s337] sm:$0xff]
      %v540 = vld [vmem:[%s337 + $0x8] sm:$0xff]
      %v541 = vld [vmem:[%s337 + $0x10] sm:$0xff]
      %v542 = vld [vmem:[%s337 + $0x18] sm:$0xff]
      %v543 = vld [vmem:[%s337 + $0x20] sm:$0xff]
      %v544 = vld [vmem:[%s337 + $0x28] sm:$0xff]
      %v545 = vadd.f32 %v539, %v533
      %v546 = vadd.f32 %v540, %v534
      %v547 = vadd.f32 %v541, %v535
      %v548 = vadd.f32 %v542, %v536
      %v549 = vadd.f32 %v543, %v537
      %v550 = vadd.f32 %v544, %v538
      %v551 = vpack.c.bf16 %v546, %v545
      %v552 = vpack.c.bf16 %v548, %v547
      %v553 = vpack.c.bf16 %v550, %v549
      %v557 = vunpack.c.l.b16 %v551
      %v558 = vunpack.c.h.b16 %v551
      %v559 = vunpack.c.l.b16 %v552
      %v560 = vunpack.c.h.b16 %v552
      %v561 = vunpack.c.l.b16 %v553
      %v562 = vunpack.c.h.b16 %v553
      %v563 = vpack.c.b16 %v557, %v557
      %v564 = vpack.c.b16 %v558, %v558
      %v565 = vpack.c.b16 %v559, %v559
      %v566 = vpack.c.b16 %v560, %v560
      %v567 = vpack.c.b16 %v561, %v561
      %v568 = vpack.c.b16 %v562, %v562
      %vm575 = vcmask 257024
      %576 = vst.msk [vmem:[%s353] sm:$0xf] %vm575, %v563
      %577 = vst.msk [vmem:[%s353 + $0x4] sm:$0xf] %vm575, %v564
      %578 = vst.msk [vmem:[%s353 + $0x8] sm:$0xf] %vm575, %v565
      %579 = vst.msk [vmem:[%s353 + $0xc] sm:$0xf] %vm575, %v566
      %580 = vst.msk [vmem:[%s353 + $0x10] sm:$0xf] %vm575, %v567
      %581 = vst.msk [vmem:[%s353 + $0x14] sm:$0xf] %vm575, %v568
      %s582 = smul.u32 6, %s22
      %p583 = scmp.lt.s32.totalorder %s21, 1
      %s584 = scalar_select %p583, %s21, 1
      %p585 = scmp.lt.s32.totalorder %s582, 5
      %s586 = scalar_select %p585, %s582, 5
      %s587 = smul.addr %s584, 6
      %s588 = sadd.s32 %s586, %s587
      %s589 = smul.addr %s588, 4
      %s590 = scalar_lea.vmem %s6, %s589
      // Predicated region
      $region45: #{rpp_atten_forward.7} parent=43 // pred_check
        %p591 = pneg %p199
      $region46: #{rpp_atten_forward.7} parent=43 // pred_check_branch
        %593 = sbr.rel (%p591) target = $region48
      $region47: #{rpp_atten_forward.7} parent=43 // pred_region
        %s594 = smul.u32 6, %s22
      $region48: #{rpp_atten_forward.7} parent=43 // pred_fallthru
        _
    $region44: #{rpp_atten_forward.7} parent=5 // pred_fallthru
      _
    %p595 = scmp.le.s32.totalorder 2, %s12
    // Predicated region
    $region49: #{rpp_atten_forward.7} parent=5 // pred_check
      %p596 = pneg %p595
    $region50: #{rpp_atten_forward.7} parent=5 // pred_check_branch
      %598 = sbr.rel (%p596) target = $region52
    $region51: #{rpp_atten_forward.7} parent=5 // pred_region
      %s599 = ssub.s32 %s12, 2
      // Predicated region
      $region53: #{rpp_atten_forward.7} parent=51 // pred_check
        %p600 = pneg %p205
      $region54: #{rpp_atten_forward.7} parent=51 // pred_check_branch
        %602 = sbr.rel (%p600) target = $region56
      $region55: #{rpp_atten_forward.7} parent=51 // pred_region
        %s603 = smul.u32 6, %s24
        %p604 = scmp.lt.s32.totalorder %s23, 1
        %s605 = scalar_select %p604, %s23, 1
        %p606 = scmp.lt.s32.totalorder %s603, 5
        %s607 = scalar_select %p606, %s603, 5
        %s608 = smul.addr %s605, 6
        %s609 = sadd.s32 %s607, %s608
        %s610 = smul.addr %s609, 4
        %s611 = scalar_lea.vmem %s6, %s610
      $region56: #{rpp_atten_forward.7} parent=51 // pred_fallthru
        _
    $region52: #{rpp_atten_forward.7} parent=5 // pred_fallthru
      _
  $region6: #{rpp_atten_forward.7} parent=0 // loop_footer
    %s16 = sadd.s32 1, %s12
  $region7: #{rpp_atten_forward.7} parent=0 // loop_footer_branch
    %11 = sbr.rel target = $region3
  $region8: #{rpp_atten_forward.7} parent=0 // loop_exit
    _

// kernel: rpp_atten_forward.11
$region0: #{rpp_atten_forward.11}
  #allocation0 [shape = 'u32[]', space=smem, size = 0x4, offset = 0x4, fixed_abs, tag = 'smem constant byte address 0x4 - core index']
  #allocation1 [shape = 'u32[144,128]{1,0:T(1,128)}', space=vmem, size = 0x12000, scoped, tag = 'internal scratch']
  %s0 = inlined_call_operand.vmem [shape: bf16[2,48,32], index: 0, kind: input, shape index: {}]
  %s1 = inlined_call_operand.vmem [shape: f32[2,1,32], index: 1, kind: input, shape index: {}]
  %s2 = inlined_call_operand.vmem [shape: f32[2,1,32], index: 2, kind: input, shape index: {}]
  %s3 = inlined_call_operand.vmem [shape: f32[2,48,32], index: 3, kind: output, shape index: {}]
  %s4 = sld [smem:[#allocation0]]
  $region45: #{rpp_atten_forward.11} parent=0
    _
  %s6 = ssub.s32 1, %s4
  %s7 = scalar_select 0, %s6, %s4
  loop: start=0, step=1, limit=4
  $region2: #{rpp_atten_forward.11} parent=0 // loop_pre_header
    _
  $region3: #{rpp_atten_forward.11} parent=0 // loop_header
    %s9 = sphi 0, %s13
    %p10 = scmp.ge.s32.totalorder %s9, 4
    %s16 = sphi 0, %s28
    %s17 = sphi 0, %s24
    %s18 = sphi 0, %s16
    %s19 = sphi 0, %s17
    %s20 = sphi 0, %s18
    %s21 = sphi 0, %s19
    %s33 = sphi 0, %s35
    %s36 = sphi 0, %s33
    %s37 = sphi 0, %s36
    %s53 = sphi 0, %s37
    %s59 = sphi 0, %s61
    %s62 = sphi 0, %s59
    %s63 = sphi 0, %s62
    %s79 = sphi 0, %s63
    %s85 = sphi 0, %s87
    %s88 = sphi 0, %s85
    %s89 = sphi 0, %s88
    %s105 = sphi 0, %s89
    %s113 = sphi 0, %s115
    %s116 = sphi 0, %s113
    %s117 = sphi 0, %s116
    %s133 = sphi 0, %s117
  $region4: #{rpp_atten_forward.11} parent=0 // loop_header_branch
    %12 = sbr.rel (%p10) target = $region8
  $region5: #{rpp_atten_forward.11} parent=0 // loop_body
    %s14 = ssub.s32 %s9, 1
    %s15 = ssub.s32 %s9, 2
    %s22 = sadd.s32 1, %s17
    %p23 = scmp.ge.s32.totalorder %s22, 1
    %s24 = scalar_select %p23, 0, %s22
    %s25 = sadd.s32 1, %s16
    %s26 = scalar_select %p23, %s25, %s16
    %p27 = scmp.ge.s32.totalorder %s26, 2
    %s28 = scalar_select %p27, 0, %s26
    %s29 = ssub.s32 %s16, %s28
    %s30 = ssub.s32 %s17, %s24
    %s31 = sor.u32 %s29, %s30
    %p32 = scmp.eq.s32.totalorder %s31, 0
    %s34 = sadd.s32 %s33, 1
    %s35 = scalar_select %p32, %s33, %s34
    %p38 = pneg %p32
    %p39 = scmp.eq.s32.totalorder %s9, 1
    %p40 = por %p38, %p39
    %p41 = scmp.ne.s32.totalorder %s33, %s36
    %p42 = scmp.eq.s32.totalorder %s9, 0
    %p43 = por %p41, %p42
    %p44 = scmp.ne.s32.totalorder %s33, %s36
    %p45 = scmp.eq.s32.totalorder %s14, 1
    %p46 = por %p44, %p45
    %p47 = scmp.ne.s32.totalorder %s36, %s37
    %p48 = scmp.eq.s32.totalorder %s14, 0
    %p49 = por %p47, %p48
    %p50 = scmp.ne.s32.totalorder %s36, %s37
    %p51 = scmp.eq.s32.totalorder %s15, 1
    %p52 = por %p50, %p51
    %p54 = scmp.ne.s32.totalorder %s37, %s53
    %p55 = scmp.eq.s32.totalorder %s15, 0
    %p56 = por %p54, %p55
    %s57 = ssub.s32 %s16, %s28
    %p58 = scmp.eq.s32.totalorder %s57, 0
    %s60 = sadd.s32 %s59, 1
    %s61 = scalar_select %p58, %s59, %s60
    %p64 = pneg %p58
    %p65 = scmp.eq.s32.totalorder %s9, 1
    %p66 = por %p64, %p65
    %p67 = scmp.ne.s32.totalorder %s59, %s62
    %p68 = scmp.eq.s32.totalorder %s9, 0
    %p69 = por %p67, %p68
    %p70 = scmp.ne.s32.totalorder %s59, %s62
    %p71 = scmp.eq.s32.totalorder %s14, 1
    %p72 = por %p70, %p71
    %p73 = scmp.ne.s32.totalorder %s62, %s63
    %p74 = scmp.eq.s32.totalorder %s14, 0
    %p75 = por %p73, %p74
    %p76 = scmp.ne.s32.totalorder %s62, %s63
    %p77 = scmp.eq.s32.totalorder %s15, 1
    %p78 = por %p76, %p77
    %p80 = scmp.ne.s32.totalorder %s63, %s79
    %p81 = scmp.eq.s32.totalorder %s15, 0
    %p82 = por %p80, %p81
    %s83 = ssub.s32 %s16, %s28
    %p84 = scmp.eq.s32.totalorder %s83, 0
    %s86 = sadd.s32 %s85, 1
    %s87 = scalar_select %p84, %s85, %s86
    %p90 = pneg %p84
    %p91 = scmp.eq.s32.totalorder %s9, 1
    %p92 = por %p90, %p91
    %p93 = scmp.ne.s32.totalorder %s85, %s88
    %p94 = scmp.eq.s32.totalorder %s9, 0
    %p95 = por %p93, %p94
    %p96 = scmp.ne.s32.totalorder %s85, %s88
    %p97 = scmp.eq.s32.totalorder %s14, 1
    %p98 = por %p96, %p97
    %p99 = scmp.ne.s32.totalorder %s88, %s89
    %p100 = scmp.eq.s32.totalorder %s14, 0
    %p101 = por %p99, %p100
    %p102 = scmp.ne.s32.totalorder %s88, %s89
    %p103 = scmp.eq.s32.totalorder %s15, 1
    %p104 = por %p102, %p103
    %p106 = scmp.ne.s32.totalorder %s89, %s105
    %p107 = scmp.eq.s32.totalorder %s15, 0
    %p108 = por %p106, %p107
    %s109 = ssub.s32 %s16, %s28
    %s110 = ssub.s32 %s17, %s24
    %s111 = sor.u32 %s109, %s110
    %p112 = scmp.eq.s32.totalorder %s111, 0
    %s114 = sadd.s32 %s113, 1
    %s115 = scalar_select %p112, %s113, %s114
    %p118 = pneg %p112
    %p119 = scmp.eq.s32.totalorder %s9, 1
    %p120 = por %p118, %p119
    %p121 = scmp.ne.s32.totalorder %s113, %s116
    %p122 = scmp.eq.s32.totalorder %s9, 0
    %p123 = por %p121, %p122
    %p124 = scmp.ne.s32.totalorder %s113, %s116
    %p125 = scmp.eq.s32.totalorder %s14, 1
    %p126 = por %p124, %p125
    %p127 = scmp.ne.s32.totalorder %s116, %s117
    %p128 = scmp.eq.s32.totalorder %s14, 0
    %p129 = por %p127, %p128
    %p130 = scmp.ne.s32.totalorder %s116, %s117
    %p131 = scmp.eq.s32.totalorder %s15, 1
    %p132 = por %p130, %p131
    %p134 = scmp.ne.s32.totalorder %s117, %s133
    %p135 = scmp.eq.s32.totalorder %s15, 0
    %p136 = por %p134, %p135
    %p137 = scmp.le.s32.totalorder 1, %s9
    %p138 = scmp.lt.s32.totalorder %s9, 3
    %p139 = pnand %p137, %p138
    %p140 = pneg %p139
    // Predicated region
    $region9: #{rpp_atten_forward.11} parent=5 // pred_check
      _
    $region10: #{rpp_atten_forward.11} parent=5 // pred_check_branch
      %142 = sbr.rel (%p139) target = $region12
    $region11: #{rpp_atten_forward.11} parent=5 // pred_region
      %s143 = ssub.s32 %s9, 1
    $region12: #{rpp_atten_forward.11} parent=5 // pred_fallthru
      _
    %p144 = scmp.lt.s32.totalorder %s9, 2
    // Predicated region
    $region13: #{rpp_atten_forward.11} parent=5 // pred_check
      %p145 = pneg %p144
    $region14: #{rpp_atten_forward.11} parent=5 // pred_check_branch
      %147 = sbr.rel (%p145) target = $region16
    $region15: #{rpp_atten_forward.11} parent=5 // pred_region
      // Predicated region
      $region17: #{rpp_atten_forward.11} parent=15 // pred_check
        %p148 = pneg %p43
      $region18: #{rpp_atten_forward.11} parent=15 // pred_check_branch
        %150 = sbr.rel (%p148) target = $region20
      $region19: #{rpp_atten_forward.11} parent=15 // pred_region
        %s151 = smul.u32 6, %s17
        %p152 = scmp.lt.s32.totalorder %s16, 1
        %s153 = scalar_select %p152, %s16, 1
        %p154 = scmp.lt.s32.totalorder %s151, 5
        %s155 = scalar_select %p154, %s151, 5
        %s156 = smul.addr %s153, 6
        %s157 = sadd.s32 %s155, %s156
        %s158 = smul.addr %s157, 4
        %s159 = scalar_lea.vmem %s0, %s158
        %s160 = smul.u32 6, %s17
      $region20: #{rpp_atten_forward.11} parent=15 // pred_fallthru
        _
      // Predicated region
      $region21: #{rpp_atten_forward.11} parent=15 // pred_check
        %p161 = pneg %p69
      $region22: #{rpp_atten_forward.11} parent=15 // pred_check_branch
        %163 = sbr.rel (%p161) target = $region24
      $region23: #{rpp_atten_forward.11} parent=15 // pred_region
        %p164 = scmp.lt.s32.totalorder %s16, 1
        %s165 = scalar_select %p164, %s16, 1
        %s166 = scalar_lea.vmem %s1, %s165
      $region24: #{rpp_atten_forward.11} parent=15 // pred_fallthru
        _
      // Predicated region
      $region25: #{rpp_atten_forward.11} parent=15 // pred_check
        %p167 = pneg %p95
      $region26: #{rpp_atten_forward.11} parent=15 // pred_check_branch
        %169 = sbr.rel (%p167) target = $region28
      $region27: #{rpp_atten_forward.11} parent=15 // pred_region
        %p170 = scmp.lt.s32.totalorder %s16, 1
        %s171 = scalar_select %p170, %s16, 1
        %s172 = scalar_lea.vmem %s2, %s171
      $region28: #{rpp_atten_forward.11} parent=15 // pred_fallthru
        _
    $region16: #{rpp_atten_forward.11} parent=5 // pred_fallthru
      _
    %p173 = scmp.le.s32.totalorder 1, %s9
    %p174 = scmp.lt.s32.totalorder %s9, 3
    %p175 = pnand %p173, %p174
    %p176 = pneg %p175
    // Predicated region
    $region29: #{rpp_atten_forward.11} parent=5 // pred_check
      _
    $region30: #{rpp_atten_forward.11} parent=5 // pred_check_branch
      %178 = sbr.rel (%p175) target = $region32
    $region31: #{rpp_atten_forward.11} parent=5 // pred_region
      %s179 = ssub.s32 %s9, 1
      %s180 = smul.u32 6, %s19
      %p181 = scmp.lt.s32.totalorder %s18, 1
      %s182 = scalar_select %p181, %s18, 1
      %p183 = scmp.lt.s32.totalorder %s180, 5
      %s184 = scalar_select %p183, %s180, 5
      %s185 = smul.addr %s182, 6
      %s186 = sadd.s32 %s184, %s185
      %s187 = smul.addr %s186, 4
      %s188 = scalar_lea.vmem %s0, %s187
      %p189 = pneg %p49
      %p190 = pneg %p46
      %p191 = scmp.lt.s32.totalorder %s18, 1
      %s192 = scalar_select %p191, %s18, 1
      %s193 = scalar_lea.vmem %s1, %s192
      %p194 = pneg %p75
      %p195 = pneg %p72
      %p196 = scmp.lt.s32.totalorder %s18, 1
      %s197 = scalar_select %p196, %s18, 1
      %s198 = scalar_lea.vmem %s2, %s197
      %p199 = pneg %p101
      %p200 = pneg %p98
      %p201 = pneg %p129
      %p202 = pneg %p126
      %s203 = smul.u32 6, %s19
      %p204 = scmp.lt.s32.totalorder %s18, 1
      %s205 = scalar_select %p204, %s18, 1
      %p206 = scmp.lt.s32.totalorder %s203, 5
      %s207 = scalar_select %p206, %s203, 5
      %s208 = smul.addr %s205, 6
      %s209 = sadd.s32 %s207, %s208
      %s210 = smul.addr %s209, 8
      %s211 = scalar_lea.vmem %s3, %s210
      %s212 = smul.u32 6, %s19
      %p213 = scmp.lt.s32.totalorder %s18, 1
      %s214 = scalar_select %p213, %s18, 1
      %p215 = scmp.lt.s32.totalorder %s212, 5
      %s216 = scalar_select %p215, %s212, 5
      %s217 = smul.addr %s214, 6
      %s218 = sadd.s32 %s216, %s217
      %s219 = smul.addr %s218, 4
      %s220 = scalar_lea.vmem %s0, %s219
      %s221 = smul.u32 6, %s19
      %p222 = scmp.lt.s32.totalorder %s18, 1
      %s223 = scalar_select %p222, %s18, 1
      %s224 = scalar_lea.vmem %s1, %s223
      %p225 = scmp.lt.s32.totalorder %s18, 1
      %s226 = scalar_select %p225, %s18, 1
      %s227 = scalar_lea.vmem %s2, %s226
      %s228 = smul.u32 6, %s19
      %p229 = scmp.lt.s32.totalorder %s18, 1
      %s230 = scalar_select %p229, %s18, 1
      %p231 = scmp.lt.s32.totalorder %s228, 5
      %s232 = scalar_select %p231, %s228, 5
      %s233 = smul.addr %s230, 6
      %s234 = sadd.s32 %s232, %s233
      %s235 = smul.addr %s234, 8
      %s236 = scalar_lea.vmem %s3, %s235
      %s237 = smul.u32 6, %s19
      %v238 = vld [vmem:[%s220] sm:$0xf]
      %v239 = vld [vmem:[%s220 + $0x4] sm:$0xf]
      %v240 = vld [vmem:[%s220 + $0x8] sm:$0xf]
      %v241 = vld [vmem:[%s220 + $0xc] sm:$0xf]
      %v242 = vld [vmem:[%s220 + $0x10] sm:$0xf]
      %v243 = vld [vmem:[%s220 + $0x14] sm:$0xf]
      %v244 = vunpack.c.l.bf16 %v238
      %v245 = vunpack.c.l.bf16 %v239
      %v246 = vunpack.c.l.bf16 %v240
      %v247 = vunpack.c.l.bf16 %v241
      %v248 = vunpack.c.l.bf16 %v242
      %v249 = vunpack.c.l.bf16 %v243
      %v250 = vld [vmem:[%s224] sm:$0x1]
      %v252 = vlaneseq
      %v253 = vshrl.u32 %v252, 7
      %v254 = vsub.s32 0, %v253
      %v255 = vrot.slane %v250, %v254
      %v257 = vmul.f32 %v244, %v255
      %v258 = vmul.f32 %v245, %v255
      %v259 = vmul.f32 %v246, %v255
      %v260 = vmul.f32 %v247, %v255
      %v261 = vmul.f32 %v248, %v255
      %v262 = vmul.f32 %v249, %v255
      %v263 = vld [vmem:[%s227] sm:$0x1]
      %v265 = vlaneseq
      %v266 = vshrl.u32 %v265, 7
      %v267 = vsub.s32 0, %v266
      %v268 = vrot.slane %v263, %v267
      %v270 = vadd.f32 %v257, %v268
      %v271 = vadd.f32 %v258, %v268
      %v272 = vadd.f32 %v259, %v268
      %v273 = vadd.f32 %v260, %v268
      %v274 = vadd.f32 %v261, %v268
      %v275 = vadd.f32 %v262, %v268
      %vm276 = vcmp.gt.f32.partialorder %v270, 0.0
      %vm277 = vcmp.gt.f32.partialorder %v271, 0.0
      %vm278 = vcmp.gt.f32.partialorder %v272, 0.0
      %vm279 = vcmp.gt.f32.partialorder %v273, 0.0
      %vm280 = vcmp.gt.f32.partialorder %v274, 0.0
      %vm281 = vcmp.gt.f32.partialorder %v275, 0.0
      %v282 = vmul.f32 %v270, 0.1
      %v283 = vmul.f32 %v271, 0.1
      %v284 = vmul.f32 %v272, 0.1
      %v285 = vmul.f32 %v273, 0.1
      %v286 = vmul.f32 %v274, 0.1
      %v287 = vmul.f32 %v275, 0.1
      %v288 = vsel %vm276, %v270, %v282
      %v289 = vsel %vm277, %v271, %v283
      %v290 = vsel %vm278, %v272, %v284
      %v291 = vsel %vm279, %v273, %v285
      %v292 = vsel %vm280, %v274, %v286
      %v293 = vsel %vm281, %v275, %v287
      %vm294 = vcmask 261120
      %295 = vst.msk [vmem:[%s236] sm:$0xff] %vm294, %v288
      %296 = vst.msk [vmem:[%s236 + $0x8] sm:$0xff] %vm294, %v289
      %297 = vst.msk [vmem:[%s236 + $0x10] sm:$0xff] %vm294, %v290
      %298 = vst.msk [vmem:[%s236 + $0x18] sm:$0xff] %vm294, %v291
      %299 = vst.msk [vmem:[%s236 + $0x20] sm:$0xff] %vm294, %v292
      %300 = vst.msk [vmem:[%s236 + $0x28] sm:$0xff] %vm294, %v293
      %s301 = smul.u32 6, %s19
      %p302 = scmp.lt.s32.totalorder %s18, 1
      %s303 = scalar_select %p302, %s18, 1
      %p304 = scmp.lt.s32.totalorder %s301, 5
      %s305 = scalar_select %p304, %s301, 5
      %s306 = smul.addr %s303, 6
      %s307 = sadd.s32 %s305, %s306
      %s308 = smul.addr %s307, 8
      %s309 = scalar_lea.vmem %s3, %s308
      // Predicated region
      $region33: #{rpp_atten_forward.11} parent=31 // pred_check
        %p310 = pneg %p126
      $region34: #{rpp_atten_forward.11} parent=31 // pred_check_branch
        %312 = sbr.rel (%p310) target = $region36
      $region35: #{rpp_atten_forward.11} parent=31 // pred_region
        %s313 = smul.u32 6, %s19
      $region36: #{rpp_atten_forward.11} parent=31 // pred_fallthru
        _
    $region32: #{rpp_atten_forward.11} parent=5 // pred_fallthru
      _
    %p314 = scmp.le.s32.totalorder 2, %s9
    // Predicated region
    $region37: #{rpp_atten_forward.11} parent=5 // pred_check
      %p315 = pneg %p314
    $region38: #{rpp_atten_forward.11} parent=5 // pred_check_branch
      %317 = sbr.rel (%p315) target = $region40
    $region39: #{rpp_atten_forward.11} parent=5 // pred_region
      %s318 = ssub.s32 %s9, 2
      // Predicated region
      $region41: #{rpp_atten_forward.11} parent=39 // pred_check
        %p319 = pneg %p132
      $region42: #{rpp_atten_forward.11} parent=39 // pred_check_branch
        %321 = sbr.rel (%p319) target = $region44
      $region43: #{rpp_atten_forward.11} parent=39 // pred_region
        %s322 = smul.u32 6, %s21
        %p323 = scmp.lt.s32.totalorder %s20, 1
        %s324 = scalar_select %p323, %s20, 1
        %p325 = scmp.lt.s32.totalorder %s322, 5
        %s326 = scalar_select %p325, %s322, 5
        %s327 = smul.addr %s324, 6
        %s328 = sadd.s32 %s326, %s327
        %s329 = smul.addr %s328, 8
        %s330 = scalar_lea.vmem %s3, %s329
      $region44: #{rpp_atten_forward.11} parent=39 // pred_fallthru
        _
    $region40: #{rpp_atten_forward.11} parent=5 // pred_fallthru
      _
  $region6: #{rpp_atten_forward.11} parent=0 // loop_footer
    %s13 = sadd.s32 1, %s9
  $region7: #{rpp_atten_forward.11} parent=0 // loop_footer_branch
    %8 = sbr.rel target = $region3
  $region8: #{rpp_atten_forward.11} parent=0 // loop_exit
    _

// kernel: rpp_atten_forward.10
$region0: #{rpp_atten_forward.10}
  #allocation0 [shape = 'u32[]', space=smem, size = 0x4, offset = 0x4, fixed_abs, tag = 'smem constant byte address 0x4 - core index']
  #allocation1 [shape = 'u32[144,128]{1,0:T(1,128)}', space=vmem, size = 0x12000, scoped, tag = 'internal scratch']
  %s0 = inlined_call_operand.vmem [shape: f32[2,48,8,3], index: 0, kind: input, shape index: {}]
  %s1 = inlined_call_operand.vmem [shape: bf16[2,48,32], index: 1, kind: input, shape index: {}]
  %s2 = inlined_call_operand.vmem [shape: bf16[2,48,8,32], index: 2, kind: input, shape index: {}]
  %s3 = inlined_call_operand.vmem [shape: bf16[3,128], index: 3, kind: input, shape index: {}]
  %s4 = inlined_call_operand.vmem [shape: f32[1,128], index: 4, kind: input, shape index: {}]
  %s5 = inlined_call_operand.vmem [shape: bf16[32,32], index: 5, kind: input, shape index: {}]
  %s6 = inlined_call_operand.vmem [shape: bf16[32,32], index: 6, kind: input, shape index: {}]
  %s7 = inlined_call_operand.vmem [shape: bf16[32,32], index: 7, kind: input, shape index: {}]
  %s8 = inlined_call_operand.vmem [shape: f32[1,32], index: 8, kind: input, shape index: {}]
  %s9 = inlined_call_operand.vmem [shape: bf16[2,48,32], index: 9, kind: output, shape index: {0}]
  %s10 = inlined_call_operand.vmem [shape: f32[2,3,2,32], index: 10, kind: output, shape index: {1}]
  %11 = xla_tuple %s9, %s10
  %s12 = sld [smem:[#allocation0]]
  $region77: #{rpp_atten_forward.10} parent=0
    _
  %s14 = ssub.s32 1, %s12
  %s15 = scalar_select 0, %s14, %s12
  loop: start=0, step=1, limit=8
  $region2: #{rpp_atten_forward.10} parent=0 // loop_pre_header
    _
  $region3: #{rpp_atten_forward.10} parent=0 // loop_header
    %s17 = sphi 0, %s21
    %p18 = scmp.ge.s32.totalorder %s17, 8
    %s24 = sphi 0, %s36
    %s25 = sphi 0, %s32
    %s26 = sphi 0, %s24
    %s27 = sphi 0, %s25
    %s28 = sphi 0, %s26
    %s29 = sphi 0, %s27
    %s41 = sphi 0, %s43
    %s44 = sphi 0, %s41
    %s45 = sphi 0, %s44
    %s61 = sphi 0, %s45
    %s69 = sphi 0, %s71
    %s72 = sphi 0, %s69
    %s73 = sphi 0, %s72
    %s89 = sphi 0, %s73
    %s97 = sphi 0, %s99
    %s100 = sphi 0, %s97
    %s101 = sphi 0, %s100
    %s117 = sphi 0, %s101
    %s121 = sphi 0, %s121
    %s123 = sphi 0, %s121
    %s124 = sphi 0, %s123
    %s138 = sphi 0, %s124
    %s142 = sphi 0, %s142
    %s144 = sphi 0, %s142
    %s145 = sphi 0, %s144
    %s159 = sphi 0, %s145
    %s163 = sphi 0, %s163
    %s165 = sphi 0, %s163
    %s166 = sphi 0, %s165
    %s180 = sphi 0, %s166
    %s184 = sphi 0, %s184
    %s186 = sphi 0, %s184
    %s187 = sphi 0, %s186
    %s201 = sphi 0, %s187
    %s205 = sphi 0, %s205
    %s207 = sphi 0, %s205
    %s208 = sphi 0, %s207
    %s222 = sphi 0, %s208
    %s226 = sphi 0, %s226
    %s228 = sphi 0, %s226
    %s229 = sphi 0, %s228
    %s243 = sphi 0, %s229
    %s251 = sphi 0, %s253
    %s254 = sphi 0, %s251
    %s255 = sphi 0, %s254
    %s271 = sphi 0, %s255
    %s279 = sphi 0, %s281
    %s282 = sphi 0, %s279
    %s283 = sphi 0, %s282
    %s299 = sphi 0, %s283
  $region4: #{rpp_atten_forward.10} parent=0 // loop_header_branch
    %20 = sbr.rel (%p18) target = $region8
  $region5: #{rpp_atten_forward.10} parent=0 // loop_body
    %s22 = ssub.s32 %s17, 1
    %s23 = ssub.s32 %s17, 2
    %s30 = sadd.s32 1, %s25
    %p31 = scmp.ge.s32.totalorder %s30, 3
    %s32 = scalar_select %p31, 0, %s30
    %s33 = sadd.s32 1, %s24
    %s34 = scalar_select %p31, %s33, %s24
    %p35 = scmp.ge.s32.totalorder %s34, 2
    %s36 = scalar_select %p35, 0, %s34
    %s37 = ssub.s32 %s24, %s36
    %s38 = ssub.s32 %s25, %s32
    %s39 = sor.u32 %s37, %s38
    %p40 = scmp.eq.s32.totalorder %s39, 0
    %s42 = sadd.s32 %s41, 1
    %s43 = scalar_select %p40, %s41, %s42
    %p46 = pneg %p40
    %p47 = scmp.eq.s32.totalorder %s17, 5
    %p48 = por %p46, %p47
    %p49 = scmp.ne.s32.totalorder %s41, %s44
    %p50 = scmp.eq.s32.totalorder %s17, 0
    %p51 = por %p49, %p50
    %p52 = scmp.ne.s32.totalorder %s41, %s44
    %p53 = scmp.eq.s32.totalorder %s22, 5
    %p54 = por %p52, %p53
    %p55 = scmp.ne.s32.totalorder %s44, %s45
    %p56 = scmp.eq.s32.totalorder %s22, 0
    %p57 = por %p55, %p56
    %p58 = scmp.ne.s32.totalorder %s44, %s45
    %p59 = scmp.eq.s32.totalorder %s23, 5
    %p60 = por %p58, %p59
    %p62 = scmp.ne.s32.totalorder %s45, %s61
    %p63 = scmp.eq.s32.totalorder %s23, 0
    %p64 = por %p62, %p63
    %s65 = ssub.s32 %s24, %s36
    %s66 = ssub.s32 %s25, %s32
    %s67 = sor.u32 %s65, %s66
    %p68 = scmp.eq.s32.totalorder %s67, 0
    %s70 = sadd.s32 %s69, 1
    %s71 = scalar_select %p68, %s69, %s70
    %p74 = pneg %p68
    %p75 = scmp.eq.s32.totalorder %s17, 5
    %p76 = por %p74, %p75
    %p77 = scmp.ne.s32.totalorder %s69, %s72
    %p78 = scmp.eq.s32.totalorder %s17, 0
    %p79 = por %p77, %p78
    %p80 = scmp.ne.s32.totalorder %s69, %s72
    %p81 = scmp.eq.s32.totalorder %s22, 5
    %p82 = por %p80, %p81
    %p83 = scmp.ne.s32.totalorder %s72, %s73
    %p84 = scmp.eq.s32.totalorder %s22, 0
    %p85 = por %p83, %p84
    %p86 = scmp.ne.s32.totalorder %s72, %s73
    %p87 = scmp.eq.s32.totalorder %s23, 5
    %p88 = por %p86, %p87
    %p90 = scmp.ne.s32.totalorder %s73, %s89
    %p91 = scmp.eq.s32.totalorder %s23, 0
    %p92 = por %p90, %p91
    %s93 = ssub.s32 %s24, %s36
    %s94 = ssub.s32 %s25, %s32
    %s95 = sor.u32 %s93, %s94
    %p96 = scmp.eq.s32.totalorder %s95, 0
    %s98 = sadd.s32 %s97, 1
    %s99 = scalar_select %p96, %s97, %s98
    %p102 = pneg %p96
    %p103 = scmp.eq.s32.totalorder %s17, 5
    %p104 = por %p102, %p103
    %p105 = scmp.ne.s32.totalorder %s97, %s100
    %p106 = scmp.eq.s32.totalorder %s17, 0
    %p107 = por %p105, %p106
    %p108 = scmp.ne.s32.totalorder %s97, %s100
    %p109 = scmp.eq.s32.totalorder %s22, 5
    %p110 = por %p108, %p109
    %p111 = scmp.ne.s32.totalorder %s100, %s101
    %p112 = scmp.eq.s32.totalorder %s22, 0
    %p113 = por %p111, %p112
    %p114 = scmp.ne.s32.totalorder %s100, %s101
    %p115 = scmp.eq.s32.totalorder %s23, 5
    %p116 = por %p114, %p115
    %p118 = scmp.ne.s32.totalorder %s101, %s117
    %p119 = scmp.eq.s32.totalorder %s23, 0
    %p120 = por %p118, %p119
    %s122 = sadd.s32 %s121, 1
    %p125 = scmp.eq.s32.totalorder %s17, 5
    %p126 = scmp.ne.s32.totalorder %s121, %s123
    %p127 = scmp.eq.s32.totalorder %s17, 0
    %p128 = por %p126, %p127
    %p129 = scmp.ne.s32.totalorder %s121, %s123
    %p130 = scmp.eq.s32.totalorder %s22, 5
    %p131 = por %p129, %p130
    %p132 = scmp.ne.s32.totalorder %s123, %s124
    %p133 = scmp.eq.s32.totalorder %s22, 0
    %p134 = por %p132, %p133
    %p135 = scmp.ne.s32.totalorder %s123, %s124
    %p136 = scmp.eq.s32.totalorder %s23, 5
    %p137 = por %p135, %p136
    %p139 = scmp.ne.s32.totalorder %s124, %s138
    %p140 = scmp.eq.s32.totalorder %s23, 0
    %p141 = por %p139, %p140
    %s143 = sadd.s32 %s142, 1
    %p146 = scmp.eq.s32.totalorder %s17, 5
    %p147 = scmp.ne.s32.totalorder %s142, %s144
    %p148 = scmp.eq.s32.totalorder %s17, 0
    %p149 = por %p147, %p148
    %p150 = scmp.ne.s32.totalorder %s142, %s144
    %p151 = scmp.eq.s32.totalorder %s22, 5
    %p152 = por %p150, %p151
    %p153 = scmp.ne.s32.totalorder %s144, %s145
    %p154 = scmp.eq.s32.totalorder %s22, 0
    %p155 = por %p153, %p154
    %p156 = scmp.ne.s32.totalorder %s144, %s145
    %p157 = scmp.eq.s32.totalorder %s23, 5
    %p158 = por %p156, %p157
    %p160 = scmp.ne.s32.totalorder %s145, %s159
    %p161 = scmp.eq.s32.totalorder %s23, 0
    %p162 = por %p160, %p161
    %s164 = sadd.s32 %s163, 1
    %p167 = scmp.eq.s32.totalorder %s17, 5
    %p168 = scmp.ne.s32.totalorder %s163, %s165
    %p169 = scmp.eq.s32.totalorder %s17, 0
    %p170 = por %p168, %p169
    %p171 = scmp.ne.s32.totalorder %s163, %s165
    %p172 = scmp.eq.s32.totalorder %s22, 5
    %p173 = por %p171, %p172
    %p174 = scmp.ne.s32.totalorder %s165, %s166
    %p175 = scmp.eq.s32.totalorder %s22, 0
    %p176 = por %p174, %p175
    %p177 = scmp.ne.s32.totalorder %s165, %s166
    %p178 = scmp.eq.s32.totalorder %s23, 5
    %p179 = por %p177, %p178
    %p181 = scmp.ne.s32.totalorder %s166, %s180
    %p182 = scmp.eq.s32.totalorder %s23, 0
    %p183 = por %p181, %p182
    %s185 = sadd.s32 %s184, 1
    %p188 = scmp.eq.s32.totalorder %s17, 5
    %p189 = scmp.ne.s32.totalorder %s184, %s186
    %p190 = scmp.eq.s32.totalorder %s17, 0
    %p191 = por %p189, %p190
    %p192 = scmp.ne.s32.totalorder %s184, %s186
    %p193 = scmp.eq.s32.totalorder %s22, 5
    %p194 = por %p192, %p193
    %p195 = scmp.ne.s32.totalorder %s186, %s187
    %p196 = scmp.eq.s32.totalorder %s22, 0
    %p197 = por %p195, %p196
    %p198 = scmp.ne.s32.totalorder %s186, %s187
    %p199 = scmp.eq.s32.totalorder %s23, 5
    %p200 = por %p198, %p199
    %p202 = scmp.ne.s32.totalorder %s187, %s201
    %p203 = scmp.eq.s32.totalorder %s23, 0
    %p204 = por %p202, %p203
    %s206 = sadd.s32 %s205, 1
    %p209 = scmp.eq.s32.totalorder %s17, 5
    %p210 = scmp.ne.s32.totalorder %s205, %s207
    %p211 = scmp.eq.s32.totalorder %s17, 0
    %p212 = por %p210, %p211
    %p213 = scmp.ne.s32.totalorder %s205, %s207
    %p214 = scmp.eq.s32.totalorder %s22, 5
    %p215 = por %p213, %p214
    %p216 = scmp.ne.s32.totalorder %s207, %s208
    %p217 = scmp.eq.s32.totalorder %s22, 0
    %p218 = por %p216, %p217
    %p219 = scmp.ne.s32.totalorder %s207, %s208
    %p220 = scmp.eq.s32.totalorder %s23, 5
    %p221 = por %p219, %p220
    %p223 = scmp.ne.s32.totalorder %s208, %s222
    %p224 = scmp.eq.s32.totalorder %s23, 0
    %p225 = por %p223, %p224
    %s227 = sadd.s32 %s226, 1
    %p230 = scmp.eq.s32.totalorder %s17, 5
    %p231 = scmp.ne.s32.totalorder %s226, %s228
    %p232 = scmp.eq.s32.totalorder %s17, 0
    %p233 = por %p231, %p232
    %p234 = scmp.ne.s32.totalorder %s226, %s228
    %p235 = scmp.eq.s32.totalorder %s22, 5
    %p236 = por %p234, %p235
    %p237 = scmp.ne.s32.totalorder %s228, %s229
    %p238 = scmp.eq.s32.totalorder %s22, 0
    %p239 = por %p237, %p238
    %p240 = scmp.ne.s32.totalorder %s228, %s229
    %p241 = scmp.eq.s32.totalorder %s23, 5
    %p242 = por %p240, %p241
    %p244 = scmp.ne.s32.totalorder %s229, %s243
    %p245 = scmp.eq.s32.totalorder %s23, 0
    %p246 = por %p244, %p245
    %s247 = ssub.s32 %s24, %s36
    %s248 = ssub.s32 %s25, %s32
    %s249 = sor.u32 %s247, %s248
    %p250 = scmp.eq.s32.totalorder %s249, 0
    %s252 = sadd.s32 %s251, 1
    %s253 = scalar_select %p250, %s251, %s252
    %p256 = pneg %p250
    %p257 = scmp.eq.s32.totalorder %s17, 5
    %p258 = por %p256, %p257
    %p259 = scmp.ne.s32.totalorder %s251, %s254
    %p260 = scmp.eq.s32.totalorder %s17, 0
    %p261 = por %p259, %p260
    %p262 = scmp.ne.s32.totalorder %s251, %s254
    %p263 = scmp.eq.s32.totalorder %s22, 5
    %p264 = por %p262, %p263
    %p265 = scmp.ne.s32.totalorder %s254, %s255
    %p266 = scmp.eq.s32.totalorder %s22, 0
    %p267 = por %p265, %p266
    %p268 = scmp.ne.s32.totalorder %s254, %s255
    %p269 = scmp.eq.s32.totalorder %s23, 5
    %p270 = por %p268, %p269
    %p272 = scmp.ne.s32.totalorder %s255, %s271
    %p273 = scmp.eq.s32.totalorder %s23, 0
    %p274 = por %p272, %p273
    %s275 = ssub.s32 %s24, %s36
    %s276 = ssub.s32 %s25, %s32
    %s277 = sor.u32 %s275, %s276
    %p278 = scmp.eq.s32.totalorder %s277, 0
    %s280 = sadd.s32 %s279, 1
    %s281 = scalar_select %p278, %s279, %s280
    %p284 = pneg %p278
    %p285 = scmp.eq.s32.totalorder %s17, 5
    %p286 = por %p284, %p285
    %p287 = scmp.ne.s32.totalorder %s279, %s282
    %p288 = scmp.eq.s32.totalorder %s17, 0
    %p289 = por %p287, %p288
    %p290 = scmp.ne.s32.totalorder %s279, %s282
    %p291 = scmp.eq.s32.totalorder %s22, 5
    %p292 = por %p290, %p291
    %p293 = scmp.ne.s32.totalorder %s282, %s283
    %p294 = scmp.eq.s32.totalorder %s22, 0
    %p295 = por %p293, %p294
    %p296 = scmp.ne.s32.totalorder %s282, %s283
    %p297 = scmp.eq.s32.totalorder %s23, 5
    %p298 = por %p296, %p297
    %p300 = scmp.ne.s32.totalorder %s283, %s299
    %p301 = scmp.eq.s32.totalorder %s23, 0
    %p302 = por %p300, %p301
    %p303 = scmp.le.s32.totalorder 1, %s17
    %p304 = scmp.lt.s32.totalorder %s17, 7
    %p305 = pnand %p303, %p304
    %p306 = pneg %p305
    // Predicated region
    $region9: #{rpp_atten_forward.10} parent=5 // pred_check
      _
    $region10: #{rpp_atten_forward.10} parent=5 // pred_check_branch
      %308 = sbr.rel (%p305) target = $region12
    $region11: #{rpp_atten_forward.10} parent=5 // pred_region
      %s309 = ssub.s32 %s17, 1
      // Predicated region
      $region13: #{rpp_atten_forward.10} parent=11 // pred_check
        %p310 = pneg %p134
      $region14: #{rpp_atten_forward.10} parent=11 // pred_check_branch
        %312 = sbr.rel (%p310) target = $region16
      $region15: #{rpp_atten_forward.10} parent=11 // pred_region
        _
      $region16: #{rpp_atten_forward.10} parent=11 // pred_fallthru
        _
      // Predicated region
      $region17: #{rpp_atten_forward.10} parent=11 // pred_check
        %p313 = pneg %p155
      $region18: #{rpp_atten_forward.10} parent=11 // pred_check_branch
        %315 = sbr.rel (%p313) target = $region20
      $region19: #{rpp_atten_forward.10} parent=11 // pred_region
        _
      $region20: #{rpp_atten_forward.10} parent=11 // pred_fallthru
        _
      // Predicated region
      $region21: #{rpp_atten_forward.10} parent=11 // pred_check
        %p316 = pneg %p176
      $region22: #{rpp_atten_forward.10} parent=11 // pred_check_branch
        %318 = sbr.rel (%p316) target = $region24
      $region23: #{rpp_atten_forward.10} parent=11 // pred_region
        _
      $region24: #{rpp_atten_forward.10} parent=11 // pred_fallthru
        _
      // Predicated region
      $region25: #{rpp_atten_forward.10} parent=11 // pred_check
        %p319 = pneg %p197
      $region26: #{rpp_atten_forward.10} parent=11 // pred_check_branch
        %321 = sbr.rel (%p319) target = $region28
      $region27: #{rpp_atten_forward.10} parent=11 // pred_region
        _
      $region28: #{rpp_atten_forward.10} parent=11 // pred_fallthru
        _
      // Predicated region
      $region29: #{rpp_atten_forward.10} parent=11 // pred_check
        %p322 = pneg %p218
      $region30: #{rpp_atten_forward.10} parent=11 // pred_check_branch
        %324 = sbr.rel (%p322) target = $region32
      $region31: #{rpp_atten_forward.10} parent=11 // pred_region
        _
      $region32: #{rpp_atten_forward.10} parent=11 // pred_fallthru
        _
      // Predicated region
      $region33: #{rpp_atten_forward.10} parent=11 // pred_check
        %p325 = pneg %p239
      $region34: #{rpp_atten_forward.10} parent=11 // pred_check_branch
        %327 = sbr.rel (%p325) target = $region36
      $region35: #{rpp_atten_forward.10} parent=11 // pred_region
        _
      $region36: #{rpp_atten_forward.10} parent=11 // pred_fallthru
        _
    $region12: #{rpp_atten_forward.10} parent=5 // pred_fallthru
      _
    %p328 = scmp.lt.s32.totalorder %s17, 6
    // Predicated region
    $region37: #{rpp_atten_forward.10} parent=5 // pred_check
      %p329 = pneg %p328
    $region38: #{rpp_atten_forward.10} parent=5 // pred_check_branch
      %331 = sbr.rel (%p329) target = $region40
    $region39: #{rpp_atten_forward.10} parent=5 // pred_region
      // Predicated region
      $region41: #{rpp_atten_forward.10} parent=39 // pred_check
        %p332 = pneg %p51
      $region42: #{rpp_atten_forward.10} parent=39 // pred_check_branch
        %334 = sbr.rel (%p332) target = $region44
      $region43: #{rpp_atten_forward.10} parent=39 // pred_region
        %s335 = smul.u32 16, %s25
        %p336 = scmp.lt.s32.totalorder %s24, 1
        %s337 = scalar_select %p336, %s24, 1
        %p338 = scmp.lt.s32.totalorder %s335, 47
        %s339 = scalar_select %p338, %s335, 47
        %s340 = smul.addr %s337, 48
        %s341 = sadd.s32 %s339, %s340
        %s342 = smul.addr %s341, 8
        %s343 = scalar_lea.vmem %s0, %s342
        %s344 = smul.u32 16, %s25
      $region44: #{rpp_atten_forward.10} parent=39 // pred_fallthru
        _
      // Predicated region
      $region45: #{rpp_atten_forward.10} parent=39 // pred_check
        %p345 = pneg %p79
      $region46: #{rpp_atten_forward.10} parent=39 // pred_check_branch
        %347 = sbr.rel (%p345) target = $region48
      $region47: #{rpp_atten_forward.10} parent=39 // pred_region
        %s348 = smul.u32 2, %s25
        %p349 = scmp.lt.s32.totalorder %s24, 1
        %s350 = scalar_select %p349, %s24, 1
        %p351 = scmp.lt.s32.totalorder %s348, 5
        %s352 = scalar_select %p351, %s348, 5
        %s353 = smul.addr %s350, 6
        %s354 = sadd.s32 %s352, %s353
        %s355 = smul.addr %s354, 4
        %s356 = scalar_lea.vmem %s1, %s355
        %s357 = smul.u32 2, %s25
      $region48: #{rpp_atten_forward.10} parent=39 // pred_fallthru
        _
      // Predicated region
      $region49: #{rpp_atten_forward.10} parent=39 // pred_check
        %p358 = pneg %p107
      $region50: #{rpp_atten_forward.10} parent=39 // pred_check_branch
        %360 = sbr.rel (%p358) target = $region52
      $region51: #{rpp_atten_forward.10} parent=39 // pred_region
        %s361 = smul.u32 16, %s25
        %p362 = scmp.lt.s32.totalorder %s24, 1
        %s363 = scalar_select %p362, %s24, 1
        %p364 = scmp.lt.s32.totalorder %s361, 47
        %s365 = scalar_select %p364, %s361, 47
        %s366 = smul.addr %s363, 48
        %s367 = sadd.s32 %s365, %s366
        %s368 = smul.addr %s367, 4
        %s369 = scalar_lea.vmem %s2, %s368
        %s370 = smul.u32 16, %s25
      $region52: #{rpp_atten_forward.10} parent=39 // pred_fallthru
        _
    $region40: #{rpp_atten_forward.10} parent=5 // pred_fallthru
      _
    %p371 = scmp.le.s32.totalorder 1, %s17
    %p372 = scmp.lt.s32.totalorder %s17, 7
    %p373 = pnand %p371, %p372
    %p374 = pneg %p373
    // Predicated region
    $region53: #{rpp_atten_forward.10} parent=5 // pred_check
      _
    $region54: #{rpp_atten_forward.10} parent=5 // pred_check_branch
      %376 = sbr.rel (%p373) target = $region56
    $region55: #{rpp_atten_forward.10} parent=5 // pred_region
      %s377 = ssub.s32 %s17, 1
      %s378 = smul.u32 16, %s27
      %p379 = scmp.lt.s32.totalorder %s26, 1
      %s380 = scalar_select %p379, %s26, 1
      %p381 = scmp.lt.s32.totalorder %s378, 47
      %s382 = scalar_select %p381, %s378, 47
      %s383 = smul.addr %s380, 48
      %s384 = sadd.s32 %s382, %s383
      %s385 = smul.addr %s384, 8
      %s386 = scalar_lea.vmem %s0, %s385
      %p387 = pneg %p57
      %p388 = pneg %p54
      %s389 = smul.u32 2, %s27
      %p390 = scmp.lt.s32.totalorder %s26, 1
      %s391 = scalar_select %p390, %s26, 1
      %p392 = scmp.lt.s32.totalorder %s389, 5
      %s393 = scalar_select %p392, %s389, 5
      %s394 = smul.addr %s391, 6
      %s395 = sadd.s32 %s393, %s394
      %s396 = smul.addr %s395, 4
      %s397 = scalar_lea.vmem %s1, %s396
      %p398 = pneg %p85
      %p399 = pneg %p82
      %s400 = smul.u32 16, %s27
      %p401 = scmp.lt.s32.totalorder %s26, 1
      %s402 = scalar_select %p401, %s26, 1
      %p403 = scmp.lt.s32.totalorder %s400, 47
      %s404 = scalar_select %p403, %s400, 47
      %s405 = smul.addr %s402, 48
      %s406 = sadd.s32 %s404, %s405
      %s407 = smul.addr %s406, 4
      %s408 = scalar_lea.vmem %s2, %s407
      %p409 = pneg %p113
      %p410 = pneg %p110
      %p411 = pneg %p134
      %p412 = pneg %p131
      %p413 = pneg %p155
      %p414 = pneg %p152
      %p415 = pneg %p176
      %p416 = pneg %p173
      %p417 = pneg %p197
      %p418 = pneg %p194
      %p419 = pneg %p218
      %p420 = pneg %p215
      %p421 = pneg %p239
      %p422 = pneg %p236
      %p423 = pneg %p267
      %p424 = pneg %p264
      %s425 = smul.u32 2, %s27
      %p426 = scmp.lt.s32.totalorder %s26, 1
      %s427 = scalar_select %p426, %s26, 1
      %p428 = scmp.lt.s32.totalorder %s425, 5
      %s429 = scalar_select %p428, %s425, 5
      %s430 = smul.addr %s427, 6
      %s431 = sadd.s32 %s429, %s430
      %s432 = smul.addr %s431, 4
      %s433 = scalar_lea.vmem %s9, %s432
      %p434 = pneg %p295
      %p435 = pneg %p292
      %p436 = scmp.lt.s32.totalorder %s26, 1
      %s437 = scalar_select %p436, %s26, 1
      %p438 = scmp.lt.s32.totalorder %s27, 2
      %s439 = scalar_select %p438, %s27, 2
      %s440 = smul.addr %s437, 3
      %s441 = sadd.s32 %s439, %s440
      %s442 = smul.addr %s441, 2
      %s443 = scalar_lea.vmem %s10, %s442
      %s444 = smul.u32 16, %s27
      %p445 = scmp.lt.s32.totalorder %s26, 1
      %s446 = scalar_select %p445, %s26, 1
      %p447 = scmp.lt.s32.totalorder %s444, 47
      %s448 = scalar_select %p447, %s444, 47
      %s449 = smul.addr %s446, 48
      %s450 = sadd.s32 %s448, %s449
      %s451 = smul.addr %s450, 8
      %s452 = scalar_lea.vmem %s0, %s451
      %s453 = smul.u32 16, %s27
      %s454 = smul.u32 2, %s27
      %p455 = scmp.lt.s32.totalorder %s26, 1
      %s456 = scalar_select %p455, %s26, 1
      %p457 = scmp.lt.s32.totalorder %s454, 5
      %s458 = scalar_select %p457, %s454, 5
      %s459 = smul.addr %s456, 6
      %s460 = sadd.s32 %s458, %s459
      %s461 = smul.addr %s460, 4
      %s462 = scalar_lea.vmem %s1, %s461
      %s463 = smul.u32 2, %s27
      %s464 = smul.u32 16, %s27
      %p465 = scmp.lt.s32.totalorder %s26, 1
      %s466 = scalar_select %p465, %s26, 1
      %p467 = scmp.lt.s32.totalorder %s464, 47
      %s468 = scalar_select %p467, %s464, 47
      %s469 = smul.addr %s466, 48
      %s470 = sadd.s32 %s468, %s469
      %s471 = smul.addr %s470, 4
      %s472 = scalar_lea.vmem %s2, %s471
      %s473 = smul.u32 16, %s27
      %s474 = smul.u32 2, %s27
      %p475 = scmp.lt.s32.totalorder %s26, 1
      %s476 = scalar_select %p475, %s26, 1
      %p477 = scmp.lt.s32.totalorder %s474, 5
      %s478 = scalar_select %p477, %s474, 5
      %s479 = smul.addr %s476, 6
      %s480 = sadd.s32 %s478, %s479
      %s481 = smul.addr %s480, 4
      %s482 = scalar_lea.vmem %s9, %s481
      %s483 = smul.u32 2, %s27
      %p484 = scmp.lt.s32.totalorder %s26, 1
      %s485 = scalar_select %p484, %s26, 1
      %p486 = scmp.lt.s32.totalorder %s27, 2
      %s487 = scalar_select %p486, %s27, 2
      %s488 = smul.addr %s485, 3
      %s489 = sadd.s32 %s487, %s488
      %s490 = smul.addr %s489, 2
      %s491 = scalar_lea.vmem %s10, %s490
      %v493 = vld [vmem:[%s462] sm:$0xf]
      %v494 = vld [vmem:[%s462 + $0x4] sm:$0xf]
      %v495 = vld [vmem:[%s472] sm:$0xf]
      %v496 = vld [vmem:[%s472 + $0x4] sm:$0xf]
      %v497 = vld [vmem:[%s472 + $0x8] sm:$0xf]
      %v498 = vld [vmem:[%s472 + $0xc] sm:$0xf]
      %v499 = vld [vmem:[%s472 + $0x10] sm:$0xf]
      %v500 = vld [vmem:[%s472 + $0x14] sm:$0xf]
      %v501 = vld [vmem:[%s472 + $0x18] sm:$0xf]
      %v502 = vld [vmem:[%s472 + $0x1c] sm:$0xf]
      %v503 = vld [vmem:[%s472 + $0x20] sm:$0xf]
      %v504 = vld [vmem:[%s472 + $0x24] sm:$0xf]
      %v505 = vld [vmem:[%s472 + $0x28] sm:$0xf]
      %v506 = vld [vmem:[%s472 + $0x2c] sm:$0xf]
      %v507 = vld [vmem:[%s472 + $0x30] sm:$0xf]
      %v508 = vld [vmem:[%s472 + $0x34] sm:$0xf]
      %v509 = vld [vmem:[%s472 + $0x38] sm:$0xf]
      %v510 = vld [vmem:[%s472 + $0x3c] sm:$0xf]
      %v511 = vld [vmem:[%s452] sm:$0xff]
      %v512 = vld [vmem:[%s452 + $0x8] sm:$0xff]
      %v513 = vld [vmem:[%s452 + $0x10] sm:$0xff]
      %v514 = vld [vmem:[%s452 + $0x18] sm:$0xff]
      %v515 = vld [vmem:[%s452 + $0x20] sm:$0xff]
      %v516 = vld [vmem:[%s452 + $0x28] sm:$0xff]
      %v517 = vld [vmem:[%s452 + $0x30] sm:$0xff]
      %v518 = vld [vmem:[%s452 + $0x38] sm:$0xff]
      %v519 = vld [vmem:[%s452 + $0x40] sm:$0xff]
      %v520 = vld [vmem:[%s452 + $0x48] sm:$0xff]
      %v521 = vld [vmem:[%s452 + $0x50] sm:$0xff]
      %v522 = vld [vmem:[%s452 + $0x58] sm:$0xff]
      %v523 = vld [vmem:[%s452 + $0x60] sm:$0xff]
      %v524 = vld [vmem:[%s452 + $0x68] sm:$0xff]
      %v525 = vld [vmem:[%s452 + $0x70] sm:$0xff]
      %v526 = vld [vmem:[%s452 + $0x78] sm:$0xff]
      %v527 = vpack.c.bf16 %v511, %v511
      %v528 = vpack.c.bf16 %v512, %v512
      %v529 = vpack.c.bf16 %v513, %v513
      %v530 = vpack.c.bf16 %v514, %v514
      %v531 = vpack.c.bf16 %v515, %v515
      %v532 = vpack.c.bf16 %v516, %v516
      %v533 = vpack.c.bf16 %v517, %v517
      %v534 = vpack.c.bf16 %v518, %v518
      %v535 = vpack.c.bf16 %v519, %v519
      %v536 = vpack.c.bf16 %v520, %v520
      %v537 = vpack.c.bf16 %v521, %v521
      %v538 = vpack.c.bf16 %v522, %v522
      %v539 = vpack.c.bf16 %v523, %v523
      %v540 = vpack.c.bf16 %v524, %v524
      %v541 = vpack.c.bf16 %v525, %v525
      %v542 = vpack.c.bf16 %v526, %v526
      %v543 = vld [vmem:[%s3] sm:$0x3]
      %v544 = vld [vmem:[%s4] sm:$0x1]
      %v546 = vlaneseq
      %v547 = vshrl.u32 %v546, 7
      %v548 = vsub.s32 0, %v547
      %v549 = vrot.slane %v544, %v548
      %v567 = vunpack.c.l.b16 %v527
      %v568 = vunpack.c.l.b16 %v528
      %v569 = vunpack.c.l.b16 %v529
      %v570 = vunpack.c.l.b16 %v530
      %v571 = vunpack.c.l.b16 %v531
      %v572 = vunpack.c.l.b16 %v532
      %v573 = vunpack.c.l.b16 %v533
      %v574 = vunpack.c.l.b16 %v534
      %v575 = vunpack.c.l.b16 %v535
      %v576 = vunpack.c.l.b16 %v536
      %v577 = vunpack.c.l.b16 %v537
      %v578 = vunpack.c.l.b16 %v538
      %v579 = vunpack.c.l.b16 %v539
      %v580 = vunpack.c.l.b16 %v540
      %v581 = vunpack.c.l.b16 %v541
      %v582 = vunpack.c.l.b16 %v542
      %v583 = vpack.c.b16 %v568, %v567
      %v584 = vpack.c.b16 %v570, %v569
      %v585 = vpack.c.b16 %v572, %v571
      %v586 = vpack.c.b16 %v574, %v573
      %v587 = vpack.c.b16 %v576, %v575
      %v588 = vpack.c.b16 %v578, %v577
      %v589 = vpack.c.b16 %v580, %v579
      %v590 = vpack.c.b16 %v582, %v581
      %vm591 = vcmask 23552
      %v593 = vsel %vm591, %v583, 0
      %v596 = vsel %vm591, %v584, 0
      %v599 = vsel %vm591, %v585, 0
      %v602 = vsel %vm591, %v586, 0
      %v605 = vsel %vm591, %v587, 0
      %v608 = vsel %vm591, %v588, 0
      %v611 = vsel %vm591, %v589, 0
      %v614 = vsel %vm591, %v590, 0
      %vm616 = vcmask 1040384
      %vm617 = vcmask 1041408
      %v618 = vsel %vm616, 4294967295, 65535
      %v619 = vsel %vm617, %v618, 0
      %v621 = vand.u32 %v543, %v619
      %623 = vmatprep.subr.bf16.mxu0 0
      %624 = vmatpush1.bf16.msra.mxu0 %v621
      %625 = vmatprep.subr.bf16.mxu0 0
      %626 = vmatpush1.bf16.msra.mxu0 0
      %627 = vmatprep.subr.bf16.mxu0 0
      %628 = vmatpush1.bf16.msra.mxu0 0
      %629 = vmatprep.subr.bf16.mxu0 0
      %630 = vmatpush1.bf16.msra.mxu0 0
      %631 = vmatprep.subr.bf16.mxu0 0
      %632 = vmatpush1.bf16.msra.mxu0 0
      %633 = vmatprep.subr.bf16.mxu0 0
      %634 = vmatpush1.bf16.msra.mxu0 0
      %635 = vmatprep.subr.bf16.mxu0 0
      %636 = vmatpush1.bf16.msra.mxu0 0
      %637 = vmatprep.subr.bf16.mxu0 0
      %638 = vmatpush1.bf16.msra.mxu0 0
      %639 = vmatprep.subr.bf16.mxu0 0
      %640 = vmatpush1.bf16.msra.mxu0 0
      %641 = vmatprep.subr.bf16.mxu0 0
      %642 = vmatpush1.bf16.msra.mxu0 0
      %643 = vmatprep.subr.bf16.mxu0 0
      %644 = vmatpush1.bf16.msra.mxu0 0
      %645 = vmatprep.subr.bf16.mxu0 0
      %646 = vmatpush1.bf16.msra.mxu0 0
      %647 = vmatprep.subr.bf16.mxu0 0
      %648 = vmatpush1.bf16.msra.mxu0 0
      %649 = vmatprep.subr.bf16.mxu0 0
      %650 = vmatpush1.bf16.msra.mxu0 0
      %651 = vmatprep.subr.bf16.mxu0 0
      %652 = vmatpush1.bf16.msra.mxu0 0
      %653 = vmatprep.subr.bf16.mxu0 0
      %654 = vmatpush1.bf16.msra.mxu0 0
      %655 = vmatprep.mubr.bf16.mxu0 0
      %656 = vmatmul.mubr.bf16.gmra.mrb[0].mxu0 %v593
      %v657 = vpop.f32.mrb[0].mxu0
      %v658 = vadd.f32 %v549, %v657
      %v659 = vpop.f32.mrb[0].mxu0
      %v660 = vpop.f32.mrb[0].mxu0
      %v661 = vadd.f32 %v549, %v660
      %v662 = vpop.f32.mrb[0].mxu0
      %663 = vmatprep.mubr.bf16.mxu0 0
      %664 = vmatmul.mubr.bf16.gmra.mrb[0].mxu0 %v596
      %v665 = vpop.f32.mrb[0].mxu0
      %v666 = vadd.f32 %v549, %v665
      %v667 = vpop.f32.mrb[0].mxu0
      %v668 = vpop.f32.mrb[0].mxu0
      %v669 = vadd.f32 %v549, %v668
      %v670 = vpop.f32.mrb[0].mxu0
      %671 = vmatprep.mubr.bf16.mxu0 0
      %672 = vmatmul.mubr.bf16.gmra.mrb[0].mxu0 %v599
      %v673 = vpop.f32.mrb[0].mxu0
      %v674 = vadd.f32 %v549, %v673
      %v675 = vpop.f32.mrb[0].mxu0
      %v676 = vpop.f32.mrb[0].mxu0
      %v677 = vadd.f32 %v549, %v676
      %v678 = vpop.f32.mrb[0].mxu0
      %679 = vmatprep.mubr.bf16.mxu0 0
      %680 = vmatmul.mubr.bf16.gmra.mrb[0].mxu0 %v602
      %v681 = vpop.f32.mrb[0].mxu0
      %v682 = vadd.f32 %v549, %v681
      %v683 = vpop.f32.mrb[0].mxu0
      %v684 = vpop.f32.mrb[0].mxu0
      %v685 = vadd.f32 %v549, %v684
      %v686 = vpop.f32.mrb[0].mxu0
      %687 = vmatprep.mubr.bf16.mxu0 0
      %688 = vmatmul.mubr.bf16.gmra.mrb[0].mxu0 %v605
      %v689 = vpop.f32.mrb[0].mxu0
      %v690 = vadd.f32 %v549, %v689
      %v691 = vpop.f32.mrb[0].mxu0
      %v692 = vpop.f32.mrb[0].mxu0
      %v693 = vadd.f32 %v549, %v692
      %v694 = vpop.f32.mrb[0].mxu0
      %695 = vmatprep.mubr.bf16.mxu0 0
      %696 = vmatmul.mubr.bf16.gmra.mrb[0].mxu0 %v608
      %v697 = vpop.f32.mrb[0].mxu0
      %v698 = vadd.f32 %v549, %v697
      %v699 = vpop.f32.mrb[0].mxu0
      %v700 = vpop.f32.mrb[0].mxu0
      %v701 = vadd.f32 %v549, %v700
      %v702 = vpop.f32.mrb[0].mxu0
      %703 = vmatprep.mubr.bf16.mxu0 0
      %704 = vmatmul.mubr.bf16.gmra.mrb[0].mxu0 %v611
      %v705 = vpop.f32.mrb[0].mxu0
      %v706 = vadd.f32 %v549, %v705
      %v707 = vpop.f32.mrb[0].mxu0
      %v708 = vpop.f32.mrb[0].mxu0
      %v709 = vadd.f32 %v549, %v708
      %v710 = vpop.f32.mrb[0].mxu0
      %711 = vmatprep.mubr.bf16.mxu0 0
      %712 = vmatmul.mubr.bf16.gmra.mrb[0].mxu0 %v614
      %v713 = vpop.f32.mrb[0].mxu0
      %v714 = vadd.f32 %v549, %v713
      %v715 = vpop.f32.mrb[0].mxu0
      %v716 = vpop.f32.mrb[0].mxu0
      %v717 = vadd.f32 %v549, %v716
      %v718 = vpop.f32.mrb[0].mxu0
      %719 = vdwg.mxu0
      %vm720 = vcmp.gt.f32.partialorder %v658, 0.0
      %vm721 = vcmp.gt.f32.partialorder %v661, 0.0
      %vm722 = vcmp.gt.f32.partialorder %v666, 0.0
      %vm723 = vcmp.gt.f32.partialorder %v669, 0.0
      %vm724 = vcmp.gt.f32.partialorder %v674, 0.0
      %vm725 = vcmp.gt.f32.partialorder %v677, 0.0
      %vm726 = vcmp.gt.f32.partialorder %v682, 0.0
      %vm727 = vcmp.gt.f32.partialorder %v685, 0.0
      %vm728 = vcmp.gt.f32.partialorder %v690, 0.0
      %vm729 = vcmp.gt.f32.partialorder %v693, 0.0
      %vm730 = vcmp.gt.f32.partialorder %v698, 0.0
      %vm731 = vcmp.gt.f32.partialorder %v701, 0.0
      %vm732 = vcmp.gt.f32.partialorder %v706, 0.0
      %vm733 = vcmp.gt.f32.partialorder %v709, 0.0
      %vm734 = vcmp.gt.f32.partialorder %v714, 0.0
      %vm735 = vcmp.gt.f32.partialorder %v717, 0.0
      %v736 = vmul.f32 %v658, 0.1
      %v737 = vmul.f32 %v661, 0.1
      %v738 = vmul.f32 %v666, 0.1
      %v739 = vmul.f32 %v669, 0.1
      %v740 = vmul.f32 %v674, 0.1
      %v741 = vmul.f32 %v677, 0.1
      %v742 = vmul.f32 %v682, 0.1
      %v743 = vmul.f32 %v685, 0.1
      %v744 = vmul.f32 %v690, 0.1
      %v745 = vmul.f32 %v693, 0.1
      %v746 = vmul.f32 %v698, 0.1
      %v747 = vmul.f32 %v701, 0.1
      %v748 = vmul.f32 %v706, 0.1
      %v749 = vmul.f32 %v709, 0.1
      %v750 = vmul.f32 %v714, 0.1
      %v751 = vmul.f32 %v717, 0.1
      %v752 = vsel %vm720, %v658, %v736
      %v753 = vsel %vm721, %v661, %v737
      %v754 = vsel %vm722, %v666, %v738
      %v755 = vsel %vm723, %v669, %v739
      %v756 = vsel %vm724, %v674, %v740
      %v757 = vsel %vm725, %v677, %v741
      %v758 = vsel %vm726, %v682, %v742
      %v759 = vsel %vm727, %v685, %v743
      %v760 = vsel %vm728, %v690, %v744
      %v761 = vsel %vm729, %v693, %v745
      %v762 = vsel %vm730, %v698, %v746
      %v763 = vsel %vm731, %v701, %v747
      %v764 = vsel %vm732, %v706, %v748
      %v765 = vsel %vm733, %v709, %v749
      %v766 = vsel %vm734, %v714, %v750
      %v767 = vsel %vm735, %v717, %v751
      %v771 = vunpack.c.l.s4 1966171168
      %v772 = vunpack.c.0.s8 %v771
      %v773 = vlaneseq
      %v774 = vshrl.u32 %v773, 7
      %v775 = vsub.s32 %v772, %v774
      %v776 = vrot.slane %v493, %v775
      %v777 = vcombine.high %v776, %v776
      %v779 = vunpack.c.l.s4 1966171168
      %v780 = vunpack.c.0.s8 %v779
      %v781 = vlaneseq
      %v782 = vshrl.u32 %v781, 7
      %v783 = vsub.s32 %v780, %v782
      %v784 = vrot.slane %v776, %v783
      %v786 = vunpack.c.l.s4 1966171168
      %v787 = vunpack.c.0.s8 %v786
      %v788 = vlaneseq
      %v789 = vshrl.u32 %v788, 7
      %v790 = vsub.s32 %v787, %v789
      %v791 = vrot.slane %v777, %v790
      %v792 = vcombine.high %v784, %v784
      %v793 = vcombine.high %v791, %v791
      %v795 = vunpack.c.l.s4 1966171168
      %v796 = vunpack.c.0.s8 %v795
      %v797 = vlaneseq
      %v798 = vshrl.u32 %v797, 7
      %v799 = vsub.s32 %v796, %v798
      %v800 = vrot.slane %v494, %v799
      %v801 = vcombine.high %v800, %v800
      %v803 = vunpack.c.l.s4 1966171168
      %v804 = vunpack.c.0.s8 %v803
      %v805 = vlaneseq
      %v806 = vshrl.u32 %v805, 7
      %v807 = vsub.s32 %v804, %v806
      %v808 = vrot.slane %v800, %v807
      %v810 = vunpack.c.l.s4 1966171168
      %v811 = vunpack.c.0.s8 %v810
      %v812 = vlaneseq
      %v813 = vshrl.u32 %v812, 7
      %v814 = vsub.s32 %v811, %v813
      %v815 = vrot.slane %v801, %v814
      %v816 = vcombine.high %v808, %v808
      %v817 = vcombine.high %v815, %v815
      %v818 = vunpack.i.l.s16 %v784
      %v819 = vunpack.i.h.s16 %v784
      %v820 = vunpack.i.l.s16 %v791
      %v821 = vunpack.i.h.s16 %v791
      %v822 = vunpack.i.l.s16 %v792
      %v823 = vunpack.i.h.s16 %v792
      %v824 = vunpack.i.l.s16 %v793
      %v825 = vunpack.i.h.s16 %v793
      %v826 = vunpack.i.l.s16 %v808
      %v827 = vunpack.i.h.s16 %v808
      %v828 = vunpack.i.l.s16 %v815
      %v829 = vunpack.i.h.s16 %v815
      %v830 = vunpack.i.l.s16 %v816
      %v831 = vunpack.i.h.s16 %v816
      %v832 = vunpack.i.l.s16 %v817
      %v833 = vunpack.i.h.s16 %v817
      %v834 = vpack.i.b16 %v818, %v818
      %v835 = vpack.i.b16 %v819, %v819
      %v836 = vpack.i.b16 %v820, %v820
      %v837 = vpack.i.b16 %v821, %v821
      %v838 = vpack.i.b16 %v822, %v822
      %v839 = vpack.i.b16 %v823, %v823
      %v840 = vpack.i.b16 %v824, %v824
      %v841 = vpack.i.b16 %v825, %v825
      %v842 = vpack.i.b16 %v826, %v826
      %v843 = vpack.i.b16 %v827, %v827
      %v844 = vpack.i.b16 %v828, %v828
      %v845 = vpack.i.b16 %v829, %v829
      %v846 = vpack.i.b16 %v830, %v830
      %v847 = vpack.i.b16 %v831, %v831
      %v848 = vpack.i.b16 %v832, %v832
      %v849 = vpack.i.b16 %v833, %v833
      %v851 = vunpack.c.l.s4 286326784
      %v852 = vunpack.c.0.s8 %v851
      %v853 = vlaneseq
      %v854 = vshrl.u32 %v853, 7
      %v855 = vsub.s32 %v852, %v854
      %v856 = vrot.slane %v834, %v855
      %v858 = vunpack.c.l.s4 286326784
      %v859 = vunpack.c.0.s8 %v858
      %v860 = vlaneseq
      %v861 = vshrl.u32 %v860, 7
      %v862 = vsub.s32 %v859, %v861
      %v863 = vrot.slane %v835, %v862
      %v865 = vunpack.c.l.s4 286326784
      %v866 = vunpack.c.0.s8 %v865
      %v867 = vlaneseq
      %v868 = vshrl.u32 %v867, 7
      %v869 = vsub.s32 %v866, %v868
      %v870 = vrot.slane %v836, %v869
      %v872 = vunpack.c.l.s4 286326784
      %v873 = vunpack.c.0.s8 %v872
      %v874 = vlaneseq
      %v875 = vshrl.u32 %v874, 7
      %v876 = vsub.s32 %v873, %v875
      %v877 = vrot.slane %v837, %v876
      %v879 = vunpack.c.l.s4 286326784
      %v880 = vunpack.c.0.s8 %v879
      %v881 = vlaneseq
      %v882 = vshrl.u32 %v881, 7
      %v883 = vsub.s32 %v880, %v882
      %v884 = vrot.slane %v838, %v883
      %v886 = vunpack.c.l.s4 286326784
      %v887 = vunpack.c.0.s8 %v886
      %v888 = vlaneseq
      %v889 = vshrl.u32 %v888, 7
      %v890 = vsub.s32 %v887, %v889
      %v891 = vrot.slane %v839, %v890
      %v893 = vunpack.c.l.s4 286326784
      %v894 = vunpack.c.0.s8 %v893
      %v895 = vlaneseq
      %v896 = vshrl.u32 %v895, 7
      %v897 = vsub.s32 %v894, %v896
      %v898 = vrot.slane %v840, %v897
      %v900 = vunpack.c.l.s4 286326784
      %v901 = vunpack.c.0.s8 %v900
      %v902 = vlaneseq
      %v903 = vshrl.u32 %v902, 7
      %v904 = vsub.s32 %v901, %v903
      %v905 = vrot.slane %v841, %v904
      %v907 = vunpack.c.l.s4 286326784
      %v908 = vunpack.c.0.s8 %v907
      %v909 = vlaneseq
      %v910 = vshrl.u32 %v909, 7
      %v911 = vsub.s32 %v908, %v910
      %v912 = vrot.slane %v842, %v911
      %v914 = vunpack.c.l.s4 286326784
      %v915 = vunpack.c.0.s8 %v914
      %v916 = vlaneseq
      %v917 = vshrl.u32 %v916, 7
      %v918 = vsub.s32 %v915, %v917
      %v919 = vrot.slane %v843, %v918
      %v921 = vunpack.c.l.s4 286326784
      %v922 = vunpack.c.0.s8 %v921
      %v923 = vlaneseq
      %v924 = vshrl.u32 %v923, 7
      %v925 = vsub.s32 %v922, %v924
      %v926 = vrot.slane %v844, %v925
      %v928 = vunpack.c.l.s4 286326784
      %v929 = vunpack.c.0.s8 %v928
      %v930 = vlaneseq
      %v931 = vshrl.u32 %v930, 7
      %v932 = vsub.s32 %v929, %v931
      %v933 = vrot.slane %v845, %v932
      %v935 = vunpack.c.l.s4 286326784
      %v936 = vunpack.c.0.s8 %v935
      %v937 = vlaneseq
      %v938 = vshrl.u32 %v937, 7
      %v939 = vsub.s32 %v936, %v938
      %v940 = vrot.slane %v846, %v939
      %v942 = vunpack.c.l.s4 286326784
      %v943 = vunpack.c.0.s8 %v942
      %v944 = vlaneseq
      %v945 = vshrl.u32 %v944, 7
      %v946 = vsub.s32 %v943, %v945
      %v947 = vrot.slane %v847, %v946
      %v949 = vunpack.c.l.s4 286326784
      %v950 = vunpack.c.0.s8 %v949
      %v951 = vlaneseq
      %v952 = vshrl.u32 %v951, 7
      %v953 = vsub.s32 %v950, %v952
      %v954 = vrot.slane %v848, %v953
      %v956 = vunpack.c.l.s4 286326784
      %v957 = vunpack.c.0.s8 %v956
      %v958 = vlaneseq
      %v959 = vshrl.u32 %v958, 7
      %v960 = vsub.s32 %v957, %v959
      %v961 = vrot.slane %v849, %v960
      %v978 = vunpack.c.l.bf16 %v856
      %v979 = vunpack.c.l.bf16 %v863
      %v980 = vunpack.c.l.bf16 %v870
      %v981 = vunpack.c.l.bf16 %v877
      %v982 = vunpack.c.l.bf16 %v884
      %v983 = vunpack.c.l.bf16 %v891
      %v984 = vunpack.c.l.bf16 %v898
      %v985 = vunpack.c.l.bf16 %v905
      %v986 = vunpack.c.l.bf16 %v912
      %v987 = vunpack.c.l.bf16 %v919
      %v988 = vunpack.c.l.bf16 %v926
      %v989 = vunpack.c.l.bf16 %v933
      %v990 = vunpack.c.l.bf16 %v940
      %v991 = vunpack.c.l.bf16 %v947
      %v992 = vunpack.c.l.bf16 %v954
      %v993 = vunpack.c.l.bf16 %v961
      %v994 = vlaneseq
      %v995 = vshrl.u32 %v994, 7
      %v996 = vsub.s32 0, %v995
      %v997 = vrot.slane %v978, %v996
      %v998 = vlaneseq
      %v999 = vshrl.u32 %v998, 7
      %v1000 = vsub.s32 0, %v999
      %v1001 = vrot.slane %v979, %v1000
      %v1002 = vlaneseq
      %v1003 = vshrl.u32 %v1002, 7
      %v1004 = vsub.s32 0, %v1003
      %v1005 = vrot.slane %v980, %v1004
      %v1006 = vlaneseq
      %v1007 = vshrl.u32 %v1006, 7
      %v1008 = vsub.s32 0, %v1007
      %v1009 = vrot.slane %v981, %v1008
      %v1010 = vlaneseq
      %v1011 = vshrl.u32 %v1010, 7
      %v1012 = vsub.s32 0, %v1011
      %v1013 = vrot.slane %v982, %v1012
      %v1014 = vlaneseq
      %v1015 = vshrl.u32 %v1014, 7
      %v1016 = vsub.s32 0, %v1015
      %v1017 = vrot.slane %v983, %v1016
      %v1018 = vlaneseq
      %v1019 = vshrl.u32 %v1018, 7
      %v1020 = vsub.s32 0, %v1019
      %v1021 = vrot.slane %v984, %v1020
      %v1022 = vlaneseq
      %v1023 = vshrl.u32 %v1022, 7
      %v1024 = vsub.s32 0, %v1023
      %v1025 = vrot.slane %v985, %v1024
      %v1026 = vlaneseq
      %v1027 = vshrl.u32 %v1026, 7
      %v1028 = vsub.s32 0, %v1027
      %v1029 = vrot.slane %v986, %v1028
      %v1030 = vlaneseq
      %v1031 = vshrl.u32 %v1030, 7
      %v1032 = vsub.s32 0, %v1031
      %v1033 = vrot.slane %v987, %v1032
      %v1034 = vlaneseq
      %v1035 = vshrl.u32 %v1034, 7
      %v1036 = vsub.s32 0, %v1035
      %v1037 = vrot.slane %v988, %v1036
      %v1038 = vlaneseq
      %v1039 = vshrl.u32 %v1038, 7
      %v1040 = vsub.s32 0, %v1039
      %v1041 = vrot.slane %v989, %v1040
      %v1042 = vlaneseq
      %v1043 = vshrl.u32 %v1042, 7
      %v1044 = vsub.s32 0, %v1043
      %v1045 = vrot.slane %v990, %v1044
      %v1046 = vlaneseq
      %v1047 = vshrl.u32 %v1046, 7
      %v1048 = vsub.s32 0, %v1047
      %v1049 = vrot.slane %v991, %v1048
      %v1050 = vlaneseq
      %v1051 = vshrl.u32 %v1050, 7
      %v1052 = vsub.s32 0, %v1051
      %v1053 = vrot.slane %v992, %v1052
      %v1054 = vlaneseq
      %v1055 = vshrl.u32 %v1054, 7
      %v1056 = vsub.s32 0, %v1055
      %v1057 = vrot.slane %v993, %v1056
      %v1058 = vmul.f32 %v997, %v752
      %v1059 = vmul.f32 %v1001, %v753
      %v1060 = vmul.f32 %v1005, %v754
      %v1061 = vmul.f32 %v1009, %v755
      %v1062 = vmul.f32 %v1013, %v756
      %v1063 = vmul.f32 %v1017, %v757
      %v1064 = vmul.f32 %v1021, %v758
      %v1065 = vmul.f32 %v1025, %v759
      %v1066 = vmul.f32 %v1029, %v760
      %v1067 = vmul.f32 %v1033, %v761
      %v1068 = vmul.f32 %v1037, %v762
      %v1069 = vmul.f32 %v1041, %v763
      %v1070 = vmul.f32 %v1045, %v764
      %v1071 = vmul.f32 %v1049, %v765
      %v1072 = vmul.f32 %v1053, %v766
      %v1073 = vmul.f32 %v1057, %v767
      %v1074 = vpack.c.bf16 %v1058, %v1058
      %v1075 = vpack.c.bf16 %v1059, %v1059
      %v1076 = vpack.c.bf16 %v1060, %v1060
      %v1077 = vpack.c.bf16 %v1061, %v1061
      %v1078 = vpack.c.bf16 %v1062, %v1062
      %v1079 = vpack.c.bf16 %v1063, %v1063
      %v1080 = vpack.c.bf16 %v1064, %v1064
      %v1081 = vpack.c.bf16 %v1065, %v1065
      %v1082 = vpack.c.bf16 %v1066, %v1066
      %v1083 = vpack.c.bf16 %v1067, %v1067
      %v1084 = vpack.c.bf16 %v1068, %v1068
      %v1085 = vpack.c.bf16 %v1069, %v1069
      %v1086 = vpack.c.bf16 %v1070, %v1070
      %v1087 = vpack.c.bf16 %v1071, %v1071
      %v1088 = vpack.c.bf16 %v1072, %v1072
      %v1089 = vpack.c.bf16 %v1073, %v1073
      %v1090 = vld [vmem:[%s5] sm:$0xf]
      %v1091 = vld [vmem:[%s5 + $0x4] sm:$0xf]
      %v1092 = vld [vmem:[%s5 + $0x8] sm:$0xf]
      %v1093 = vld [vmem:[%s5 + $0xc] sm:$0xf]
      %v1110 = vunpack.c.l.b16 %v1074
      %v1111 = vunpack.c.l.b16 %v1075
      %v1112 = vunpack.c.l.b16 %v1076
      %v1113 = vunpack.c.l.b16 %v1077
      %v1114 = vunpack.c.l.b16 %v1078
      %v1115 = vunpack.c.l.b16 %v1079
      %v1116 = vunpack.c.l.b16 %v1080
      %v1117 = vunpack.c.l.b16 %v1081
      %v1118 = vunpack.c.l.b16 %v1082
      %v1119 = vunpack.c.l.b16 %v1083
      %v1120 = vunpack.c.l.b16 %v1084
      %v1121 = vunpack.c.l.b16 %v1085
      %v1122 = vunpack.c.l.b16 %v1086
      %v1123 = vunpack.c.l.b16 %v1087
      %v1124 = vunpack.c.l.b16 %v1088
      %v1125 = vunpack.c.l.b16 %v1089
      %v1126 = vpack.c.b16 %v1111, %v1110
      %v1127 = vpack.c.b16 %v1113, %v1112
      %v1128 = vpack.c.b16 %v1115, %v1114
      %v1129 = vpack.c.b16 %v1117, %v1116
      %v1130 = vpack.c.b16 %v1119, %v1118
      %v1131 = vpack.c.b16 %v1121, %v1120
      %v1132 = vpack.c.b16 %v1123, %v1122
      %v1133 = vpack.c.b16 %v1125, %v1124
      %v1138 = vunpack.c.l.b16 %v1090
      %v1139 = vunpack.c.l.b16 %v1091
      %v1140 = vunpack.c.l.b16 %v1092
      %v1141 = vunpack.c.l.b16 %v1093
      %v1142 = vpack.c.b16 %v1139, %v1138
      %v1143 = vpack.c.b16 %v1141, %v1140
      %vm1146 = vcmask 261120
      %v1148 = vsel %vm1146, %v1126, 0
      %v1151 = vsel %vm1146, %v1127, 0
      %v1154 = vsel %vm1146, %v1128, 0
      %v1157 = vsel %vm1146, %v1129, 0
      %v1160 = vsel %vm1146, %v1130, 0
      %v1163 = vsel %vm1146, %v1131, 0
      %v1166 = vsel %vm1146, %v1132, 0
      %v1169 = vsel %vm1146, %v1133, 0
      %1171 = vmatprep.subr.bf16.mxu0 0
      %1172 = vmatpush1.bf16.msra.mxu0 %v1142
      %1173 = vmatprep.subr.bf16.mxu0 0
      %1174 = vmatpush1.bf16.msra.mxu0 %v1143
      %1175 = vmatprep.subr.bf16.mxu0 0
      %1176 = vmatpush1.bf16.msra.mxu0 0
      %1177 = vmatprep.subr.bf16.mxu0 0
      %1178 = vmatpush1.bf16.msra.mxu0 0
      %1179 = vmatprep.subr.bf16.mxu0 0
      %1180 = vmatpush1.bf16.msra.mxu0 0
      %1181 = vmatprep.subr.bf16.mxu0 0
      %1182 = vmatpush1.bf16.msra.mxu0 0
      %1183 = vmatprep.subr.bf16.mxu0 0
      %1184 = vmatpush1.bf16.msra.mxu0 0
      %1185 = vmatprep.subr.bf16.mxu0 0
      %1186 = vmatpush1.bf16.msra.mxu0 0
      %1187 = vmatprep.subr.bf16.mxu0 0
      %1188 = vmatpush1.bf16.msra.mxu0 0
      %1189 = vmatprep.subr.bf16.mxu0 0
      %1190 = vmatpush1.bf16.msra.mxu0 0
      %1191 = vmatprep.subr.bf16.mxu0 0
      %1192 = vmatpush1.bf16.msra.mxu0 0
      %1193 = vmatprep.subr.bf16.mxu0 0
      %1194 = vmatpush1.bf16.msra.mxu0 0
      %1195 = vmatprep.subr.bf16.mxu0 0
      %1196 = vmatpush1.bf16.msra.mxu0 0
      %1197 = vmatprep.subr.bf16.mxu0 0
      %1198 = vmatpush1.bf16.msra.mxu0 0
      %1199 = vmatprep.subr.bf16.mxu0 0
      %1200 = vmatpush1.bf16.msra.mxu0 0
      %1201 = vmatprep.subr.bf16.mxu0 0
      %1202 = vmatpush1.bf16.msra.mxu0 0
      %1203 = vmatprep.mubr.bf16.mxu0 0
      %1204 = vmatmul.mubr.bf16.gmra.mrb[0].mxu0 %v1148
      %v1205 = vpop.f32.mrb[0].mxu0
      %v1206 = vadd.f32 0.0, %v1205
      %v1207 = vpop.f32.mrb[0].mxu0
      %v1208 = vpop.f32.mrb[0].mxu0
      %v1209 = vadd.f32 0.0, %v1208
      %v1210 = vpop.f32.mrb[0].mxu0
      %1211 = vmatprep.mubr.bf16.mxu0 0
      %1212 = vmatmul.mubr.bf16.gmra.mrb[0].mxu0 %v1151
      %v1213 = vpop.f32.mrb[0].mxu0
      %v1214 = vadd.f32 0.0, %v1213
      %v1215 = vpop.f32.mrb[0].mxu0
      %v1216 = vpop.f32.mrb[0].mxu0
      %v1217 = vadd.f32 0.0, %v1216
      %v1218 = vpop.f32.mrb[0].mxu0
      %1219 = vmatprep.mubr.bf16.mxu0 0
      %1220 = vmatmul.mubr.bf16.gmra.mrb[0].mxu0 %v1154
      %v1221 = vpop.f32.mrb[0].mxu0
      %v1222 = vadd.f32 0.0, %v1221
      %v1223 = vpop.f32.mrb[0].mxu0
      %v1224 = vpop.f32.mrb[0].mxu0
      %v1225 = vadd.f32 0.0, %v1224
      %v1226 = vpop.f32.mrb[0].mxu0
      %1227 = vmatprep.mubr.bf16.mxu0 0
      %1228 = vmatmul.mubr.bf16.gmra.mrb[0].mxu0 %v1157
      %v1229 = vpop.f32.mrb[0].mxu0
      %v1230 = vadd.f32 0.0, %v1229
      %v1231 = vpop.f32.mrb[0].mxu0
      %v1232 = vpop.f32.mrb[0].mxu0
      %v1233 = vadd.f32 0.0, %v1232
      %v1234 = vpop.f32.mrb[0].mxu0
      %1235 = vmatprep.mubr.bf16.mxu0 0
      %1236 = vmatmul.mubr.bf16.gmra.mrb[0].mxu0 %v1160
      %v1237 = vpop.f32.mrb[0].mxu0
      %v1238 = vadd.f32 0.0, %v1237
      %v1239 = vpop.f32.mrb[0].mxu0
      %v1240 = vpop.f32.mrb[0].mxu0
      %v1241 = vadd.f32 0.0, %v1240
      %v1242 = vpop.f32.mrb[0].mxu0
      %1243 = vmatprep.mubr.bf16.mxu0 0
      %1244 = vmatmul.mubr.bf16.gmra.mrb[0].mxu0 %v1163
      %v1245 = vpop.f32.mrb[0].mxu0
      %v1246 = vadd.f32 0.0, %v1245
      %v1247 = vpop.f32.mrb[0].mxu0
      %v1248 = vpop.f32.mrb[0].mxu0
      %v1249 = vadd.f32 0.0, %v1248
      %v1250 = vpop.f32.mrb[0].mxu0
      %1251 = vmatprep.mubr.bf16.mxu0 0
      %1252 = vmatmul.mubr.bf16.gmra.mrb[0].mxu0 %v1166
      %v1253 = vpop.f32.mrb[0].mxu0
      %v1254 = vadd.f32 0.0, %v1253
      %v1255 = vpop.f32.mrb[0].mxu0
      %v1256 = vpop.f32.mrb[0].mxu0
      %v1257 = vadd.f32 0.0, %v1256
      %v1258 = vpop.f32.mrb[0].mxu0
      %1259 = vmatprep.mubr.bf16.mxu0 0
      %1260 = vmatmul.mubr.bf16.gmra.mrb[0].mxu0 %v1169
      %v1261 = vpop.f32.mrb[0].mxu0
      %v1262 = vadd.f32 0.0, %v1261
      %v1263 = vpop.f32.mrb[0].mxu0
      %v1264 = vpop.f32.mrb[0].mxu0
      %v1265 = vadd.f32 0.0, %v1264
      %v1266 = vpop.f32.mrb[0].mxu0
      %1267 = vdwg.mxu0
      %v1268 = vunpack.c.l.bf16 %v495
      %v1269 = vunpack.c.l.bf16 %v496
      %v1270 = vunpack.c.l.bf16 %v497
      %v1271 = vunpack.c.l.bf16 %v498
      %v1272 = vunpack.c.l.bf16 %v499
      %v1273 = vunpack.c.l.bf16 %v500
      %v1274 = vunpack.c.l.bf16 %v501
      %v1275 = vunpack.c.l.bf16 %v502
      %v1276 = vunpack.c.l.bf16 %v503
      %v1277 = vunpack.c.l.bf16 %v504
      %v1278 = vunpack.c.l.bf16 %v505
      %v1279 = vunpack.c.l.bf16 %v506
      %v1280 = vunpack.c.l.bf16 %v507
      %v1281 = vunpack.c.l.bf16 %v508
      %v1282 = vunpack.c.l.bf16 %v509
      %v1283 = vunpack.c.l.bf16 %v510
      %1300 = vrot.lane.b32.xlu0 %v752, 96
      %v1301 = vpop.permute.xlu0 %1300
      %1302 = vrot.lane.b32.xlu0 %v753, 96
      %v1303 = vpop.permute.xlu0 %1302
      %1304 = vrot.lane.b32.xlu0 %v754, 96
      %v1305 = vpop.permute.xlu0 %1304
      %1306 = vrot.lane.b32.xlu0 %v755, 96
      %v1307 = vpop.permute.xlu0 %1306
      %1308 = vrot.lane.b32.xlu0 %v756, 96
      %v1309 = vpop.permute.xlu0 %1308
      %1310 = vrot.lane.b32.xlu0 %v757, 96
      %v1311 = vpop.permute.xlu0 %1310
      %1312 = vrot.lane.b32.xlu0 %v758, 96
      %v1313 = vpop.permute.xlu0 %1312
      %1314 = vrot.lane.b32.xlu0 %v759, 96
      %v1315 = vpop.permute.xlu0 %1314
      %1316 = vrot.lane.b32.xlu0 %v760, 96
      %v1317 = vpop.permute.xlu0 %1316
      %1318 = vrot.lane.b32.xlu0 %v761, 96
      %v1319 = vpop.permute.xlu0 %1318
      %1320 = vrot.lane.b32.xlu0 %v762, 96
      %v1321 = vpop.permute.xlu0 %1320
      %1322 = vrot.lane.b32.xlu0 %v763, 96
      %v1323 = vpop.permute.xlu0 %1322
      %1324 = vrot.lane.b32.xlu0 %v764, 96
      %v1325 = vpop.permute.xlu0 %1324
      %1326 = vrot.lane.b32.xlu0 %v765, 96
      %v1327 = vpop.permute.xlu0 %1326
      %1328 = vrot.lane.b32.xlu0 %v766, 96
      %v1329 = vpop.permute.xlu0 %1328
      %1330 = vrot.lane.b32.xlu0 %v767, 96
      %v1331 = vpop.permute.xlu0 %1330
      %v1348 = vmul.f32 %v1268, %v1301
      %v1349 = vmul.f32 %v1269, %v1303
      %v1350 = vmul.f32 %v1270, %v1305
      %v1351 = vmul.f32 %v1271, %v1307
      %v1352 = vmul.f32 %v1272, %v1309
      %v1353 = vmul.f32 %v1273, %v1311
      %v1354 = vmul.f32 %v1274, %v1313
      %v1355 = vmul.f32 %v1275, %v1315
      %v1356 = vmul.f32 %v1276, %v1317
      %v1357 = vmul.f32 %v1277, %v1319
      %v1358 = vmul.f32 %v1278, %v1321
      %v1359 = vmul.f32 %v1279, %v1323
      %v1360 = vmul.f32 %v1280, %v1325
      %v1361 = vmul.f32 %v1281, %v1327
      %v1362 = vmul.f32 %v1282, %v1329
      %v1363 = vmul.f32 %v1283, %v1331
      %1364 = vrot.lane.b32.xlu0 %v752, 64
      %v1365 = vpop.permute.xlu0 %1364
      %1366 = vrot.lane.b32.xlu0 %v753, 64
      %v1367 = vpop.permute.xlu0 %1366
      %1368 = vrot.lane.b32.xlu0 %v754, 64
      %v1369 = vpop.permute.xlu0 %1368
      %1370 = vrot.lane.b32.xlu0 %v755, 64
      %v1371 = vpop.permute.xlu0 %1370
      %1372 = vrot.lane.b32.xlu0 %v756, 64
      %v1373 = vpop.permute.xlu0 %1372
      %1374 = vrot.lane.b32.xlu0 %v757, 64
      %v1375 = vpop.permute.xlu0 %1374
      %1376 = vrot.lane.b32.xlu0 %v758, 64
      %v1377 = vpop.permute.xlu0 %1376
      %1378 = vrot.lane.b32.xlu0 %v759, 64
      %v1379 = vpop.permute.xlu0 %1378
      %1380 = vrot.lane.b32.xlu0 %v760, 64
      %v1381 = vpop.permute.xlu0 %1380
      %1382 = vrot.lane.b32.xlu0 %v761, 64
      %v1383 = vpop.permute.xlu0 %1382
      %1384 = vrot.lane.b32.xlu0 %v762, 64
      %v1385 = vpop.permute.xlu0 %1384
      %1386 = vrot.lane.b32.xlu0 %v763, 64
      %v1387 = vpop.permute.xlu0 %1386
      %1388 = vrot.lane.b32.xlu0 %v764, 64
      %v1389 = vpop.permute.xlu0 %1388
      %1390 = vrot.lane.b32.xlu0 %v765, 64
      %v1391 = vpop.permute.xlu0 %1390
      %1392 = vrot.lane.b32.xlu0 %v766, 64
      %v1393 = vpop.permute.xlu0 %1392
      %1394 = vrot.lane.b32.xlu0 %v767, 64
      %v1395 = vpop.permute.xlu0 %1394
      %v1412 = vmul.f32 %v1268, %v1365
      %v1413 = vmul.f32 %v1269, %v1367
      %v1414 = vmul.f32 %v1270, %v1369
      %v1415 = vmul.f32 %v1271, %v1371
      %v1416 = vmul.f32 %v1272, %v1373
      %v1417 = vmul.f32 %v1273, %v1375
      %v1418 = vmul.f32 %v1274, %v1377
      %v1419 = vmul.f32 %v1275, %v1379
      %v1420 = vmul.f32 %v1276, %v1381
      %v1421 = vmul.f32 %v1277, %v1383
      %v1422 = vmul.f32 %v1278, %v1385
      %v1423 = vmul.f32 %v1279, %v1387
      %v1424 = vmul.f32 %v1280, %v1389
      %v1425 = vmul.f32 %v1281, %v1391
      %v1426 = vmul.f32 %v1282, %v1393
      %v1427 = vmul.f32 %v1283, %v1395
      %v1428 = vpack.c.bf16 %v1412, %v1412
      %v1429 = vpack.c.bf16 %v1413, %v1413
      %v1430 = vpack.c.bf16 %v1414, %v1414
      %v1431 = vpack.c.bf16 %v1415, %v1415
      %v1432 = vpack.c.bf16 %v1416, %v1416
      %v1433 = vpack.c.bf16 %v1417, %v1417
      %v1434 = vpack.c.bf16 %v1418, %v1418
      %v1435 = vpack.c.bf16 %v1419, %v1419
      %v1436 = vpack.c.bf16 %v1420, %v1420
      %v1437 = vpack.c.bf16 %v1421, %v1421
      %v1438 = vpack.c.bf16 %v1422, %v1422
      %v1439 = vpack.c.bf16 %v1423, %v1423
      %v1440 = vpack.c.bf16 %v1424, %v1424
      %v1441 = vpack.c.bf16 %v1425, %v1425
      %v1442 = vpack.c.bf16 %v1426, %v1426
      %v1443 = vpack.c.bf16 %v1427, %v1427
      %v1444 = vld [vmem:[%s6] sm:$0xf]
      %v1445 = vld [vmem:[%s6 + $0x4] sm:$0xf]
      %v1446 = vld [vmem:[%s6 + $0x8] sm:$0xf]
      %v1447 = vld [vmem:[%s6 + $0xc] sm:$0xf]
      %v1464 = vunpack.c.l.b16 %v1428
      %v1465 = vunpack.c.l.b16 %v1429
      %v1466 = vunpack.c.l.b16 %v1430
      %v1467 = vunpack.c.l.b16 %v1431
      %v1468 = vunpack.c.l.b16 %v1432
      %v1469 = vunpack.c.l.b16 %v1433
      %v1470 = vunpack.c.l.b16 %v1434
      %v1471 = vunpack.c.l.b16 %v1435
      %v1472 = vunpack.c.l.b16 %v1436
      %v1473 = vunpack.c.l.b16 %v1437
      %v1474 = vunpack.c.l.b16 %v1438
      %v1475 = vunpack.c.l.b16 %v1439
      %v1476 = vunpack.c.l.b16 %v1440
      %v1477 = vunpack.c.l.b16 %v1441
      %v1478 = vunpack.c.l.b16 %v1442
      %v1479 = vunpack.c.l.b16 %v1443
      %v1480 = vpack.c.b16 %v1465, %v1464
      %v1481 = vpack.c.b16 %v1467, %v1466
      %v1482 = vpack.c.b16 %v1469, %v1468
      %v1483 = vpack.c.b16 %v1471, %v1470
      %v1484 = vpack.c.b16 %v1473, %v1472
      %v1485 = vpack.c.b16 %v1475, %v1474
      %v1486 = vpack.c.b16 %v1477, %v1476
      %v1487 = vpack.c.b16 %v1479, %v1478
      %v1492 = vunpack.c.l.b16 %v1444
      %v1493 = vunpack.c.l.b16 %v1445
      %v1494 = vunpack.c.l.b16 %v1446
      %v1495 = vunpack.c.l.b16 %v1447
      %v1496 = vpack.c.b16 %v1493, %v1492
      %v1497 = vpack.c.b16 %v1495, %v1494
      %v1501 = vsel %vm1146, %v1480, 0
      %v1504 = vsel %vm1146, %v1481, 0
      %v1507 = vsel %vm1146, %v1482, 0
      %v1510 = vsel %vm1146, %v1483, 0
      %v1513 = vsel %vm1146, %v1484, 0
      %v1516 = vsel %vm1146, %v1485, 0
      %v1519 = vsel %vm1146, %v1486, 0
      %v1522 = vsel %vm1146, %v1487, 0
      %1524 = vmatprep.subr.bf16.mxu0 0
      %1525 = vmatpush1.bf16.msra.mxu0 %v1496
      %1526 = vmatprep.subr.bf16.mxu0 0
      %1527 = vmatpush1.bf16.msra.mxu0 %v1497
      %1528 = vmatprep.subr.bf16.mxu0 0
      %1529 = vmatpush1.bf16.msra.mxu0 0
      %1530 = vmatprep.subr.bf16.mxu0 0
      %1531 = vmatpush1.bf16.msra.mxu0 0
      %1532 = vmatprep.subr.bf16.mxu0 0
      %1533 = vmatpush1.bf16.msra.mxu0 0
      %1534 = vmatprep.subr.bf16.mxu0 0
      %1535 = vmatpush1.bf16.msra.mxu0 0
      %1536 = vmatprep.subr.bf16.mxu0 0
      %1537 = vmatpush1.bf16.msra.mxu0 0
      %1538 = vmatprep.subr.bf16.mxu0 0
      %1539 = vmatpush1.bf16.msra.mxu0 0
      %1540 = vmatprep.subr.bf16.mxu0 0
      %1541 = vmatpush1.bf16.msra.mxu0 0
      %1542 = vmatprep.subr.bf16.mxu0 0
      %1543 = vmatpush1.bf16.msra.mxu0 0
      %1544 = vmatprep.subr.bf16.mxu0 0
      %1545 = vmatpush1.bf16.msra.mxu0 0
      %1546 = vmatprep.subr.bf16.mxu0 0
      %1547 = vmatpush1.bf16.msra.mxu0 0
      %1548 = vmatprep.subr.bf16.mxu0 0
      %1549 = vmatpush1.bf16.msra.mxu0 0
      %1550 = vmatprep.subr.bf16.mxu0 0
      %1551 = vmatpush1.bf16.msra.mxu0 0
      %1552 = vmatprep.subr.bf16.mxu0 0
      %1553 = vmatpush1.bf16.msra.mxu0 0
      %1554 = vmatprep.subr.bf16.mxu0 0
      %1555 = vmatpush1.bf16.msra.mxu0 0
      %1556 = vmatprep.mubr.bf16.mxu0 0
      %1557 = vmatmul.mubr.bf16.gmra.mrb[0].mxu0 %v1501
      %v1558 = vpop.f32.mrb[0].mxu0
      %v1559 = vadd.f32 0.0, %v1558
      %v1560 = vpop.f32.mrb[0].mxu0
      %v1561 = vpop.f32.mrb[0].mxu0
      %v1562 = vadd.f32 0.0, %v1561
      %v1563 = vpop.f32.mrb[0].mxu0
      %1564 = vmatprep.mubr.bf16.mxu0 0
      %1565 = vmatmul.mubr.bf16.gmra.mrb[0].mxu0 %v1504
      %v1566 = vpop.f32.mrb[0].mxu0
      %v1567 = vadd.f32 0.0, %v1566
      %v1568 = vpop.f32.mrb[0].mxu0
      %v1569 = vpop.f32.mrb[0].mxu0
      %v1570 = vadd.f32 0.0, %v1569
      %v1571 = vpop.f32.mrb[0].mxu0
      %1572 = vmatprep.mubr.bf16.mxu0 0
      %1573 = vmatmul.mubr.bf16.gmra.mrb[0].mxu0 %v1507
      %v1574 = vpop.f32.mrb[0].mxu0
      %v1575 = vadd.f32 0.0, %v1574
      %v1576 = vpop.f32.mrb[0].mxu0
      %v1577 = vpop.f32.mrb[0].mxu0
      %v1578 = vadd.f32 0.0, %v1577
      %v1579 = vpop.f32.mrb[0].mxu0
      %1580 = vmatprep.mubr.bf16.mxu0 0
      %1581 = vmatmul.mubr.bf16.gmra.mrb[0].mxu0 %v1510
      %v1582 = vpop.f32.mrb[0].mxu0
      %v1583 = vadd.f32 0.0, %v1582
      %v1584 = vpop.f32.mrb[0].mxu0
      %v1585 = vpop.f32.mrb[0].mxu0
      %v1586 = vadd.f32 0.0, %v1585
      %v1587 = vpop.f32.mrb[0].mxu0
      %1588 = vmatprep.mubr.bf16.mxu0 0
      %1589 = vmatmul.mubr.bf16.gmra.mrb[0].mxu0 %v1513
      %v1590 = vpop.f32.mrb[0].mxu0
      %v1591 = vadd.f32 0.0, %v1590
      %v1592 = vpop.f32.mrb[0].mxu0
      %v1593 = vpop.f32.mrb[0].mxu0
      %v1594 = vadd.f32 0.0, %v1593
      %v1595 = vpop.f32.mrb[0].mxu0
      %1596 = vmatprep.mubr.bf16.mxu0 0
      %1597 = vmatmul.mubr.bf16.gmra.mrb[0].mxu0 %v1516
      %v1598 = vpop.f32.mrb[0].mxu0
      %v1599 = vadd.f32 0.0, %v1598
      %v1600 = vpop.f32.mrb[0].mxu0
      %v1601 = vpop.f32.mrb[0].mxu0
      %v1602 = vadd.f32 0.0, %v1601
      %v1603 = vpop.f32.mrb[0].mxu0
      %1604 = vmatprep.mubr.bf16.mxu0 0
      %1605 = vmatmul.mubr.bf16.gmra.mrb[0].mxu0 %v1519
      %v1606 = vpop.f32.mrb[0].mxu0
      %v1607 = vadd.f32 0.0, %v1606
      %v1608 = vpop.f32.mrb[0].mxu0
      %v1609 = vpop.f32.mrb[0].mxu0
      %v1610 = vadd.f32 0.0, %v1609
      %v1611 = vpop.f32.mrb[0].mxu0
      %1612 = vmatprep.mubr.bf16.mxu0 0
      %1613 = vmatmul.mubr.bf16.gmra.mrb[0].mxu0 %v1522
      %v1614 = vpop.f32.mrb[0].mxu0
      %v1615 = vadd.f32 0.0, %v1614
      %v1616 = vpop.f32.mrb[0].mxu0
      %v1617 = vpop.f32.mrb[0].mxu0
      %v1618 = vadd.f32 0.0, %v1617
      %v1619 = vpop.f32.mrb[0].mxu0
      %1620 = vdwg.mxu0
      %1621 = vrot.lane.b32.xlu0 %v752, 32
      %v1622 = vpop.permute.xlu0 %1621
      %1623 = vrot.lane.b32.xlu0 %v753, 32
      %v1624 = vpop.permute.xlu0 %1623
      %1625 = vrot.lane.b32.xlu0 %v754, 32
      %v1626 = vpop.permute.xlu0 %1625
      %1627 = vrot.lane.b32.xlu0 %v755, 32
      %v1628 = vpop.permute.xlu0 %1627
      %1629 = vrot.lane.b32.xlu0 %v756, 32
      %v1630 = vpop.permute.xlu0 %1629
      %1631 = vrot.lane.b32.xlu0 %v757, 32
      %v1632 = vpop.permute.xlu0 %1631
      %1633 = vrot.lane.b32.xlu0 %v758, 32
      %v1634 = vpop.permute.xlu0 %1633
      %1635 = vrot.lane.b32.xlu0 %v759, 32
      %v1636 = vpop.permute.xlu0 %1635
      %1637 = vrot.lane.b32.xlu0 %v760, 32
      %v1638 = vpop.permute.xlu0 %1637
      %1639 = vrot.lane.b32.xlu0 %v761, 32
      %v1640 = vpop.permute.xlu0 %1639
      %1641 = vrot.lane.b32.xlu0 %v762, 32
      %v1642 = vpop.permute.xlu0 %1641
      %1643 = vrot.lane.b32.xlu0 %v763, 32
      %v1644 = vpop.permute.xlu0 %1643
      %1645 = vrot.lane.b32.xlu0 %v764, 32
      %v1646 = vpop.permute.xlu0 %1645
      %1647 = vrot.lane.b32.xlu0 %v765, 32
      %v1648 = vpop.permute.xlu0 %1647
      %1649 = vrot.lane.b32.xlu0 %v766, 32
      %v1650 = vpop.permute.xlu0 %1649
      %1651 = vrot.lane.b32.xlu0 %v767, 32
      %v1652 = vpop.permute.xlu0 %1651
      %v1669 = vmul.f32 %v1559, %v1622
      %v1670 = vmul.f32 %v1562, %v1624
      %v1671 = vmul.f32 %v1567, %v1626
      %v1672 = vmul.f32 %v1570, %v1628
      %v1673 = vmul.f32 %v1575, %v1630
      %v1674 = vmul.f32 %v1578, %v1632
      %v1675 = vmul.f32 %v1583, %v1634
      %v1676 = vmul.f32 %v1586, %v1636
      %v1677 = vmul.f32 %v1591, %v1638
      %v1678 = vmul.f32 %v1594, %v1640
      %v1679 = vmul.f32 %v1599, %v1642
      %v1680 = vmul.f32 %v1602, %v1644
      %v1681 = vmul.f32 %v1607, %v1646
      %v1682 = vmul.f32 %v1610, %v1648
      %v1683 = vmul.f32 %v1615, %v1650
      %v1684 = vmul.f32 %v1618, %v1652
      %v1685 = vmul.f32 %v1206, %v1348
      %v1686 = vmul.f32 %v1209, %v1349
      %v1687 = vmul.f32 %v1214, %v1350
      %v1688 = vmul.f32 %v1217, %v1351
      %v1689 = vmul.f32 %v1222, %v1352
      %v1690 = vmul.f32 %v1225, %v1353
      %v1691 = vmul.f32 %v1230, %v1354
      %v1692 = vmul.f32 %v1233, %v1355
      %v1693 = vmul.f32 %v1238, %v1356
      %v1694 = vmul.f32 %v1241, %v1357
      %v1695 = vmul.f32 %v1246, %v1358
      %v1696 = vmul.f32 %v1249, %v1359
      %v1697 = vmul.f32 %v1254, %v1360
      %v1698 = vmul.f32 %v1257, %v1361
      %v1699 = vmul.f32 %v1262, %v1362
      %v1700 = vmul.f32 %v1265, %v1363
      %v1701 = vsel %vm1146, %v1685, 0.0
      %1702 = vadd.xlane.f32.xlu0 %v1701
      %v1703 = vpop.xlane.xlu0 %1702
      %v1704 = vsel %vm1146, %v1686, 0.0
      %1705 = vadd.xlane.f32.xlu0 %v1704
      %v1706 = vpop.xlane.xlu0 %1705
      %v1707 = vsel %vm1146, %v1687, 0.0
      %1708 = vadd.xlane.f32.xlu0 %v1707
      %v1709 = vpop.xlane.xlu0 %1708
      %v1710 = vsel %vm1146, %v1688, 0.0
      %1711 = vadd.xlane.f32.xlu0 %v1710
      %v1712 = vpop.xlane.xlu0 %1711
      %v1713 = vsel %vm1146, %v1689, 0.0
      %1714 = vadd.xlane.f32.xlu0 %v1713
      %v1715 = vpop.xlane.xlu0 %1714
      %v1716 = vsel %vm1146, %v1690, 0.0
      %1717 = vadd.xlane.f32.xlu0 %v1716
      %v1718 = vpop.xlane.xlu0 %1717
      %v1719 = vsel %vm1146, %v1691, 0.0
      %1720 = vadd.xlane.f32.xlu0 %v1719
      %v1721 = vpop.xlane.xlu0 %1720
      %v1722 = vsel %vm1146, %v1692, 0.0
      %1723 = vadd.xlane.f32.xlu0 %v1722
      %v1724 = vpop.xlane.xlu0 %1723
      %v1725 = vsel %vm1146, %v1693, 0.0
      %1726 = vadd.xlane.f32.xlu0 %v1725
      %v1727 = vpop.xlane.xlu0 %1726
      %v1728 = vsel %vm1146, %v1694, 0.0
      %1729 = vadd.xlane.f32.xlu0 %v1728
      %v1730 = vpop.xlane.xlu0 %1729
      %v1731 = vsel %vm1146, %v1695, 0.0
      %1732 = vadd.xlane.f32.xlu0 %v1731
      %v1733 = vpop.xlane.xlu0 %1732
      %v1734 = vsel %vm1146, %v1696, 0.0
      %1735 = vadd.xlane.f32.xlu0 %v1734
      %v1736 = vpop.xlane.xlu0 %1735
      %v1737 = vsel %vm1146, %v1697, 0.0
      %1738 = vadd.xlane.f32.xlu0 %v1737
      %v1739 = vpop.xlane.xlu0 %1738
      %v1740 = vsel %vm1146, %v1698, 0.0
      %1741 = vadd.xlane.f32.xlu0 %v1740
      %v1742 = vpop.xlane.xlu0 %1741
      %v1743 = vsel %vm1146, %v1699, 0.0
      %1744 = vadd.xlane.f32.xlu0 %v1743
      %v1745 = vpop.xlane.xlu0 %1744
      %v1746 = vsel %vm1146, %v1700, 0.0
      %1747 = vadd.xlane.f32.xlu0 %v1746
      %v1748 = vpop.xlane.xlu0 %1747
      %v1749 = vrot.slane %v1703, 4
      %v1750 = vmax.f32 %v1703, %v1749
      %v1751 = vrot.slane %v1750, 2
      %v1752 = vmax.f32 %v1750, %v1751
      %v1753 = vrot.slane %v1752, 1
      %v1754 = vmax.f32 %v1752, %v1753
      %v1755 = vrot.slane %v1706, 4
      %v1756 = vmax.f32 %v1706, %v1755
      %v1757 = vrot.slane %v1756, 2
      %v1758 = vmax.f32 %v1756, %v1757
      %v1759 = vrot.slane %v1758, 1
      %v1760 = vmax.f32 %v1758, %v1759
      %v1761 = vrot.slane %v1709, 4
      %v1762 = vmax.f32 %v1709, %v1761
      %v1763 = vrot.slane %v1762, 2
      %v1764 = vmax.f32 %v1762, %v1763
      %v1765 = vrot.slane %v1764, 1
      %v1766 = vmax.f32 %v1764, %v1765
      %v1767 = vrot.slane %v1712, 4
      %v1768 = vmax.f32 %v1712, %v1767
      %v1769 = vrot.slane %v1768, 2
      %v1770 = vmax.f32 %v1768, %v1769
      %v1771 = vrot.slane %v1770, 1
      %v1772 = vmax.f32 %v1770, %v1771
      %v1773 = vrot.slane %v1715, 4
      %v1774 = vmax.f32 %v1715, %v1773
      %v1775 = vrot.slane %v1774, 2
      %v1776 = vmax.f32 %v1774, %v1775
      %v1777 = vrot.slane %v1776, 1
      %v1778 = vmax.f32 %v1776, %v1777
      %v1779 = vrot.slane %v1718, 4
      %v1780 = vmax.f32 %v1718, %v1779
      %v1781 = vrot.slane %v1780, 2
      %v1782 = vmax.f32 %v1780, %v1781
      %v1783 = vrot.slane %v1782, 1
      %v1784 = vmax.f32 %v1782, %v1783
      %v1785 = vrot.slane %v1721, 4
      %v1786 = vmax.f32 %v1721, %v1785
      %v1787 = vrot.slane %v1786, 2
      %v1788 = vmax.f32 %v1786, %v1787
      %v1789 = vrot.slane %v1788, 1
      %v1790 = vmax.f32 %v1788, %v1789
      %v1791 = vrot.slane %v1724, 4
      %v1792 = vmax.f32 %v1724, %v1791
      %v1793 = vrot.slane %v1792, 2
      %v1794 = vmax.f32 %v1792, %v1793
      %v1795 = vrot.slane %v1794, 1
      %v1796 = vmax.f32 %v1794, %v1795
      %v1797 = vrot.slane %v1727, 4
      %v1798 = vmax.f32 %v1727, %v1797
      %v1799 = vrot.slane %v1798, 2
      %v1800 = vmax.f32 %v1798, %v1799
      %v1801 = vrot.slane %v1800, 1
      %v1802 = vmax.f32 %v1800, %v1801
      %v1803 = vrot.slane %v1730, 4
      %v1804 = vmax.f32 %v1730, %v1803
      %v1805 = vrot.slane %v1804, 2
      %v1806 = vmax.f32 %v1804, %v1805
      %v1807 = vrot.slane %v1806, 1
      %v1808 = vmax.f32 %v1806, %v1807
      %v1809 = vrot.slane %v1733, 4
      %v1810 = vmax.f32 %v1733, %v1809
      %v1811 = vrot.slane %v1810, 2
      %v1812 = vmax.f32 %v1810, %v1811
      %v1813 = vrot.slane %v1812, 1
      %v1814 = vmax.f32 %v1812, %v1813
      %v1815 = vrot.slane %v1736, 4
      %v1816 = vmax.f32 %v1736, %v1815
      %v1817 = vrot.slane %v1816, 2
      %v1818 = vmax.f32 %v1816, %v1817
      %v1819 = vrot.slane %v1818, 1
      %v1820 = vmax.f32 %v1818, %v1819
      %v1821 = vrot.slane %v1739, 4
      %v1822 = vmax.f32 %v1739, %v1821
      %v1823 = vrot.slane %v1822, 2
      %v1824 = vmax.f32 %v1822, %v1823
      %v1825 = vrot.slane %v1824, 1
      %v1826 = vmax.f32 %v1824, %v1825
      %v1827 = vrot.slane %v1742, 4
      %v1828 = vmax.f32 %v1742, %v1827
      %v1829 = vrot.slane %v1828, 2
      %v1830 = vmax.f32 %v1828, %v1829
      %v1831 = vrot.slane %v1830, 1
      %v1832 = vmax.f32 %v1830, %v1831
      %v1833 = vrot.slane %v1745, 4
      %v1834 = vmax.f32 %v1745, %v1833
      %v1835 = vrot.slane %v1834, 2
      %v1836 = vmax.f32 %v1834, %v1835
      %v1837 = vrot.slane %v1836, 1
      %v1838 = vmax.f32 %v1836, %v1837
      %v1839 = vrot.slane %v1748, 4
      %v1840 = vmax.f32 %v1748, %v1839
      %v1841 = vrot.slane %v1840, 2
      %v1842 = vmax.f32 %v1840, %v1841
      %v1843 = vrot.slane %v1842, 1
      %v1844 = vmax.f32 %v1842, %v1843
      %v1845 = vsub.f32 %v1703, %v1754
      %v1846 = vsub.f32 %v1706, %v1760
      %v1847 = vsub.f32 %v1709, %v1766
      %v1848 = vsub.f32 %v1712, %v1772
      %v1849 = vsub.f32 %v1715, %v1778
      %v1850 = vsub.f32 %v1718, %v1784
      %v1851 = vsub.f32 %v1721, %v1790
      %v1852 = vsub.f32 %v1724, %v1796
      %v1853 = vsub.f32 %v1727, %v1802
      %v1854 = vsub.f32 %v1730, %v1808
      %v1855 = vsub.f32 %v1733, %v1814
      %v1856 = vsub.f32 %v1736, %v1820
      %v1857 = vsub.f32 %v1739, %v1826
      %v1858 = vsub.f32 %v1742, %v1832
      %v1859 = vsub.f32 %v1745, %v1838
      %v1860 = vsub.f32 %v1748, %v1844
      %v1861 = vmul.f32 %v1845, 1.442695
      %v1862 = vpow.pop %v1861
      %v1863 = vmul.f32 %v1846, 1.442695
      %v1864 = vpow.pop %v1863
      %v1865 = vmul.f32 %v1847, 1.442695
      %v1866 = vpow.pop %v1865
      %v1867 = vmul.f32 %v1848, 1.442695
      %v1868 = vpow.pop %v1867
      %v1869 = vmul.f32 %v1849, 1.442695
      %v1870 = vpow.pop %v1869
      %v1871 = vmul.f32 %v1850, 1.442695
      %v1872 = vpow.pop %v1871
      %v1873 = vmul.f32 %v1851, 1.442695
      %v1874 = vpow.pop %v1873
      %v1875 = vmul.f32 %v1852, 1.442695
      %v1876 = vpow.pop %v1875
      %v1877 = vmul.f32 %v1853, 1.442695
      %v1878 = vpow.pop %v1877
      %v1879 = vmul.f32 %v1854, 1.442695
      %v1880 = vpow.pop %v1879
      %v1881 = vmul.f32 %v1855, 1.442695
      %v1882 = vpow.pop %v1881
      %v1883 = vmul.f32 %v1856, 1.442695
      %v1884 = vpow.pop %v1883
      %v1885 = vmul.f32 %v1857, 1.442695
      %v1886 = vpow.pop %v1885
      %v1887 = vmul.f32 %v1858, 1.442695
      %v1888 = vpow.pop %v1887
      %v1889 = vmul.f32 %v1859, 1.442695
      %v1890 = vpow.pop %v1889
      %v1891 = vmul.f32 %v1860, 1.442695
      %v1892 = vpow.pop %v1891
      %v1893 = vrot.slane %v1862, 4
      %v1894 = vadd.f32 %v1862, %v1893
      %v1895 = vrot.slane %v1894, 2
      %v1896 = vadd.f32 %v1894, %v1895
      %v1897 = vrot.slane %v1896, 1
      %v1898 = vadd.f32 %v1896, %v1897
      %v1899 = vrot.slane %v1864, 4
      %v1900 = vadd.f32 %v1864, %v1899
      %v1901 = vrot.slane %v1900, 2
      %v1902 = vadd.f32 %v1900, %v1901
      %v1903 = vrot.slane %v1902, 1
      %v1904 = vadd.f32 %v1902, %v1903
      %v1905 = vrot.slane %v1866, 4
      %v1906 = vadd.f32 %v1866, %v1905
      %v1907 = vrot.slane %v1906, 2
      %v1908 = vadd.f32 %v1906, %v1907
      %v1909 = vrot.slane %v1908, 1
      %v1910 = vadd.f32 %v1908, %v1909
      %v1911 = vrot.slane %v1868, 4
      %v1912 = vadd.f32 %v1868, %v1911
      %v1913 = vrot.slane %v1912, 2
      %v1914 = vadd.f32 %v1912, %v1913
      %v1915 = vrot.slane %v1914, 1
      %v1916 = vadd.f32 %v1914, %v1915
      %v1917 = vrot.slane %v1870, 4
      %v1918 = vadd.f32 %v1870, %v1917
      %v1919 = vrot.slane %v1918, 2
      %v1920 = vadd.f32 %v1918, %v1919
      %v1921 = vrot.slane %v1920, 1
      %v1922 = vadd.f32 %v1920, %v1921
      %v1923 = vrot.slane %v1872, 4
      %v1924 = vadd.f32 %v1872, %v1923
      %v1925 = vrot.slane %v1924, 2
      %v1926 = vadd.f32 %v1924, %v1925
      %v1927 = vrot.slane %v1926, 1
      %v1928 = vadd.f32 %v1926, %v1927
      %v1929 = vrot.slane %v1874, 4
      %v1930 = vadd.f32 %v1874, %v1929
      %v1931 = vrot.slane %v1930, 2
      %v1932 = vadd.f32 %v1930, %v1931
      %v1933 = vrot.slane %v1932, 1
      %v1934 = vadd.f32 %v1932, %v1933
      %v1935 = vrot.slane %v1876, 4
      %v1936 = vadd.f32 %v1876, %v1935
      %v1937 = vrot.slane %v1936, 2
      %v1938 = vadd.f32 %v1936, %v1937
      %v1939 = vrot.slane %v1938, 1
      %v1940 = vadd.f32 %v1938, %v1939
      %v1941 = vrot.slane %v1878, 4
      %v1942 = vadd.f32 %v1878, %v1941
      %v1943 = vrot.slane %v1942, 2
      %v1944 = vadd.f32 %v1942, %v1943
      %v1945 = vrot.slane %v1944, 1
      %v1946 = vadd.f32 %v1944, %v1945
      %v1947 = vrot.slane %v1880, 4
      %v1948 = vadd.f32 %v1880, %v1947
      %v1949 = vrot.slane %v1948, 2
      %v1950 = vadd.f32 %v1948, %v1949
      %v1951 = vrot.slane %v1950, 1
      %v1952 = vadd.f32 %v1950, %v1951
      %v1953 = vrot.slane %v1882, 4
      %v1954 = vadd.f32 %v1882, %v1953
      %v1955 = vrot.slane %v1954, 2
      %v1956 = vadd.f32 %v1954, %v1955
      %v1957 = vrot.slane %v1956, 1
      %v1958 = vadd.f32 %v1956, %v1957
      %v1959 = vrot.slane %v1884, 4
      %v1960 = vadd.f32 %v1884, %v1959
      %v1961 = vrot.slane %v1960, 2
      %v1962 = vadd.f32 %v1960, %v1961
      %v1963 = vrot.slane %v1962, 1
      %v1964 = vadd.f32 %v1962, %v1963
      %v1965 = vrot.slane %v1886, 4
      %v1966 = vadd.f32 %v1886, %v1965
      %v1967 = vrot.slane %v1966, 2
      %v1968 = vadd.f32 %v1966, %v1967
      %v1969 = vrot.slane %v1968, 1
      %v1970 = vadd.f32 %v1968, %v1969
      %v1971 = vrot.slane %v1888, 4
      %v1972 = vadd.f32 %v1888, %v1971
      %v1973 = vrot.slane %v1972, 2
      %v1974 = vadd.f32 %v1972, %v1973
      %v1975 = vrot.slane %v1974, 1
      %v1976 = vadd.f32 %v1974, %v1975
      %v1977 = vrot.slane %v1890, 4
      %v1978 = vadd.f32 %v1890, %v1977
      %v1979 = vrot.slane %v1978, 2
      %v1980 = vadd.f32 %v1978, %v1979
      %v1981 = vrot.slane %v1980, 1
      %v1982 = vadd.f32 %v1980, %v1981
      %v1983 = vrot.slane %v1892, 4
      %v1984 = vadd.f32 %v1892, %v1983
      %v1985 = vrot.slane %v1984, 2
      %v1986 = vadd.f32 %v1984, %v1985
      %v1987 = vrot.slane %v1986, 1
      %v1988 = vadd.f32 %v1986, %v1987
      %v1989 = vrcp.pop %v1898
      %v1990 = vrcp.pop %v1904
      %v1991 = vrcp.pop %v1910
      %v1992 = vrcp.pop %v1916
      %v1993 = vrcp.pop %v1922
      %v1994 = vrcp.pop %v1928
      %v1995 = vrcp.pop %v1934
      %v1996 = vrcp.pop %v1940
      %v1997 = vrcp.pop %v1946
      %v1998 = vrcp.pop %v1952
      %v1999 = vrcp.pop %v1958
      %v2000 = vrcp.pop %v1964
      %v2001 = vrcp.pop %v1970
      %v2002 = vrcp.pop %v1976
      %v2003 = vrcp.pop %v1982
      %v2004 = vrcp.pop %v1988
      %v2005 = vmul.f32 %v1862, %v1989
      %v2006 = vmul.f32 %v1864, %v1990
      %v2007 = vmul.f32 %v1866, %v1991
      %v2008 = vmul.f32 %v1868, %v1992
      %v2009 = vmul.f32 %v1870, %v1993
      %v2010 = vmul.f32 %v1872, %v1994
      %v2011 = vmul.f32 %v1874, %v1995
      %v2012 = vmul.f32 %v1876, %v1996
      %v2013 = vmul.f32 %v1878, %v1997
      %v2014 = vmul.f32 %v1880, %v1998
      %v2015 = vmul.f32 %v1882, %v1999
      %v2016 = vmul.f32 %v1884, %v2000
      %v2017 = vmul.f32 %v1886, %v2001
      %v2018 = vmul.f32 %v1888, %v2002
      %v2019 = vmul.f32 %v1890, %v2003
      %v2020 = vmul.f32 %v1892, %v2004
      %v2021 = vmul.f32 %v1669, %v2005
      %v2022 = vmul.f32 %v1670, %v2006
      %v2023 = vmul.f32 %v1671, %v2007
      %v2024 = vmul.f32 %v1672, %v2008
      %v2025 = vmul.f32 %v1673, %v2009
      %v2026 = vmul.f32 %v1674, %v2010
      %v2027 = vmul.f32 %v1675, %v2011
      %v2028 = vmul.f32 %v1676, %v2012
      %v2029 = vmul.f32 %v1677, %v2013
      %v2030 = vmul.f32 %v1678, %v2014
      %v2031 = vmul.f32 %v1679, %v2015
      %v2032 = vmul.f32 %v1680, %v2016
      %v2033 = vmul.f32 %v1681, %v2017
      %v2034 = vmul.f32 %v1682, %v2018
      %v2035 = vmul.f32 %v1683, %v2019
      %v2036 = vmul.f32 %v1684, %v2020
      %v2037 = vsel %vm1146, %v2021, 0.0
      %v2038 = vrot.slane %v2037, 4
      %v2039 = vadd.f32 %v2037, %v2038
      %v2040 = vrot.slane %v2039, 2
      %v2041 = vadd.f32 %v2039, %v2040
      %v2042 = vrot.slane %v2041, 1
      %v2043 = vadd.f32 %v2041, %v2042
      %v2044 = vsel %vm1146, %v2022, 0.0
      %v2045 = vrot.slane %v2044, 4
      %v2046 = vadd.f32 %v2044, %v2045
      %v2047 = vrot.slane %v2046, 2
      %v2048 = vadd.f32 %v2046, %v2047
      %v2049 = vrot.slane %v2048, 1
      %v2050 = vadd.f32 %v2048, %v2049
      %v2051 = vsel %vm1146, %v2023, 0.0
      %v2052 = vrot.slane %v2051, 4
      %v2053 = vadd.f32 %v2051, %v2052
      %v2054 = vrot.slane %v2053, 2
      %v2055 = vadd.f32 %v2053, %v2054
      %v2056 = vrot.slane %v2055, 1
      %v2057 = vadd.f32 %v2055, %v2056
      %v2058 = vsel %vm1146, %v2024, 0.0
      %v2059 = vrot.slane %v2058, 4
      %v2060 = vadd.f32 %v2058, %v2059
      %v2061 = vrot.slane %v2060, 2
      %v2062 = vadd.f32 %v2060, %v2061
      %v2063 = vrot.slane %v2062, 1
      %v2064 = vadd.f32 %v2062, %v2063
      %v2065 = vsel %vm1146, %v2025, 0.0
      %v2066 = vrot.slane %v2065, 4
      %v2067 = vadd.f32 %v2065, %v2066
      %v2068 = vrot.slane %v2067, 2
      %v2069 = vadd.f32 %v2067, %v2068
      %v2070 = vrot.slane %v2069, 1
      %v2071 = vadd.f32 %v2069, %v2070
      %v2072 = vsel %vm1146, %v2026, 0.0
      %v2073 = vrot.slane %v2072, 4
      %v2074 = vadd.f32 %v2072, %v2073
      %v2075 = vrot.slane %v2074, 2
      %v2076 = vadd.f32 %v2074, %v2075
      %v2077 = vrot.slane %v2076, 1
      %v2078 = vadd.f32 %v2076, %v2077
      %v2079 = vsel %vm1146, %v2027, 0.0
      %v2080 = vrot.slane %v2079, 4
      %v2081 = vadd.f32 %v2079, %v2080
      %v2082 = vrot.slane %v2081, 2
      %v2083 = vadd.f32 %v2081, %v2082
      %v2084 = vrot.slane %v2083, 1
      %v2085 = vadd.f32 %v2083, %v2084
      %v2086 = vsel %vm1146, %v2028, 0.0
      %v2087 = vrot.slane %v2086, 4
      %v2088 = vadd.f32 %v2086, %v2087
      %v2089 = vrot.slane %v2088, 2
      %v2090 = vadd.f32 %v2088, %v2089
      %v2091 = vrot.slane %v2090, 1
      %v2092 = vadd.f32 %v2090, %v2091
      %v2093 = vsel %vm1146, %v2029, 0.0
      %v2094 = vrot.slane %v2093, 4
      %v2095 = vadd.f32 %v2093, %v2094
      %v2096 = vrot.slane %v2095, 2
      %v2097 = vadd.f32 %v2095, %v2096
      %v2098 = vrot.slane %v2097, 1
      %v2099 = vadd.f32 %v2097, %v2098
      %v2100 = vsel %vm1146, %v2030, 0.0
      %v2101 = vrot.slane %v2100, 4
      %v2102 = vadd.f32 %v2100, %v2101
      %v2103 = vrot.slane %v2102, 2
      %v2104 = vadd.f32 %v2102, %v2103
      %v2105 = vrot.slane %v2104, 1
      %v2106 = vadd.f32 %v2104, %v2105
      %v2107 = vsel %vm1146, %v2031, 0.0
      %v2108 = vrot.slane %v2107, 4
      %v2109 = vadd.f32 %v2107, %v2108
      %v2110 = vrot.slane %v2109, 2
      %v2111 = vadd.f32 %v2109, %v2110
      %v2112 = vrot.slane %v2111, 1
      %v2113 = vadd.f32 %v2111, %v2112
      %v2114 = vsel %vm1146, %v2032, 0.0
      %v2115 = vrot.slane %v2114, 4
      %v2116 = vadd.f32 %v2114, %v2115
      %v2117 = vrot.slane %v2116, 2
      %v2118 = vadd.f32 %v2116, %v2117
      %v2119 = vrot.slane %v2118, 1
      %v2120 = vadd.f32 %v2118, %v2119
      %v2121 = vsel %vm1146, %v2033, 0.0
      %v2122 = vrot.slane %v2121, 4
      %v2123 = vadd.f32 %v2121, %v2122
      %v2124 = vrot.slane %v2123, 2
      %v2125 = vadd.f32 %v2123, %v2124
      %v2126 = vrot.slane %v2125, 1
      %v2127 = vadd.f32 %v2125, %v2126
      %v2128 = vsel %vm1146, %v2034, 0.0
      %v2129 = vrot.slane %v2128, 4
      %v2130 = vadd.f32 %v2128, %v2129
      %v2131 = vrot.slane %v2130, 2
      %v2132 = vadd.f32 %v2130, %v2131
      %v2133 = vrot.slane %v2132, 1
      %v2134 = vadd.f32 %v2132, %v2133
      %v2135 = vsel %vm1146, %v2035, 0.0
      %v2136 = vrot.slane %v2135, 4
      %v2137 = vadd.f32 %v2135, %v2136
      %v2138 = vrot.slane %v2137, 2
      %v2139 = vadd.f32 %v2137, %v2138
      %v2140 = vrot.slane %v2139, 1
      %v2141 = vadd.f32 %v2139, %v2140
      %v2142 = vsel %vm1146, %v2036, 0.0
      %v2143 = vrot.slane %v2142, 4
      %v2144 = vadd.f32 %v2142, %v2143
      %v2145 = vrot.slane %v2144, 2
      %v2146 = vadd.f32 %v2144, %v2145
      %v2147 = vrot.slane %v2146, 1
      %v2148 = vadd.f32 %v2146, %v2147
      %v2149 = vunpack.c.l.bf16 %v493
      %v2150 = vunpack.c.l.bf16 %v494
      %v2153 = vrot.slane %v2149, 1
      %v2154 = vrot.slane %v2149, 2
      %v2155 = vrot.slane %v2149, 3
      %v2156 = vrot.slane %v2149, 4
      %v2157 = vrot.slane %v2149, 5
      %v2158 = vrot.slane %v2149, 6
      %v2159 = vrot.slane %v2149, 7
      %v2160 = vrot.slane %v2150, 1
      %v2161 = vrot.slane %v2150, 2
      %v2162 = vrot.slane %v2150, 3
      %v2163 = vrot.slane %v2150, 4
      %v2164 = vrot.slane %v2150, 5
      %v2165 = vrot.slane %v2150, 6
      %v2166 = vrot.slane %v2150, 7
      %v2183 = vadd.f32 %v2043, %v2149
      %v2184 = vadd.f32 %v2050, %v2153
      %v2185 = vadd.f32 %v2057, %v2154
      %v2186 = vadd.f32 %v2064, %v2155
      %v2187 = vadd.f32 %v2071, %v2156
      %v2188 = vadd.f32 %v2078, %v2157
      %v2189 = vadd.f32 %v2085, %v2158
      %v2190 = vadd.f32 %v2092, %v2159
      %v2191 = vadd.f32 %v2099, %v2150
      %v2192 = vadd.f32 %v2106, %v2160
      %v2193 = vadd.f32 %v2113, %v2161
      %v2194 = vadd.f32 %v2120, %v2162
      %v2195 = vadd.f32 %v2127, %v2163
      %v2196 = vadd.f32 %v2134, %v2164
      %v2197 = vadd.f32 %v2141, %v2165
      %v2198 = vadd.f32 %v2148, %v2166
      %v2199 = vpack.c.bf16 %v2183, %v2183
      %v2200 = vpack.c.bf16 %v2184, %v2184
      %v2201 = vpack.c.bf16 %v2185, %v2185
      %v2202 = vpack.c.bf16 %v2186, %v2186
      %v2203 = vpack.c.bf16 %v2187, %v2187
      %v2204 = vpack.c.bf16 %v2188, %v2188
      %v2205 = vpack.c.bf16 %v2189, %v2189
      %v2206 = vpack.c.bf16 %v2190, %v2190
      %v2207 = vpack.c.bf16 %v2191, %v2191
      %v2208 = vpack.c.bf16 %v2192, %v2192
      %v2209 = vpack.c.bf16 %v2193, %v2193
      %v2210 = vpack.c.bf16 %v2194, %v2194
      %v2211 = vpack.c.bf16 %v2195, %v2195
      %v2212 = vpack.c.bf16 %v2196, %v2196
      %v2213 = vpack.c.bf16 %v2197, %v2197
      %v2214 = vpack.c.bf16 %v2198, %v2198
      %v2215 = vld [vmem:[%s7] sm:$0xf]
      %v2216 = vld [vmem:[%s7 + $0x4] sm:$0xf]
      %v2217 = vld [vmem:[%s7 + $0x8] sm:$0xf]
      %v2218 = vld [vmem:[%s7 + $0xc] sm:$0xf]
      %v2219 = vld [vmem:[%s8] sm:$0x1]
      %v2221 = vlaneseq
      %v2222 = vshrl.u32 %v2221, 7
      %v2223 = vsub.s32 0, %v2222
      %v2224 = vrot.slane %v2219, %v2223
      %v2242 = vunpack.c.l.b16 %v2199
      %v2243 = vunpack.c.l.b16 %v2200
      %v2244 = vunpack.c.l.b16 %v2201
      %v2245 = vunpack.c.l.b16 %v2202
      %v2246 = vunpack.c.l.b16 %v2203
      %v2247 = vunpack.c.l.b16 %v2204
      %v2248 = vunpack.c.l.b16 %v2205
      %v2249 = vunpack.c.l.b16 %v2206
      %v2250 = vunpack.c.l.b16 %v2207
      %v2251 = vunpack.c.l.b16 %v2208
      %v2252 = vunpack.c.l.b16 %v2209
      %v2253 = vunpack.c.l.b16 %v2210
      %v2254 = vunpack.c.l.b16 %v2211
      %v2255 = vunpack.c.l.b16 %v2212
      %v2256 = vunpack.c.l.b16 %v2213
      %v2257 = vunpack.c.l.b16 %v2214
      %v2258 = vrot.slane %v2243, 7
      %vm2259 = vcmask 1041409
      %v2260 = vsel %vm2259, %v2258, %v2242
      %v2261 = vrot.slane %v2244, 6
      %vm2262 = vcmask 1042434
      %v2263 = vsel %vm2262, %v2261, %v2260
      %v2264 = vrot.slane %v2245, 5
      %vm2265 = vcmask 1043459
      %v2266 = vsel %vm2265, %v2264, %v2263
      %v2267 = vrot.slane %v2246, 4
      %vm2268 = vcmask 1044484
      %v2269 = vsel %vm2268, %v2267, %v2266
      %v2270 = vrot.slane %v2247, 3
      %vm2271 = vcmask 1045509
      %v2272 = vsel %vm2271, %v2270, %v2269
      %v2273 = vrot.slane %v2248, 2
      %vm2274 = vcmask 1046534
      %v2275 = vsel %vm2274, %v2273, %v2272
      %v2276 = vrot.slane %v2249, 1
      %vm2277 = vcmask 1047559
      %v2278 = vsel %vm2277, %v2276, %v2275
      %v2279 = vrot.slane %v2251, 7
      %v2280 = vsel %vm2259, %v2279, %v2250
      %v2281 = vrot.slane %v2252, 6
      %v2282 = vsel %vm2262, %v2281, %v2280
      %v2283 = vrot.slane %v2253, 5
      %v2284 = vsel %vm2265, %v2283, %v2282
      %v2285 = vrot.slane %v2254, 4
      %v2286 = vsel %vm2268, %v2285, %v2284
      %v2287 = vrot.slane %v2255, 3
      %v2288 = vsel %vm2271, %v2287, %v2286
      %v2289 = vrot.slane %v2256, 2
      %v2290 = vsel %vm2274, %v2289, %v2288
      %v2291 = vrot.slane %v2257, 1
      %v2292 = vsel %vm2277, %v2291, %v2290
      %v2293 = vpack.c.b16 %v2292, %v2278
      %v2298 = vunpack.c.l.b16 %v2215
      %v2299 = vunpack.c.l.b16 %v2216
      %v2300 = vunpack.c.l.b16 %v2217
      %v2301 = vunpack.c.l.b16 %v2218
      %v2302 = vpack.c.b16 %v2299, %v2298
      %v2303 = vpack.c.b16 %v2301, %v2300
      %v2307 = vsel %vm1146, %v2293, 0
      %2309 = vmatprep.subr.bf16.mxu0 0
      %2310 = vmatpush1.bf16.msra.mxu0 %v2302
      %2311 = vmatprep.subr.bf16.mxu0 0
      %2312 = vmatpush1.bf16.msra.mxu0 %v2303
      %2313 = vmatprep.subr.bf16.mxu0 0
      %2314 = vmatpush1.bf16.msra.mxu0 0
      %2315 = vmatprep.subr.bf16.mxu0 0
      %2316 = vmatpush1.bf16.msra.mxu0 0
      %2317 = vmatprep.subr.bf16.mxu0 0
      %2318 = vmatpush1.bf16.msra.mxu0 0
      %2319 = vmatprep.subr.bf16.mxu0 0
      %2320 = vmatpush1.bf16.msra.mxu0 0
      %2321 = vmatprep.subr.bf16.mxu0 0
      %2322 = vmatpush1.bf16.msra.mxu0 0
      %2323 = vmatprep.subr.bf16.mxu0 0
      %2324 = vmatpush1.bf16.msra.mxu0 0
      %2325 = vmatprep.subr.bf16.mxu0 0
      %2326 = vmatpush1.bf16.msra.mxu0 0
      %2327 = vmatprep.subr.bf16.mxu0 0
      %2328 = vmatpush1.bf16.msra.mxu0 0
      %2329 = vmatprep.subr.bf16.mxu0 0
      %2330 = vmatpush1.bf16.msra.mxu0 0
      %2331 = vmatprep.subr.bf16.mxu0 0
      %2332 = vmatpush1.bf16.msra.mxu0 0
      %2333 = vmatprep.subr.bf16.mxu0 0
      %2334 = vmatpush1.bf16.msra.mxu0 0
      %2335 = vmatprep.subr.bf16.mxu0 0
      %2336 = vmatpush1.bf16.msra.mxu0 0
      %2337 = vmatprep.subr.bf16.mxu0 0
      %2338 = vmatpush1.bf16.msra.mxu0 0
      %2339 = vmatprep.subr.bf16.mxu0 0
      %2340 = vmatpush1.bf16.msra.mxu0 0
      %2341 = vmatprep.mubr.bf16.mxu0 0
      %2342 = vmatmul.mubr.bf16.gmra.mrb[0].mxu0 %v2307
      %v2343 = vpop.f32.mrb[0].mxu0
      %v2344 = vadd.f32 %v2224, %v2343
      %v2345 = vpop.f32.mrb[0].mxu0
      %v2346 = vpop.f32.mrb[0].mxu0
      %v2347 = vadd.f32 %v2224, %v2346
      %v2348 = vpop.f32.mrb[0].mxu0
      %2349 = vdwg.mxu0
      %v2350 = vlaneseq
      %v2351 = vshrl.u32 %v2350, 7
      %v2352 = vadd.s32 %v2351, 8
      %s2353 = smul.u32 %s27, 16
      %v2354 = vstv %s2353
      %v2355 = vadd.s32 %v2351, %v2354
      %v2356 = vadd.s32 %v2352, %v2354
      %vm2357 = vcmp.lt.s32.totalorder %v2355, 40
      %vm2358 = vcmp.lt.s32.totalorder %v2356, 40
      %v2359 = vsel %vm2357, 1, 0
      %v2360 = vsel %vm2358, 1, 0
      %vm2361 = vcmp.eq.s32.totalorder %v2359, 1
      %vm2362 = vcmp.eq.s32.totalorder %v2360, 1
      %v2363 = vsel %vm2361, %v2344, 0.0
      %v2364 = vsel %vm2362, %v2347, 0.0
      %v2365 = vsel %vm1146, %v2363, 0.0
      %v2366 = vsel %vm1146, %v2364, 0.0
      %v2367 = vadd.f32 %v2365, %v2366
      %v2368 = vrot.slane %v2367, 4
      %v2369 = vadd.f32 %v2367, %v2368
      %v2370 = vrot.slane %v2369, 2
      %v2371 = vadd.f32 %v2369, %v2370
      %v2372 = vrot.slane %v2371, 1
      %v2373 = vadd.f32 %v2371, %v2372
      %vm2374 = vcmask 253952
      %2375 = vst.msk [vmem:[%s491] sm:$0x1] %vm2374, %v2373
      %v2376 = vmul.f32 %v2363, %v2363
      %v2377 = vmul.f32 %v2364, %v2364
      %v2378 = vsel %vm1146, %v2376, 0.0
      %v2379 = vsel %vm1146, %v2377, 0.0
      %v2380 = vadd.f32 %v2378, %v2379
      %v2381 = vrot.slane %v2380, 4
      %v2382 = vadd.f32 %v2380, %v2381
      %v2383 = vrot.slane %v2382, 2
      %v2384 = vadd.f32 %v2382, %v2383
      %v2385 = vrot.slane %v2384, 1
      %v2386 = vadd.f32 %v2384, %v2385
      %2387 = vst.msk [vmem:[%s491 + $0x1] sm:$0x1] %vm2374, %v2386
      %v2388 = vpack.c.bf16 %v2347, %v2344
      %v2390 = vunpack.c.l.b16 %v2388
      %v2391 = vunpack.c.h.b16 %v2388
      %v2392 = vpack.c.b16 %v2390, %v2390
      %v2393 = vpack.c.b16 %v2391, %v2391
      %vm2396 = vcmask 257024
      %2397 = vst.msk [vmem:[%s482] sm:$0xf] %vm2396, %v2392
      %2398 = vst.msk [vmem:[%s482 + $0x4] sm:$0xf] %vm2396, %v2393
      %s2399 = smul.u32 2, %s27
      %p2400 = scmp.lt.s32.totalorder %s26, 1
      %s2401 = scalar_select %p2400, %s26, 1
      %p2402 = scmp.lt.s32.totalorder %s2399, 5
      %s2403 = scalar_select %p2402, %s2399, 5
      %s2404 = smul.addr %s2401, 6
      %s2405 = sadd.s32 %s2403, %s2404
      %s2406 = smul.addr %s2405, 4
      %s2407 = scalar_lea.vmem %s9, %s2406
      %p2408 = scmp.lt.s32.totalorder %s26, 1
      %s2409 = scalar_select %p2408, %s26, 1
      %p2410 = scmp.lt.s32.totalorder %s27, 2
      %s2411 = scalar_select %p2410, %s27, 2
      %s2412 = smul.addr %s2409, 3
      %s2413 = sadd.s32 %s2411, %s2412
      %s2414 = smul.addr %s2413, 2
      %s2415 = scalar_lea.vmem %s10, %s2414
      // Predicated region
      $region57: #{rpp_atten_forward.10} parent=55 // pred_check
        %p2416 = pneg %p264
      $region58: #{rpp_atten_forward.10} parent=55 // pred_check_branch
        %2418 = sbr.rel (%p2416) target = $region60
      $region59: #{rpp_atten_forward.10} parent=55 // pred_region
        %s2419 = smul.u32 2, %s27
      $region60: #{rpp_atten_forward.10} parent=55 // pred_fallthru
        _
      // Predicated region
      $region61: #{rpp_atten_forward.10} parent=55 // pred_check
        %p2420 = pneg %p292
      $region62: #{rpp_atten_forward.10} parent=55 // pred_check_branch
        %2422 = sbr.rel (%p2420) target = $region64
      $region63: #{rpp_atten_forward.10} parent=55 // pred_region
        _
      $region64: #{rpp_atten_forward.10} parent=55 // pred_fallthru
        _
    $region56: #{rpp_atten_forward.10} parent=5 // pred_fallthru
      _
    %p2423 = scmp.le.s32.totalorder 2, %s17
    // Predicated region
    $region65: #{rpp_atten_forward.10} parent=5 // pred_check
      %p2424 = pneg %p2423
    $region66: #{rpp_atten_forward.10} parent=5 // pred_check_branch
      %2426 = sbr.rel (%p2424) target = $region68
    $region67: #{rpp_atten_forward.10} parent=5 // pred_region
      %s2427 = ssub.s32 %s17, 2
      // Predicated region
      $region69: #{rpp_atten_forward.10} parent=67 // pred_check
        %p2428 = pneg %p270
      $region70: #{rpp_atten_forward.10} parent=67 // pred_check_branch
        %2430 = sbr.rel (%p2428) target = $region72
      $region71: #{rpp_atten_forward.10} parent=67 // pred_region
        %s2431 = smul.u32 2, %s29
        %p2432 = scmp.lt.s32.totalorder %s28, 1
        %s2433 = scalar_select %p2432, %s28, 1
        %p2434 = scmp.lt.s32.totalorder %s2431, 5
        %s2435 = scalar_select %p2434, %s2431, 5
        %s2436 = smul.addr %s2433, 6
        %s2437 = sadd.s32 %s2435, %s2436
        %s2438 = smul.addr %s2437, 4
        %s2439 = scalar_lea.vmem %s9, %s2438
      $region72: #{rpp_atten_forward.10} parent=67 // pred_fallthru
        _
      // Predicated region
      $region73: #{rpp_atten_forward.10} parent=67 // pred_check
        %p2440 = pneg %p298
      $region74: #{rpp_atten_forward.10} parent=67 // pred_check_branch
        %2442 = sbr.rel (%p2440) target = $region76
      $region75: #{rpp_atten_forward.10} parent=67 // pred_region
        %p2443 = scmp.lt.s32.totalorder %s28, 1
        %s2444 = scalar_select %p2443, %s28, 1
        %p2445 = scmp.lt.s32.totalorder %s29, 2
        %s2446 = scalar_select %p2445, %s29, 2
        %s2447 = smul.addr %s2444, 3
        %s2448 = sadd.s32 %s2446, %s2447
        %s2449 = smul.addr %s2448, 2
        %s2450 = scalar_lea.vmem %s10, %s2449
      $region76: #{rpp_atten_forward.10} parent=67 // pred_fallthru
        _
    $region68: #{rpp_atten_forward.10} parent=5 // pred_fallthru
      _
  $region6: #{rpp_atten_forward.10} parent=0 // loop_footer
    %s21 = sadd.s32 1, %s17
  $region7: #{rpp_atten_forward.10} parent=0 // loop_footer_branch
    %16 = sbr.rel target = $region3
  $region8: #{rpp_atten_forward.10} parent=0 // loop_exit
    _

</llo_original>
